<compile_context>
chip_gen: v7x
topology: tpu7x:2x2x1
jax: 0.10.0
libtpu: 0.0.40
codegen_flags: <defaults>
</compile_context>

<pallas_src>
import jax
import jax.numpy as jnp
import numpy as np
from jax import lax
from jax.experimental import pallas as pl
from jax.experimental.pallas import tpu as pltpu

LBLK = 128     # lane-dense block: each column-parity group is padded to 128 lanes
KSIZE = 5      # LeNet conv kernel size


# ---------------------------------------------------------------------------
# One-time weight prepacking (host side).  Hoisted out of the forward pass.
# ---------------------------------------------------------------------------

def _pack_conv(w_oihw, b, w_in):
    """Pack a (Cout,Cin,5,5) conv weight into KSIZE Toeplitz slabs.

    A[di] has shape (w_in*Cin, 2*LBLK).  Row i of the conv input (layout
    (row, col*Cin+ci)), matmul'd with A[di] and summed over di, yields conv
    output row i with columns laid out as:
        [0    : Wo/2*Cout)        -> even output columns (j = 0, 2, 4, ...)
        [LBLK : LBLK+Wo/2*Cout)   -> odd  output columns (j = 1, 3, 5, ...)
    so the 2x2 max-pool over columns becomes one aligned element-wise max.
    """
    w = np.asarray(w_oihw, np.float32)
    cout, cin, kh, kw = w.shape
    wo = w_in - kw + 1
    assert wo % 2 == 0 and (wo // 2) * cout <= LBLK
    wo2 = wo // 2
    a = np.zeros((kh, w_in * cin, 2 * LBLK), np.float32)
    for di in range(kh):
        for dj in range(kw):
            wt = w[:, :, di, dj].T                                    # (Cin, Cout)
            for jo in range(wo2):
                je = 2 * jo + dj          # input col feeding even output col 2*jo
                a[di, je * cin:(je + 1) * cin,
                  jo * cout:(jo + 1) * cout] = wt
                jodd = je + 1             # input col feeding odd output col 2*jo+1
                a[di, jodd * cin:(jodd + 1) * cin,
                  LBLK + jo * cout:LBLK + (jo + 1) * cout] = wt
    bias = np.zeros((1, 2 * LBLK), np.float32)
    bt = np.tile(np.asarray(b, np.float32), wo2)
    bias[0, :wo2 * cout] = bt
    bias[0, LBLK:LBLK + wo2 * cout] = bt
    return a, bias


def _pack_fc1(w, b, c_in, h_in, w_in):
    """Repack Linear1 so it consumes the kernel's (h, w*c + c) activation layout.

    torch flattens NCHW, i.e. input index = c*h_in*w_in + h*w_in + w.
    """
    w = np.asarray(w, np.float32)
    nout = w.shape[0]
    assert w.shape[1] == c_in * h_in * w_in and nout <= LBLK
    packed = np.zeros((h_in, w_in * c_in, LBLK), np.float32)
    for c in range(c_in):
        for hh in range(h_in):
            for ww in range(w_in):
                packed[hh, ww * c_in + c, :nout] = w[:, c * h_in * w_in + hh * w_in + ww]
    bias = np.zeros((1, LBLK), np.float32)
    bias[0, :nout] = np.asarray(b, np.float32)
    return packed, bias


def _pack_fc(w, b):
    """Pack a torch Linear (out, in) weight into a lane-padded (LBLK, LBLK) slab."""
    w = np.asarray(w, np.float32)
    nout, nin = w.shape
    assert nout <= LBLK and nin <= LBLK
    packed = np.zeros((LBLK, LBLK), np.float32)
    packed[:nin, :nout] = w.T
    bias = np.zeros((1, LBLK), np.float32)
    bias[0, :nout] = np.asarray(b, np.float32)
    return packed, bias


def prepack_params(params, height=32, width=32, compute_dtype=jnp.bfloat16):
    """One-time repack of torch-layout Lenet5 params for the fused kernel."""
    c2 = params["conv2_b"].shape[0]                                   # 16
    h2p = ((height // 2) - KSIZE + 1) // 2                            # 6
    w2p = ((width // 2) - KSIZE + 1) // 2                             # 6

    a1, b1 = _pack_conv(params["conv1_w"], params["conv1_b"], width + 4)
    a2, b2 = _pack_conv(params["conv2_w"], params["conv2_b"], width // 2)
    wfc1, bfc1 = _pack_fc1(params["fc1_w"], params["fc1_b"], c2, h2p, w2p)
    wfc2, bfc2 = _pack_fc(params["fc2_w"], params["fc2_b"])
    wfc3, bfc3 = _pack_fc(params["fc3_w"], params["fc3_b"])

    cd, f32 = compute_dtype, jnp.float32
    return {
        "a1": jnp.asarray(a1, cd), "b1": jnp.asarray(b1, f32),
        "a2": jnp.asarray(a2, cd), "b2": jnp.asarray(b2, f32),
        "wfc1": jnp.asarray(wfc1, cd), "bfc1": jnp.asarray(bfc1, f32),
        "wfc2": jnp.asarray(wfc2, cd), "bfc2": jnp.asarray(bfc2, f32),
        "wfc3": jnp.asarray(wfc3, cd), "bfc3": jnp.asarray(bfc3, f32),
    }


# ---------------------------------------------------------------------------
# Fused Pallas kernel (one grid step == one sample; whole net stays in VMEM)
# ---------------------------------------------------------------------------

def _make_kernel(c1, c2, height, width, compute_dtype):
    h1o = height                        # conv1 output height (padding=2)  = 32
    h1p, w1p = h1o // 2, width // 2     # pool1 output                     = 16,16
    h2o = h1p - KSIZE + 1               # conv2 output height              = 12
    m2 = h2o // 2                       # conv2 rows per parity / pool2 H  = 6
    w2p = (w1p - KSIZE + 1) // 2        # pool2 W                          = 6
    nr1 = h1o // 4                      # conv1 rows per mod-4 class       = 8
    c1w = w1p * c1                      # pooled conv1 row width           = 96
    c2w = w2p * c2                      # pooled conv2 row width           = 96
    cdt = compute_dtype

    def kernel(x0_ref, x1_ref, x2_ref, x3_ref,
               a1_ref, b1_ref, a2_ref, b2_ref,
               wfc1_ref, bfc1_ref, wfc2_ref, bfc2_ref, wfc3_ref, bfc3_ref,
               out_ref, feat_ref):
        # Padded conv1 input for this sample, pre-split by (row mod 4):
        # xs[s][k, :] == padded input row 4*k + s, layout (row, col*Cin + ci).
        xs = (x0_ref[0], x1_ref[0], x2_ref[0], x3_ref[0])     # each (Hp/4, Wp*Cin) f32

        # ---- conv1 + bias + ReLU fused with 2x2 max-pool (parity decomposition)
        c1cls = []
        for r in range(4):                      # conv1 output rows == r (mod 4)
            acc = None
            for di in range(KSIZE):
                q = r + di
                lhs = xs[q % 4][q // 4:q // 4 + nr1, :].astype(cdt)
                t = jnp.dot(lhs, a1_ref[di], preferred_element_type=jnp.float32)
                acc = t if acc is None else acc + t
            acc = jnp.maximum(acc + b1_ref[...], 0.0)
            # max over output-column parity -> pooled columns (nr1, w1p*c1)
            c1cls.append(jnp.maximum(acc[:, :c1w], acc[:, LBLK:LBLK + c1w]))
        p1 = (jnp.maximum(c1cls[0], c1cls[1]),  # pool1 rows 0,2,4,...   (8, 96)
              jnp.maximum(c1cls[2], c1cls[3]))  # pool1 rows 1,3,5,...   (8, 96)

        # ---- conv2 + bias + ReLU fused with 2x2 max-pool -----------------------
        c2cls = []
        for pr in range(2):                     # conv2 output rows == pr (mod 2)
            acc = None
            for di in range(KSIZE):
                q = pr + di
                lhs = p1[q % 2][q // 2:q // 2 + m2, :].astype(cdt)
                t = jnp.dot(lhs, a2_ref[di], preferred_element_type=jnp.float32)
                acc = t if acc is None else acc + t
            acc = jnp.maximum(acc + b2_ref[...], 0.0)
            c2cls.append(jnp.maximum(acc[:, :c2w], acc[:, LBLK:LBLK + c2w]))
        p2 = jnp.maximum(c2cls[0], c2cls[1])    # pool2 output (6, 96)

        # ---- fc1 -> fc2 -> fc3 (all lane-padded to 128 columns) ---------------
        acc = None
        for hh in range(m2):
            t = jnp.dot(p2[hh:hh + 1, :].astype(cdt), wfc1_ref[hh],
                        preferred_element_type=jnp.float32)
            acc = t if acc is None else acc + t
        fc1 = jnp.maximum(acc + bfc1_ref[...], 0.0)                         # (1,128)
        feat = jnp.maximum(
            jnp.dot(fc1.astype(cdt), wfc2_ref[...],
                    preferred_element_type=jnp.float32) + bfc2_ref[...], 0.0)
        logits = jnp.maximum(
            jnp.dot(feat.astype(cdt), wfc3_ref[...],
                    preferred_element_type=jnp.float32) + bfc3_ref[...], 0.0)

        feat_ref[0] = feat
        out_ref[0] = logits

    return kernel


# ---------------------------------------------------------------------------
# Forward pass
# ---------------------------------------------------------------------------

def lenet5_forward(x_nchw, packed, if_feature=False,
                   num_classes=10, num_features=84):
    n, cin, height, width = x_nchw.shape
    # Lenet5's Linear1 (16*6*6 inputs) pins the spatial size to 32x32.
    assert height == 32 and width == 32, (height, width)
    c1, c2 = 6, 16

    hp = height + 4                       # zero-padded conv1 input height
    wpc = (width + 4) * cin               # padded row length (W*C lanes)
    compute_dtype = packed["a1"].dtype

    # Tiny XLA glue (O(input bytes), once per forward): NCHW -> NHWC, zero-pad
    # for conv1's padding=2, flatten (W, C) into lanes, split rows by (row mod 4)
    # so the fused kernel only ever does contiguous slices.
    x_nhwc = jnp.transpose(x_nchw, (0, 2, 3, 1)).astype(jnp.float32)
    x_pad = jnp.pad(x_nhwc, ((0, 0), (2, 2), (2, 2), (0, 0)))
    x_rows = x_pad.reshape(n, hp, wpc)
    x_split = [x_rows[:, r::4, :] for r in range(4)]          # each (n, hp//4, wpc)

    kernel = _make_kernel(c1, c2, height, width, compute_dtype)

    def _full(a):
        zeros = (0,) * a.ndim
        return pl.BlockSpec(a.shape, lambda i, _z=zeros: _z)

    x_spec = pl.BlockSpec((1, hp // 4, wpc), lambda i: (i, 0, 0))
    out_spec = pl.BlockSpec((1, 1, LBLK), lambda i: (i, 0, 0))

    weights = [packed["a1"], packed["b1"], packed["a2"], packed["b2"],
               packed["wfc1"], packed["bfc1"], packed["wfc2"], packed["bfc2"],
               packed["wfc3"], packed["bfc3"]]

    logits_p, feat_p = pl.pallas_call(
        kernel,
        out_shape=(jax.ShapeDtypeStruct((n, 1, LBLK), jnp.float32),
                   jax.ShapeDtypeStruct((n, 1, LBLK), jnp.float32)),
        grid=(n,),
        in_specs=[x_spec] * 4 + [_full(w) for w in weights],
        out_specs=(out_spec, out_spec),
        compiler_params=pltpu.CompilerParams(
            dimension_semantics=("parallel",),          # batch over megacore TCs
            vmem_limit_bytes=32 * 1024 * 1024),
    )(*x_split, *weights)

    logits = logits_p[:, 0, :num_classes]
    feature = feat_p[:, 0, :num_features]
    if if_feature:
        return logits, feature
    return logits


# ---------------------------------------------------------------------------
# Pure-XLA f32 reference (for a sanity check) and parameter init
# ---------------------------------------------------------------------------

def lenet5_reference(x_nchw, params):
    dn = ("NCHW", "OIHW", "NCHW")
    y = lax.conv_general_dilated(x_nchw, params["conv1_w"], (1, 1),
                                 ((2, 2), (2, 2)), dimension_numbers=dn)
    y = jax.nn.relu(y + params["conv1_b"][None, :, None, None])
    y = lax.reduce_window(y, -jnp.inf, lax.max, (1, 1, 2, 2), (1, 1, 2, 2), "VALID")
    y = lax.conv_general_dilated(y, params["conv2_w"], (1, 1),
                                 ((0, 0), (0, 0)), dimension_numbers=dn)
    y = jax.nn.relu(y + params["conv2_b"][None, :, None, None])
    y = lax.reduce_window(y, -jnp.inf, lax.max, (1, 1, 2, 2), (1, 1, 2, 2), "VALID")
    y = y.reshape(y.shape[0], -1)
    y = jax.nn.relu(y @ params["fc1_w"].T + params["fc1_b"])
    feat = jax.nn.relu(y @ params["fc2_w"].T + params["fc2_b"])
    out = jax.nn.relu(feat @ params["fc3_w"].T + params["fc3_b"])
    return out, feat


def init_params(key, input_channels):
    ks = jax.random.split(key, 10)
    f32 = jnp.float32
    return {
        "conv1_w": 0.05 * jax.random.normal(ks[0], (6, input_channels, 5, 5), f32),
        "conv1_b": 0.05 * jax.random.normal(ks[1], (6,), f32),
        "conv2_w": 0.05 * jax.random.normal(ks[2], (16, 6, 5, 5), f32),
        "conv2_b": 0.05 * jax.random.normal(ks[3], (16,), f32),
        "fc1_w": 0.05 * jax.random.normal(ks[4], (120, 16 * 6 * 6), f32),
        "fc1_b": 0.05 * jax.random.normal(ks[5], (120,), f32),
        "fc2_w": 0.05 * jax.random.normal(ks[6], (84, 120), f32),
        "fc2_b": 0.05 * jax.random.normal(ks[7], (84,), f32),
        "fc3_w": 0.05 * jax.random.normal(ks[8], (10, 84), f32),
        "fc3_b": 0.05 * jax.random.normal(ks[9], (10,), f32),
    }


if __name__ == "__main__":
    key = jax.random.PRNGKey(0)
    k_params, k_x = jax.random.split(key)

    # Spatial size must be 32x32 so Linear1's 16*6*6 input dim matches.
    batch, input_channels = 2, 3
    params = init_params(k_params, input_channels)
    x = jax.random.normal(k_x, (batch, input_channels, 32, 32), jnp.float32)

    packed = prepack_params(params)                 # one-time weight repack
    fwd = jax.jit(lambda xx: lenet5_forward(xx, packed, if_feature=True))

    out, feature = fwd(x)
    out = jax.block_until_ready(out)
    feature = jax.block_until_ready(feature)

    assert out.shape == (batch, 10), out.shape
    assert feature.shape == (batch, 84), feature.shape

    # Sanity check vs. pure-XLA f32 reference (kernel matmuls run in bf16).
    ref_out, ref_feat = lenet5_reference(x, params)
    err = max(float(jnp.max(jnp.abs(out - ref_out))),
              float(jnp.max(jnp.abs(feature - ref_feat))))
    assert err < 5e-2, err

    print("KERNEL_OK")
</pallas_src>

<mosaic_0001>
module attributes {stable_mosaic.version = 11 : i64} {
  func.func @kernel(%arg0: i32, %arg1: memref<1x9x108xf32, #tpu.memory_space<vmem>>, %arg2: memref<1x9x108xf32, #tpu.memory_space<vmem>>, %arg3: memref<1x9x108xf32, #tpu.memory_space<vmem>>, %arg4: memref<1x9x108xf32, #tpu.memory_space<vmem>>, %arg5: memref<5x108x256xbf16, #tpu.memory_space<vmem>>, %arg6: memref<1x256xf32, #tpu.memory_space<vmem>>, %arg7: memref<5x96x256xbf16, #tpu.memory_space<vmem>>, %arg8: memref<1x256xf32, #tpu.memory_space<vmem>>, %arg9: memref<6x96x128xbf16, #tpu.memory_space<vmem>>, %arg10: memref<1x128xf32, #tpu.memory_space<vmem>>, %arg11: memref<128x128xbf16, #tpu.memory_space<vmem>>, %arg12: memref<1x128xf32, #tpu.memory_space<vmem>>, %arg13: memref<128x128xbf16, #tpu.memory_space<vmem>>, %arg14: memref<1x128xf32, #tpu.memory_space<vmem>>, %arg15: memref<1x1x128xf32, #tpu.memory_space<vmem>>, %arg16: memref<1x1x128xf32, #tpu.memory_space<vmem>>) attributes {dimension_semantics = [#tpu.dimension_semantics<parallel>], iteration_bounds = array<i64: 2>, scalar_prefetch = 0 : i64, scratch_operands = 0 : i64, tpu.core_type = #tpu.core_type<tc>, window_params = [{transform_indices = @transform_0, window_bounds = array<i64: 1, 9, 108>}, {transform_indices = @transform_1, window_bounds = array<i64: 1, 9, 108>}, {transform_indices = @transform_2, window_bounds = array<i64: 1, 9, 108>}, {transform_indices = @transform_3, window_bounds = array<i64: 1, 9, 108>}, {pipeline_mode = #tpu.pipeline_mode<synchronous>, transform_indices = @transform_4, window_bounds = array<i64: 5, 108, 256>}, {pipeline_mode = #tpu.pipeline_mode<synchronous>, transform_indices = @transform_5, window_bounds = array<i64: 1, 256>}, {pipeline_mode = #tpu.pipeline_mode<synchronous>, transform_indices = @transform_6, window_bounds = array<i64: 5, 96, 256>}, {pipeline_mode = #tpu.pipeline_mode<synchronous>, transform_indices = @transform_7, window_bounds = array<i64: 1, 256>}, {pipeline_mode = #tpu.pipeline_mode<synchronous>, transform_indices = @transform_8, window_bounds = array<i64: 6, 96, 128>}, {pipeline_mode = #tpu.pipeline_mode<synchronous>, transform_indices = @transform_9, window_bounds = array<i64: 1, 128>}, {pipeline_mode = #tpu.pipeline_mode<synchronous>, transform_indices = @transform_10, window_bounds = array<i64: 128, 128>}, {pipeline_mode = #tpu.pipeline_mode<synchronous>, transform_indices = @transform_11, window_bounds = array<i64: 1, 128>}, {pipeline_mode = #tpu.pipeline_mode<synchronous>, transform_indices = @transform_12, window_bounds = array<i64: 128, 128>}, {pipeline_mode = #tpu.pipeline_mode<synchronous>, transform_indices = @transform_13, window_bounds = array<i64: 1, 128>}, {transform_indices = @transform_14, window_bounds = array<i64: 1, 1, 128>}, {transform_indices = @transform_15, window_bounds = array<i64: 1, 1, 128>}]} {
    %c0 = arith.constant 0 : index
    %c0_0 = arith.constant 0 : index
    %c0_1 = arith.constant 0 : index
    %0 = vector.load %arg1[%c0, %c0_0, %c0_1] : memref<1x9x108xf32, #tpu.memory_space<vmem>>, vector<1x9x108xf32>
    %1 = vector.shape_cast %0 : vector<1x9x108xf32> to vector<9x108xf32>
    %c0_2 = arith.constant 0 : index
    %c0_3 = arith.constant 0 : index
    %c0_4 = arith.constant 0 : index
    %2 = vector.load %arg2[%c0_2, %c0_3, %c0_4] : memref<1x9x108xf32, #tpu.memory_space<vmem>>, vector<1x9x108xf32>
    %3 = vector.shape_cast %2 : vector<1x9x108xf32> to vector<9x108xf32>
    %c0_5 = arith.constant 0 : index
    %c0_6 = arith.constant 0 : index
    %c0_7 = arith.constant 0 : index
    %4 = vector.load %arg3[%c0_5, %c0_6, %c0_7] : memref<1x9x108xf32, #tpu.memory_space<vmem>>, vector<1x9x108xf32>
    %5 = vector.shape_cast %4 : vector<1x9x108xf32> to vector<9x108xf32>
    %c0_8 = arith.constant 0 : index
    %c0_9 = arith.constant 0 : index
    %c0_10 = arith.constant 0 : index
    %6 = vector.load %arg4[%c0_8, %c0_9, %c0_10] : memref<1x9x108xf32, #tpu.memory_space<vmem>>, vector<1x9x108xf32>
    %7 = vector.shape_cast %6 : vector<1x9x108xf32> to vector<9x108xf32>
    %8 = vector.extract_strided_slice %1 {offsets = [0, 0], sizes = [8, 108], strides = [1, 1]} : vector<9x108xf32> to vector<8x108xf32>
    %9 = arith.truncf %8 : vector<8x108xf32> to vector<8x108xbf16>
    %c0_11 = arith.constant 0 : index
    %c0_12 = arith.constant 0 : index
    %c0_13 = arith.constant 0 : index
    %10 = vector.load %arg5[%c0_11, %c0_12, %c0_13] : memref<5x108x256xbf16, #tpu.memory_space<vmem>>, vector<1x108x256xbf16>
    %11 = vector.shape_cast %10 : vector<1x108x256xbf16> to vector<108x256xbf16>
    %cst = arith.constant dense<0.000000e+00> : vector<8x256xf32>
    %12 = tpu.matmul %9, %11, %cst {dimension_numbers = #tpu.dot_dimension_numbers<[1], [0], [0], [1], [0, 0, 1, 1], [], []>} : vector<8x108xbf16>, vector<108x256xbf16>, vector<8x256xf32> -> vector<8x256xf32>
    %13 = vector.extract_strided_slice %3 {offsets = [0, 0], sizes = [8, 108], strides = [1, 1]} : vector<9x108xf32> to vector<8x108xf32>
    %14 = arith.truncf %13 : vector<8x108xf32> to vector<8x108xbf16>
    %c1 = arith.constant 1 : index
    %c0_14 = arith.constant 0 : index
    %c0_15 = arith.constant 0 : index
    %15 = vector.load %arg5[%c1, %c0_14, %c0_15] : memref<5x108x256xbf16, #tpu.memory_space<vmem>>, vector<1x108x256xbf16>
    %16 = vector.shape_cast %15 : vector<1x108x256xbf16> to vector<108x256xbf16>
    %cst_16 = arith.constant dense<0.000000e+00> : vector<8x256xf32>
    %17 = tpu.matmul %14, %16, %cst_16 {dimension_numbers = #tpu.dot_dimension_numbers<[1], [0], [0], [1], [0, 0, 1, 1], [], []>} : vector<8x108xbf16>, vector<108x256xbf16>, vector<8x256xf32> -> vector<8x256xf32>
    %18 = arith.addf %12, %17 : vector<8x256xf32>
    %19 = vector.extract_strided_slice %5 {offsets = [0, 0], sizes = [8, 108], strides = [1, 1]} : vector<9x108xf32> to vector<8x108xf32>
    %20 = arith.truncf %19 : vector<8x108xf32> to vector<8x108xbf16>
    %c2 = arith.constant 2 : index
    %c0_17 = arith.constant 0 : index
    %c0_18 = arith.constant 0 : index
    %21 = vector.load %arg5[%c2, %c0_17, %c0_18] : memref<5x108x256xbf16, #tpu.memory_space<vmem>>, vector<1x108x256xbf16>
    %22 = vector.shape_cast %21 : vector<1x108x256xbf16> to vector<108x256xbf16>
    %cst_19 = arith.constant dense<0.000000e+00> : vector<8x256xf32>
    %23 = tpu.matmul %20, %22, %cst_19 {dimension_numbers = #tpu.dot_dimension_numbers<[1], [0], [0], [1], [0, 0, 1, 1], [], []>} : vector<8x108xbf16>, vector<108x256xbf16>, vector<8x256xf32> -> vector<8x256xf32>
    %24 = arith.addf %18, %23 : vector<8x256xf32>
    %25 = vector.extract_strided_slice %7 {offsets = [0, 0], sizes = [8, 108], strides = [1, 1]} : vector<9x108xf32> to vector<8x108xf32>
    %26 = arith.truncf %25 : vector<8x108xf32> to vector<8x108xbf16>
    %c3 = arith.constant 3 : index
    %c0_20 = arith.constant 0 : index
    %c0_21 = arith.constant 0 : index
    %27 = vector.load %arg5[%c3, %c0_20, %c0_21] : memref<5x108x256xbf16, #tpu.memory_space<vmem>>, vector<1x108x256xbf16>
    %28 = vector.shape_cast %27 : vector<1x108x256xbf16> to vector<108x256xbf16>
    %cst_22 = arith.constant dense<0.000000e+00> : vector<8x256xf32>
    %29 = tpu.matmul %26, %28, %cst_22 {dimension_numbers = #tpu.dot_dimension_numbers<[1], [0], [0], [1], [0, 0, 1, 1], [], []>} : vector<8x108xbf16>, vector<108x256xbf16>, vector<8x256xf32> -> vector<8x256xf32>
    %30 = arith.addf %24, %29 : vector<8x256xf32>
    %31 = vector.extract_strided_slice %1 {offsets = [1, 0], sizes = [8, 108], strides = [1, 1]} : vector<9x108xf32> to vector<8x108xf32>
    %32 = arith.truncf %31 : vector<8x108xf32> to vector<8x108xbf16>
    %c4 = arith.constant 4 : index
    %c0_23 = arith.constant 0 : index
    %c0_24 = arith.constant 0 : index
    %33 = vector.load %arg5[%c4, %c0_23, %c0_24] : memref<5x108x256xbf16, #tpu.memory_space<vmem>>, vector<1x108x256xbf16>
    %34 = vector.shape_cast %33 : vector<1x108x256xbf16> to vector<108x256xbf16>
    %cst_25 = arith.constant dense<0.000000e+00> : vector<8x256xf32>
    %35 = tpu.matmul %32, %34, %cst_25 {dimension_numbers = #tpu.dot_dimension_numbers<[1], [0], [0], [1], [0, 0, 1, 1], [], []>} : vector<8x108xbf16>, vector<108x256xbf16>, vector<8x256xf32> -> vector<8x256xf32>
    %36 = arith.addf %30, %35 : vector<8x256xf32>
    %c0_26 = arith.constant 0 : index
    %c0_27 = arith.constant 0 : index
    %37 = vector.load %arg6[%c0_26, %c0_27] : memref<1x256xf32, #tpu.memory_space<vmem>>, vector<1x256xf32>
    %38 = vector.broadcast %37 : vector<1x256xf32> to vector<8x256xf32>
    %39 = arith.addf %36, %38 : vector<8x256xf32>
    %cst_28 = arith.constant 0.000000e+00 : f32
    %40 = vector.broadcast %cst_28 : f32 to vector<8x256xf32>
    %41 = arith.maximumf %39, %40 : vector<8x256xf32>
    %42 = vector.extract_strided_slice %41 {offsets = [0, 0], sizes = [8, 96], strides = [1, 1]} : vector<8x256xf32> to vector<8x96xf32>
    %43 = vector.extract_strided_slice %41 {offsets = [0, 128], sizes = [8, 96], strides = [1, 1]} : vector<8x256xf32> to vector<8x96xf32>
    %44 = arith.maximumf %42, %43 : vector<8x96xf32>
    %45 = vector.extract_strided_slice %3 {offsets = [0, 0], sizes = [8, 108], strides = [1, 1]} : vector<9x108xf32> to vector<8x108xf32>
    %46 = arith.truncf %45 : vector<8x108xf32> to vector<8x108xbf16>
    %c0_29 = arith.constant 0 : index
    %c0_30 = arith.constant 0 : index
    %c0_31 = arith.constant 0 : index
    %47 = vector.load %arg5[%c0_29, %c0_30, %c0_31] : memref<5x108x256xbf16, #tpu.memory_space<vmem>>, vector<1x108x256xbf16>
    %48 = vector.shape_cast %47 : vector<1x108x256xbf16> to vector<108x256xbf16>
    %cst_32 = arith.constant dense<0.000000e+00> : vector<8x256xf32>
    %49 = tpu.matmul %46, %48, %cst_32 {dimension_numbers = #tpu.dot_dimension_numbers<[1], [0], [0], [1], [0, 0, 1, 1], [], []>} : vector<8x108xbf16>, vector<108x256xbf16>, vector<8x256xf32> -> vector<8x256xf32>
    %50 = vector.extract_strided_slice %5 {offsets = [0, 0], sizes = [8, 108], strides = [1, 1]} : vector<9x108xf32> to vector<8x108xf32>
    %51 = arith.truncf %50 : vector<8x108xf32> to vector<8x108xbf16>
    %c1_33 = arith.constant 1 : index
    %c0_34 = arith.constant 0 : index
    %c0_35 = arith.constant 0 : index
    %52 = vector.load %arg5[%c1_33, %c0_34, %c0_35] : memref<5x108x256xbf16, #tpu.memory_space<vmem>>, vector<1x108x256xbf16>
    %53 = vector.shape_cast %52 : vector<1x108x256xbf16> to vector<108x256xbf16>
    %cst_36 = arith.constant dense<0.000000e+00> : vector<8x256xf32>
    %54 = tpu.matmul %51, %53, %cst_36 {dimension_numbers = #tpu.dot_dimension_numbers<[1], [0], [0], [1], [0, 0, 1, 1], [], []>} : vector<8x108xbf16>, vector<108x256xbf16>, vector<8x256xf32> -> vector<8x256xf32>
    %55 = arith.addf %49, %54 : vector<8x256xf32>
    %56 = vector.extract_strided_slice %7 {offsets = [0, 0], sizes = [8, 108], strides = [1, 1]} : vector<9x108xf32> to vector<8x108xf32>
    %57 = arith.truncf %56 : vector<8x108xf32> to vector<8x108xbf16>
    %c2_37 = arith.constant 2 : index
    %c0_38 = arith.constant 0 : index
    %c0_39 = arith.constant 0 : index
    %58 = vector.load %arg5[%c2_37, %c0_38, %c0_39] : memref<5x108x256xbf16, #tpu.memory_space<vmem>>, vector<1x108x256xbf16>
    %59 = vector.shape_cast %58 : vector<1x108x256xbf16> to vector<108x256xbf16>
    %cst_40 = arith.constant dense<0.000000e+00> : vector<8x256xf32>
    %60 = tpu.matmul %57, %59, %cst_40 {dimension_numbers = #tpu.dot_dimension_numbers<[1], [0], [0], [1], [0, 0, 1, 1], [], []>} : vector<8x108xbf16>, vector<108x256xbf16>, vector<8x256xf32> -> vector<8x256xf32>
    %61 = arith.addf %55, %60 : vector<8x256xf32>
    %62 = vector.extract_strided_slice %1 {offsets = [1, 0], sizes = [8, 108], strides = [1, 1]} : vector<9x108xf32> to vector<8x108xf32>
    %63 = arith.truncf %62 : vector<8x108xf32> to vector<8x108xbf16>
    %c3_41 = arith.constant 3 : index
    %c0_42 = arith.constant 0 : index
    %c0_43 = arith.constant 0 : index
    %64 = vector.load %arg5[%c3_41, %c0_42, %c0_43] : memref<5x108x256xbf16, #tpu.memory_space<vmem>>, vector<1x108x256xbf16>
    %65 = vector.shape_cast %64 : vector<1x108x256xbf16> to vector<108x256xbf16>
    %cst_44 = arith.constant dense<0.000000e+00> : vector<8x256xf32>
    %66 = tpu.matmul %63, %65, %cst_44 {dimension_numbers = #tpu.dot_dimension_numbers<[1], [0], [0], [1], [0, 0, 1, 1], [], []>} : vector<8x108xbf16>, vector<108x256xbf16>, vector<8x256xf32> -> vector<8x256xf32>
    %67 = arith.addf %61, %66 : vector<8x256xf32>
    %68 = vector.extract_strided_slice %3 {offsets = [1, 0], sizes = [8, 108], strides = [1, 1]} : vector<9x108xf32> to vector<8x108xf32>
    %69 = arith.truncf %68 : vector<8x108xf32> to vector<8x108xbf16>
    %c4_45 = arith.constant 4 : index
    %c0_46 = arith.constant 0 : index
    %c0_47 = arith.constant 0 : index
    %70 = vector.load %arg5[%c4_45, %c0_46, %c0_47] : memref<5x108x256xbf16, #tpu.memory_space<vmem>>, vector<1x108x256xbf16>
    %71 = vector.shape_cast %70 : vector<1x108x256xbf16> to vector<108x256xbf16>
    %cst_48 = arith.constant dense<0.000000e+00> : vector<8x256xf32>
    %72 = tpu.matmul %69, %71, %cst_48 {dimension_numbers = #tpu.dot_dimension_numbers<[1], [0], [0], [1], [0, 0, 1, 1], [], []>} : vector<8x108xbf16>, vector<108x256xbf16>, vector<8x256xf32> -> vector<8x256xf32>
    %73 = arith.addf %67, %72 : vector<8x256xf32>
    %c0_49 = arith.constant 0 : index
    %c0_50 = arith.constant 0 : index
    %74 = vector.load %arg6[%c0_49, %c0_50] : memref<1x256xf32, #tpu.memory_space<vmem>>, vector<1x256xf32>
    %75 = vector.broadcast %74 : vector<1x256xf32> to vector<8x256xf32>
    %76 = arith.addf %73, %75 : vector<8x256xf32>
    %cst_51 = arith.constant 0.000000e+00 : f32
    %77 = vector.broadcast %cst_51 : f32 to vector<8x256xf32>
    %78 = arith.maximumf %76, %77 : vector<8x256xf32>
    %79 = vector.extract_strided_slice %78 {offsets = [0, 0], sizes = [8, 96], strides = [1, 1]} : vector<8x256xf32> to vector<8x96xf32>
    %80 = vector.extract_strided_slice %78 {offsets = [0, 128], sizes = [8, 96], strides = [1, 1]} : vector<8x256xf32> to vector<8x96xf32>
    %81 = arith.maximumf %79, %80 : vector<8x96xf32>
    %82 = vector.extract_strided_slice %5 {offsets = [0, 0], sizes = [8, 108], strides = [1, 1]} : vector<9x108xf32> to vector<8x108xf32>
    %83 = arith.truncf %82 : vector<8x108xf32> to vector<8x108xbf16>
    %c0_52 = arith.constant 0 : index
    %c0_53 = arith.constant 0 : index
    %c0_54 = arith.constant 0 : index
    %84 = vector.load %arg5[%c0_52, %c0_53, %c0_54] : memref<5x108x256xbf16, #tpu.memory_space<vmem>>, vector<1x108x256xbf16>
    %85 = vector.shape_cast %84 : vector<1x108x256xbf16> to vector<108x256xbf16>
    %cst_55 = arith.constant dense<0.000000e+00> : vector<8x256xf32>
    %86 = tpu.matmul %83, %85, %cst_55 {dimension_numbers = #tpu.dot_dimension_numbers<[1], [0], [0], [1], [0, 0, 1, 1], [], []>} : vector<8x108xbf16>, vector<108x256xbf16>, vector<8x256xf32> -> vector<8x256xf32>
    %87 = vector.extract_strided_slice %7 {offsets = [0, 0], sizes = [8, 108], strides = [1, 1]} : vector<9x108xf32> to vector<8x108xf32>
    %88 = arith.truncf %87 : vector<8x108xf32> to vector<8x108xbf16>
    %c1_56 = arith.constant 1 : index
    %c0_57 = arith.constant 0 : index
    %c0_58 = arith.constant 0 : index
    %89 = vector.load %arg5[%c1_56, %c0_57, %c0_58] : memref<5x108x256xbf16, #tpu.memory_space<vmem>>, vector<1x108x256xbf16>
    %90 = vector.shape_cast %89 : vector<1x108x256xbf16> to vector<108x256xbf16>
    %cst_59 = arith.constant dense<0.000000e+00> : vector<8x256xf32>
    %91 = tpu.matmul %88, %90, %cst_59 {dimension_numbers = #tpu.dot_dimension_numbers<[1], [0], [0], [1], [0, 0, 1, 1], [], []>} : vector<8x108xbf16>, vector<108x256xbf16>, vector<8x256xf32> -> vector<8x256xf32>
    %92 = arith.addf %86, %91 : vector<8x256xf32>
    %93 = vector.extract_strided_slice %1 {offsets = [1, 0], sizes = [8, 108], strides = [1, 1]} : vector<9x108xf32> to vector<8x108xf32>
    %94 = arith.truncf %93 : vector<8x108xf32> to vector<8x108xbf16>
    %c2_60 = arith.constant 2 : index
    %c0_61 = arith.constant 0 : index
    %c0_62 = arith.constant 0 : index
    %95 = vector.load %arg5[%c2_60, %c0_61, %c0_62] : memref<5x108x256xbf16, #tpu.memory_space<vmem>>, vector<1x108x256xbf16>
    %96 = vector.shape_cast %95 : vector<1x108x256xbf16> to vector<108x256xbf16>
    %cst_63 = arith.constant dense<0.000000e+00> : vector<8x256xf32>
    %97 = tpu.matmul %94, %96, %cst_63 {dimension_numbers = #tpu.dot_dimension_numbers<[1], [0], [0], [1], [0, 0, 1, 1], [], []>} : vector<8x108xbf16>, vector<108x256xbf16>, vector<8x256xf32> -> vector<8x256xf32>
    %98 = arith.addf %92, %97 : vector<8x256xf32>
    %99 = vector.extract_strided_slice %3 {offsets = [1, 0], sizes = [8, 108], strides = [1, 1]} : vector<9x108xf32> to vector<8x108xf32>
    %100 = arith.truncf %99 : vector<8x108xf32> to vector<8x108xbf16>
    %c3_64 = arith.constant 3 : index
    %c0_65 = arith.constant 0 : index
    %c0_66 = arith.constant 0 : index
    %101 = vector.load %arg5[%c3_64, %c0_65, %c0_66] : memref<5x108x256xbf16, #tpu.memory_space<vmem>>, vector<1x108x256xbf16>
    %102 = vector.shape_cast %101 : vector<1x108x256xbf16> to vector<108x256xbf16>
    %cst_67 = arith.constant dense<0.000000e+00> : vector<8x256xf32>
    %103 = tpu.matmul %100, %102, %cst_67 {dimension_numbers = #tpu.dot_dimension_numbers<[1], [0], [0], [1], [0, 0, 1, 1], [], []>} : vector<8x108xbf16>, vector<108x256xbf16>, vector<8x256xf32> -> vector<8x256xf32>
    %104 = arith.addf %98, %103 : vector<8x256xf32>
    %105 = vector.extract_strided_slice %5 {offsets = [1, 0], sizes = [8, 108], strides = [1, 1]} : vector<9x108xf32> to vector<8x108xf32>
    %106 = arith.truncf %105 : vector<8x108xf32> to vector<8x108xbf16>
    %c4_68 = arith.constant 4 : index
    %c0_69 = arith.constant 0 : index
    %c0_70 = arith.constant 0 : index
    %107 = vector.load %arg5[%c4_68, %c0_69, %c0_70] : memref<5x108x256xbf16, #tpu.memory_space<vmem>>, vector<1x108x256xbf16>
    %108 = vector.shape_cast %107 : vector<1x108x256xbf16> to vector<108x256xbf16>
    %cst_71 = arith.constant dense<0.000000e+00> : vector<8x256xf32>
    %109 = tpu.matmul %106, %108, %cst_71 {dimension_numbers = #tpu.dot_dimension_numbers<[1], [0], [0], [1], [0, 0, 1, 1], [], []>} : vector<8x108xbf16>, vector<108x256xbf16>, vector<8x256xf32> -> vector<8x256xf32>
    %110 = arith.addf %104, %109 : vector<8x256xf32>
    %c0_72 = arith.constant 0 : index
    %c0_73 = arith.constant 0 : index
    %111 = vector.load %arg6[%c0_72, %c0_73] : memref<1x256xf32, #tpu.memory_space<vmem>>, vector<1x256xf32>
    %112 = vector.broadcast %111 : vector<1x256xf32> to vector<8x256xf32>
    %113 = arith.addf %110, %112 : vector<8x256xf32>
    %cst_74 = arith.constant 0.000000e+00 : f32
    %114 = vector.broadcast %cst_74 : f32 to vector<8x256xf32>
    %115 = arith.maximumf %113, %114 : vector<8x256xf32>
    %116 = vector.extract_strided_slice %115 {offsets = [0, 0], sizes = [8, 96], strides = [1, 1]} : vector<8x256xf32> to vector<8x96xf32>
    %117 = vector.extract_strided_slice %115 {offsets = [0, 128], sizes = [8, 96], strides = [1, 1]} : vector<8x256xf32> to vector<8x96xf32>
    %118 = arith.maximumf %116, %117 : vector<8x96xf32>
    %119 = vector.extract_strided_slice %7 {offsets = [0, 0], sizes = [8, 108], strides = [1, 1]} : vector<9x108xf32> to vector<8x108xf32>
    %120 = arith.truncf %119 : vector<8x108xf32> to vector<8x108xbf16>
    %c0_75 = arith.constant 0 : index
    %c0_76 = arith.constant 0 : index
    %c0_77 = arith.constant 0 : index
    %121 = vector.load %arg5[%c0_75, %c0_76, %c0_77] : memref<5x108x256xbf16, #tpu.memory_space<vmem>>, vector<1x108x256xbf16>
    %122 = vector.shape_cast %121 : vector<1x108x256xbf16> to vector<108x256xbf16>
    %cst_78 = arith.constant dense<0.000000e+00> : vector<8x256xf32>
    %123 = tpu.matmul %120, %122, %cst_78 {dimension_numbers = #tpu.dot_dimension_numbers<[1], [0], [0], [1], [0, 0, 1, 1], [], []>} : vector<8x108xbf16>, vector<108x256xbf16>, vector<8x256xf32> -> vector<8x256xf32>
    %124 = vector.extract_strided_slice %1 {offsets = [1, 0], sizes = [8, 108], strides = [1, 1]} : vector<9x108xf32> to vector<8x108xf32>
    %125 = arith.truncf %124 : vector<8x108xf32> to vector<8x108xbf16>
    %c1_79 = arith.constant 1 : index
    %c0_80 = arith.constant 0 : index
    %c0_81 = arith.constant 0 : index
    %126 = vector.load %arg5[%c1_79, %c0_80, %c0_81] : memref<5x108x256xbf16, #tpu.memory_space<vmem>>, vector<1x108x256xbf16>
    %127 = vector.shape_cast %126 : vector<1x108x256xbf16> to vector<108x256xbf16>
    %cst_82 = arith.constant dense<0.000000e+00> : vector<8x256xf32>
    %128 = tpu.matmul %125, %127, %cst_82 {dimension_numbers = #tpu.dot_dimension_numbers<[1], [0], [0], [1], [0, 0, 1, 1], [], []>} : vector<8x108xbf16>, vector<108x256xbf16>, vector<8x256xf32> -> vector<8x256xf32>
    %129 = arith.addf %123, %128 : vector<8x256xf32>
    %130 = vector.extract_strided_slice %3 {offsets = [1, 0], sizes = [8, 108], strides = [1, 1]} : vector<9x108xf32> to vector<8x108xf32>
    %131 = arith.truncf %130 : vector<8x108xf32> to vector<8x108xbf16>
    %c2_83 = arith.constant 2 : index
    %c0_84 = arith.constant 0 : index
    %c0_85 = arith.constant 0 : index
    %132 = vector.load %arg5[%c2_83, %c0_84, %c0_85] : memref<5x108x256xbf16, #tpu.memory_space<vmem>>, vector<1x108x256xbf16>
    %133 = vector.shape_cast %132 : vector<1x108x256xbf16> to vector<108x256xbf16>
    %cst_86 = arith.constant dense<0.000000e+00> : vector<8x256xf32>
    %134 = tpu.matmul %131, %133, %cst_86 {dimension_numbers = #tpu.dot_dimension_numbers<[1], [0], [0], [1], [0, 0, 1, 1], [], []>} : vector<8x108xbf16>, vector<108x256xbf16>, vector<8x256xf32> -> vector<8x256xf32>
    %135 = arith.addf %129, %134 : vector<8x256xf32>
    %136 = vector.extract_strided_slice %5 {offsets = [1, 0], sizes = [8, 108], strides = [1, 1]} : vector<9x108xf32> to vector<8x108xf32>
    %137 = arith.truncf %136 : vector<8x108xf32> to vector<8x108xbf16>
    %c3_87 = arith.constant 3 : index
    %c0_88 = arith.constant 0 : index
    %c0_89 = arith.constant 0 : index
    %138 = vector.load %arg5[%c3_87, %c0_88, %c0_89] : memref<5x108x256xbf16, #tpu.memory_space<vmem>>, vector<1x108x256xbf16>
    %139 = vector.shape_cast %138 : vector<1x108x256xbf16> to vector<108x256xbf16>
    %cst_90 = arith.constant dense<0.000000e+00> : vector<8x256xf32>
    %140 = tpu.matmul %137, %139, %cst_90 {dimension_numbers = #tpu.dot_dimension_numbers<[1], [0], [0], [1], [0, 0, 1, 1], [], []>} : vector<8x108xbf16>, vector<108x256xbf16>, vector<8x256xf32> -> vector<8x256xf32>
    %141 = arith.addf %135, %140 : vector<8x256xf32>
    %142 = vector.extract_strided_slice %7 {offsets = [1, 0], sizes = [8, 108], strides = [1, 1]} : vector<9x108xf32> to vector<8x108xf32>
    %143 = arith.truncf %142 : vector<8x108xf32> to vector<8x108xbf16>
    %c4_91 = arith.constant 4 : index
    %c0_92 = arith.constant 0 : index
    %c0_93 = arith.constant 0 : index
    %144 = vector.load %arg5[%c4_91, %c0_92, %c0_93] : memref<5x108x256xbf16, #tpu.memory_space<vmem>>, vector<1x108x256xbf16>
    %145 = vector.shape_cast %144 : vector<1x108x256xbf16> to vector<108x256xbf16>
    %cst_94 = arith.constant dense<0.000000e+00> : vector<8x256xf32>
    %146 = tpu.matmul %143, %145, %cst_94 {dimension_numbers = #tpu.dot_dimension_numbers<[1], [0], [0], [1], [0, 0, 1, 1], [], []>} : vector<8x108xbf16>, vector<108x256xbf16>, vector<8x256xf32> -> vector<8x256xf32>
    %147 = arith.addf %141, %146 : vector<8x256xf32>
    %c0_95 = arith.constant 0 : index
    %c0_96 = arith.constant 0 : index
    %148 = vector.load %arg6[%c0_95, %c0_96] : memref<1x256xf32, #tpu.memory_space<vmem>>, vector<1x256xf32>
    %149 = vector.broadcast %148 : vector<1x256xf32> to vector<8x256xf32>
    %150 = arith.addf %147, %149 : vector<8x256xf32>
    %cst_97 = arith.constant 0.000000e+00 : f32
    %151 = vector.broadcast %cst_97 : f32 to vector<8x256xf32>
    %152 = arith.maximumf %150, %151 : vector<8x256xf32>
    %153 = vector.extract_strided_slice %152 {offsets = [0, 0], sizes = [8, 96], strides = [1, 1]} : vector<8x256xf32> to vector<8x96xf32>
    %154 = vector.extract_strided_slice %152 {offsets = [0, 128], sizes = [8, 96], strides = [1, 1]} : vector<8x256xf32> to vector<8x96xf32>
    %155 = arith.maximumf %153, %154 : vector<8x96xf32>
    %156 = arith.maximumf %44, %81 : vector<8x96xf32>
    %157 = arith.maximumf %118, %155 : vector<8x96xf32>
    %158 = vector.extract_strided_slice %156 {offsets = [0, 0], sizes = [6, 96], strides = [1, 1]} : vector<8x96xf32> to vector<6x96xf32>
    %159 = arith.truncf %158 : vector<6x96xf32> to vector<6x96xbf16>
    %c0_98 = arith.constant 0 : index
    %c0_99 = arith.constant 0 : index
    %c0_100 = arith.constant 0 : index
    %160 = vector.load %arg7[%c0_98, %c0_99, %c0_100] : memref<5x96x256xbf16, #tpu.memory_space<vmem>>, vector<1x96x256xbf16>
    %161 = vector.shape_cast %160 : vector<1x96x256xbf16> to vector<96x256xbf16>
    %cst_101 = arith.constant dense<0.000000e+00> : vector<6x256xf32>
    %162 = tpu.matmul %159, %161, %cst_101 {dimension_numbers = #tpu.dot_dimension_numbers<[1], [0], [0], [1], [0, 0, 1, 1], [], []>} : vector<6x96xbf16>, vector<96x256xbf16>, vector<6x256xf32> -> vector<6x256xf32>
    %163 = vector.extract_strided_slice %157 {offsets = [0, 0], sizes = [6, 96], strides = [1, 1]} : vector<8x96xf32> to vector<6x96xf32>
    %164 = arith.truncf %163 : vector<6x96xf32> to vector<6x96xbf16>
    %c1_102 = arith.constant 1 : index
    %c0_103 = arith.constant 0 : index
    %c0_104 = arith.constant 0 : index
    %165 = vector.load %arg7[%c1_102, %c0_103, %c0_104] : memref<5x96x256xbf16, #tpu.memory_space<vmem>>, vector<1x96x256xbf16>
    %166 = vector.shape_cast %165 : vector<1x96x256xbf16> to vector<96x256xbf16>
    %cst_105 = arith.constant dense<0.000000e+00> : vector<6x256xf32>
    %167 = tpu.matmul %164, %166, %cst_105 {dimension_numbers = #tpu.dot_dimension_numbers<[1], [0], [0], [1], [0, 0, 1, 1], [], []>} : vector<6x96xbf16>, vector<96x256xbf16>, vector<6x256xf32> -> vector<6x256xf32>
    %168 = arith.addf %162, %167 : vector<6x256xf32>
    %169 = vector.extract_strided_slice %156 {offsets = [1, 0], sizes = [6, 96], strides = [1, 1]} : vector<8x96xf32> to vector<6x96xf32>
    %170 = arith.truncf %169 : vector<6x96xf32> to vector<6x96xbf16>
    %c2_106 = arith.constant 2 : index
    %c0_107 = arith.constant 0 : index
    %c0_108 = arith.constant 0 : index
    %171 = vector.load %arg7[%c2_106, %c0_107, %c0_108] : memref<5x96x256xbf16, #tpu.memory_space<vmem>>, vector<1x96x256xbf16>
    %172 = vector.shape_cast %171 : vector<1x96x256xbf16> to vector<96x256xbf16>
    %cst_109 = arith.constant dense<0.000000e+00> : vector<6x256xf32>
    %173 = tpu.matmul %170, %172, %cst_109 {dimension_numbers = #tpu.dot_dimension_numbers<[1], [0], [0], [1], [0, 0, 1, 1], [], []>} : vector<6x96xbf16>, vector<96x256xbf16>, vector<6x256xf32> -> vector<6x256xf32>
    %174 = arith.addf %168, %173 : vector<6x256xf32>
    %175 = vector.extract_strided_slice %157 {offsets = [1, 0], sizes = [6, 96], strides = [1, 1]} : vector<8x96xf32> to vector<6x96xf32>
    %176 = arith.truncf %175 : vector<6x96xf32> to vector<6x96xbf16>
    %c3_110 = arith.constant 3 : index
    %c0_111 = arith.constant 0 : index
    %c0_112 = arith.constant 0 : index
    %177 = vector.load %arg7[%c3_110, %c0_111, %c0_112] : memref<5x96x256xbf16, #tpu.memory_space<vmem>>, vector<1x96x256xbf16>
    %178 = vector.shape_cast %177 : vector<1x96x256xbf16> to vector<96x256xbf16>
    %cst_113 = arith.constant dense<0.000000e+00> : vector<6x256xf32>
    %179 = tpu.matmul %176, %178, %cst_113 {dimension_numbers = #tpu.dot_dimension_numbers<[1], [0], [0], [1], [0, 0, 1, 1], [], []>} : vector<6x96xbf16>, vector<96x256xbf16>, vector<6x256xf32> -> vector<6x256xf32>
    %180 = arith.addf %174, %179 : vector<6x256xf32>
    %181 = vector.extract_strided_slice %156 {offsets = [2, 0], sizes = [6, 96], strides = [1, 1]} : vector<8x96xf32> to vector<6x96xf32>
    %182 = arith.truncf %181 : vector<6x96xf32> to vector<6x96xbf16>
    %c4_114 = arith.constant 4 : index
    %c0_115 = arith.constant 0 : index
    %c0_116 = arith.constant 0 : index
    %183 = vector.load %arg7[%c4_114, %c0_115, %c0_116] : memref<5x96x256xbf16, #tpu.memory_space<vmem>>, vector<1x96x256xbf16>
    %184 = vector.shape_cast %183 : vector<1x96x256xbf16> to vector<96x256xbf16>
    %cst_117 = arith.constant dense<0.000000e+00> : vector<6x256xf32>
    %185 = tpu.matmul %182, %184, %cst_117 {dimension_numbers = #tpu.dot_dimension_numbers<[1], [0], [0], [1], [0, 0, 1, 1], [], []>} : vector<6x96xbf16>, vector<96x256xbf16>, vector<6x256xf32> -> vector<6x256xf32>
    %186 = arith.addf %180, %185 : vector<6x256xf32>
    %c0_118 = arith.constant 0 : index
    %c0_119 = arith.constant 0 : index
    %187 = vector.load %arg8[%c0_118, %c0_119] : memref<1x256xf32, #tpu.memory_space<vmem>>, vector<1x256xf32>
    %188 = vector.broadcast %187 : vector<1x256xf32> to vector<6x256xf32>
    %189 = arith.addf %186, %188 : vector<6x256xf32>
    %cst_120 = arith.constant 0.000000e+00 : f32
    %190 = vector.broadcast %cst_120 : f32 to vector<6x256xf32>
    %191 = arith.maximumf %189, %190 : vector<6x256xf32>
    %192 = vector.extract_strided_slice %191 {offsets = [0, 0], sizes = [6, 96], strides = [1, 1]} : vector<6x256xf32> to vector<6x96xf32>
    %193 = vector.extract_strided_slice %191 {offsets = [0, 128], sizes = [6, 96], strides = [1, 1]} : vector<6x256xf32> to vector<6x96xf32>
    %194 = arith.maximumf %192, %193 : vector<6x96xf32>
    %195 = vector.extract_strided_slice %157 {offsets = [0, 0], sizes = [6, 96], strides = [1, 1]} : vector<8x96xf32> to vector<6x96xf32>
    %196 = arith.truncf %195 : vector<6x96xf32> to vector<6x96xbf16>
    %c0_121 = arith.constant 0 : index
    %c0_122 = arith.constant 0 : index
    %c0_123 = arith.constant 0 : index
    %197 = vector.load %arg7[%c0_121, %c0_122, %c0_123] : memref<5x96x256xbf16, #tpu.memory_space<vmem>>, vector<1x96x256xbf16>
    %198 = vector.shape_cast %197 : vector<1x96x256xbf16> to vector<96x256xbf16>
    %cst_124 = arith.constant dense<0.000000e+00> : vector<6x256xf32>
    %199 = tpu.matmul %196, %198, %cst_124 {dimension_numbers = #tpu.dot_dimension_numbers<[1], [0], [0], [1], [0, 0, 1, 1], [], []>} : vector<6x96xbf16>, vector<96x256xbf16>, vector<6x256xf32> -> vector<6x256xf32>
    %200 = vector.extract_strided_slice %156 {offsets = [1, 0], sizes = [6, 96], strides = [1, 1]} : vector<8x96xf32> to vector<6x96xf32>
    %201 = arith.truncf %200 : vector<6x96xf32> to vector<6x96xbf16>
    %c1_125 = arith.constant 1 : index
    %c0_126 = arith.constant 0 : index
    %c0_127 = arith.constant 0 : index
    %202 = vector.load %arg7[%c1_125, %c0_126, %c0_127] : memref<5x96x256xbf16, #tpu.memory_space<vmem>>, vector<1x96x256xbf16>
    %203 = vector.shape_cast %202 : vector<1x96x256xbf16> to vector<96x256xbf16>
    %cst_128 = arith.constant dense<0.000000e+00> : vector<6x256xf32>
    %204 = tpu.matmul %201, %203, %cst_128 {dimension_numbers = #tpu.dot_dimension_numbers<[1], [0], [0], [1], [0, 0, 1, 1], [], []>} : vector<6x96xbf16>, vector<96x256xbf16>, vector<6x256xf32> -> vector<6x256xf32>
    %205 = arith.addf %199, %204 : vector<6x256xf32>
    %206 = vector.extract_strided_slice %157 {offsets = [1, 0], sizes = [6, 96], strides = [1, 1]} : vector<8x96xf32> to vector<6x96xf32>
    %207 = arith.truncf %206 : vector<6x96xf32> to vector<6x96xbf16>
    %c2_129 = arith.constant 2 : index
    %c0_130 = arith.constant 0 : index
    %c0_131 = arith.constant 0 : index
    %208 = vector.load %arg7[%c2_129, %c0_130, %c0_131] : memref<5x96x256xbf16, #tpu.memory_space<vmem>>, vector<1x96x256xbf16>
    %209 = vector.shape_cast %208 : vector<1x96x256xbf16> to vector<96x256xbf16>
    %cst_132 = arith.constant dense<0.000000e+00> : vector<6x256xf32>
    %210 = tpu.matmul %207, %209, %cst_132 {dimension_numbers = #tpu.dot_dimension_numbers<[1], [0], [0], [1], [0, 0, 1, 1], [], []>} : vector<6x96xbf16>, vector<96x256xbf16>, vector<6x256xf32> -> vector<6x256xf32>
    %211 = arith.addf %205, %210 : vector<6x256xf32>
    %212 = vector.extract_strided_slice %156 {offsets = [2, 0], sizes = [6, 96], strides = [1, 1]} : vector<8x96xf32> to vector<6x96xf32>
    %213 = arith.truncf %212 : vector<6x96xf32> to vector<6x96xbf16>
    %c3_133 = arith.constant 3 : index
    %c0_134 = arith.constant 0 : index
    %c0_135 = arith.constant 0 : index
    %214 = vector.load %arg7[%c3_133, %c0_134, %c0_135] : memref<5x96x256xbf16, #tpu.memory_space<vmem>>, vector<1x96x256xbf16>
    %215 = vector.shape_cast %214 : vector<1x96x256xbf16> to vector<96x256xbf16>
    %cst_136 = arith.constant dense<0.000000e+00> : vector<6x256xf32>
    %216 = tpu.matmul %213, %215, %cst_136 {dimension_numbers = #tpu.dot_dimension_numbers<[1], [0], [0], [1], [0, 0, 1, 1], [], []>} : vector<6x96xbf16>, vector<96x256xbf16>, vector<6x256xf32> -> vector<6x256xf32>
    %217 = arith.addf %211, %216 : vector<6x256xf32>
    %218 = vector.extract_strided_slice %157 {offsets = [2, 0], sizes = [6, 96], strides = [1, 1]} : vector<8x96xf32> to vector<6x96xf32>
    %219 = arith.truncf %218 : vector<6x96xf32> to vector<6x96xbf16>
    %c4_137 = arith.constant 4 : index
    %c0_138 = arith.constant 0 : index
    %c0_139 = arith.constant 0 : index
    %220 = vector.load %arg7[%c4_137, %c0_138, %c0_139] : memref<5x96x256xbf16, #tpu.memory_space<vmem>>, vector<1x96x256xbf16>
    %221 = vector.shape_cast %220 : vector<1x96x256xbf16> to vector<96x256xbf16>
    %cst_140 = arith.constant dense<0.000000e+00> : vector<6x256xf32>
    %222 = tpu.matmul %219, %221, %cst_140 {dimension_numbers = #tpu.dot_dimension_numbers<[1], [0], [0], [1], [0, 0, 1, 1], [], []>} : vector<6x96xbf16>, vector<96x256xbf16>, vector<6x256xf32> -> vector<6x256xf32>
    %223 = arith.addf %217, %222 : vector<6x256xf32>
    %c0_141 = arith.constant 0 : index
    %c0_142 = arith.constant 0 : index
    %224 = vector.load %arg8[%c0_141, %c0_142] : memref<1x256xf32, #tpu.memory_space<vmem>>, vector<1x256xf32>
    %225 = vector.broadcast %224 : vector<1x256xf32> to vector<6x256xf32>
    %226 = arith.addf %223, %225 : vector<6x256xf32>
    %cst_143 = arith.constant 0.000000e+00 : f32
    %227 = vector.broadcast %cst_143 : f32 to vector<6x256xf32>
    %228 = arith.maximumf %226, %227 : vector<6x256xf32>
    %229 = vector.extract_strided_slice %228 {offsets = [0, 0], sizes = [6, 96], strides = [1, 1]} : vector<6x256xf32> to vector<6x96xf32>
    %230 = vector.extract_strided_slice %228 {offsets = [0, 128], sizes = [6, 96], strides = [1, 1]} : vector<6x256xf32> to vector<6x96xf32>
    %231 = arith.maximumf %229, %230 : vector<6x96xf32>
    %232 = arith.maximumf %194, %231 : vector<6x96xf32>
    %233 = vector.extract_strided_slice %232 {offsets = [0, 0], sizes = [1, 96], strides = [1, 1]} : vector<6x96xf32> to vector<1x96xf32>
    %234 = arith.truncf %233 : vector<1x96xf32> to vector<1x96xbf16>
    %c0_144 = arith.constant 0 : index
    %c0_145 = arith.constant 0 : index
    %c0_146 = arith.constant 0 : index
    %235 = vector.load %arg9[%c0_144, %c0_145, %c0_146] : memref<6x96x128xbf16, #tpu.memory_space<vmem>>, vector<1x96x128xbf16>
    %236 = vector.shape_cast %235 : vector<1x96x128xbf16> to vector<96x128xbf16>
    %cst_147 = arith.constant dense<0.000000e+00> : vector<1x128xf32>
    %237 = tpu.matmul %234, %236, %cst_147 {dimension_numbers = #tpu.dot_dimension_numbers<[1], [0], [0], [1], [0, 0, 1, 1], [], []>} : vector<1x96xbf16>, vector<96x128xbf16>, vector<1x128xf32> -> vector<1x128xf32>
    %238 = vector.extract_strided_slice %232 {offsets = [1, 0], sizes = [1, 96], strides = [1, 1]} : vector<6x96xf32> to vector<1x96xf32>
    %239 = arith.truncf %238 : vector<1x96xf32> to vector<1x96xbf16>
    %c1_148 = arith.constant 1 : index
    %c0_149 = arith.constant 0 : index
    %c0_150 = arith.constant 0 : index
    %240 = vector.load %arg9[%c1_148, %c0_149, %c0_150] : memref<6x96x128xbf16, #tpu.memory_space<vmem>>, vector<1x96x128xbf16>
    %241 = vector.shape_cast %240 : vector<1x96x128xbf16> to vector<96x128xbf16>
    %cst_151 = arith.constant dense<0.000000e+00> : vector<1x128xf32>
    %242 = tpu.matmul %239, %241, %cst_151 {dimension_numbers = #tpu.dot_dimension_numbers<[1], [0], [0], [1], [0, 0, 1, 1], [], []>} : vector<1x96xbf16>, vector<96x128xbf16>, vector<1x128xf32> -> vector<1x128xf32>
    %243 = arith.addf %237, %242 : vector<1x128xf32>
    %244 = vector.extract_strided_slice %232 {offsets = [2, 0], sizes = [1, 96], strides = [1, 1]} : vector<6x96xf32> to vector<1x96xf32>
    %245 = arith.truncf %244 : vector<1x96xf32> to vector<1x96xbf16>
    %c2_152 = arith.constant 2 : index
    %c0_153 = arith.constant 0 : index
    %c0_154 = arith.constant 0 : index
    %246 = vector.load %arg9[%c2_152, %c0_153, %c0_154] : memref<6x96x128xbf16, #tpu.memory_space<vmem>>, vector<1x96x128xbf16>
    %247 = vector.shape_cast %246 : vector<1x96x128xbf16> to vector<96x128xbf16>
    %cst_155 = arith.constant dense<0.000000e+00> : vector<1x128xf32>
    %248 = tpu.matmul %245, %247, %cst_155 {dimension_numbers = #tpu.dot_dimension_numbers<[1], [0], [0], [1], [0, 0, 1, 1], [], []>} : vector<1x96xbf16>, vector<96x128xbf16>, vector<1x128xf32> -> vector<1x128xf32>
    %249 = arith.addf %243, %248 : vector<1x128xf32>
    %250 = vector.extract_strided_slice %232 {offsets = [3, 0], sizes = [1, 96], strides = [1, 1]} : vector<6x96xf32> to vector<1x96xf32>
    %251 = arith.truncf %250 : vector<1x96xf32> to vector<1x96xbf16>
    %c3_156 = arith.constant 3 : index
    %c0_157 = arith.constant 0 : index
    %c0_158 = arith.constant 0 : index
    %252 = vector.load %arg9[%c3_156, %c0_157, %c0_158] : memref<6x96x128xbf16, #tpu.memory_space<vmem>>, vector<1x96x128xbf16>
    %253 = vector.shape_cast %252 : vector<1x96x128xbf16> to vector<96x128xbf16>
    %cst_159 = arith.constant dense<0.000000e+00> : vector<1x128xf32>
    %254 = tpu.matmul %251, %253, %cst_159 {dimension_numbers = #tpu.dot_dimension_numbers<[1], [0], [0], [1], [0, 0, 1, 1], [], []>} : vector<1x96xbf16>, vector<96x128xbf16>, vector<1x128xf32> -> vector<1x128xf32>
    %255 = arith.addf %249, %254 : vector<1x128xf32>
    %256 = vector.extract_strided_slice %232 {offsets = [4, 0], sizes = [1, 96], strides = [1, 1]} : vector<6x96xf32> to vector<1x96xf32>
    %257 = arith.truncf %256 : vector<1x96xf32> to vector<1x96xbf16>
    %c4_160 = arith.constant 4 : index
    %c0_161 = arith.constant 0 : index
    %c0_162 = arith.constant 0 : index
    %258 = vector.load %arg9[%c4_160, %c0_161, %c0_162] : memref<6x96x128xbf16, #tpu.memory_space<vmem>>, vector<1x96x128xbf16>
    %259 = vector.shape_cast %258 : vector<1x96x128xbf16> to vector<96x128xbf16>
    %cst_163 = arith.constant dense<0.000000e+00> : vector<1x128xf32>
    %260 = tpu.matmul %257, %259, %cst_163 {dimension_numbers = #tpu.dot_dimension_numbers<[1], [0], [0], [1], [0, 0, 1, 1], [], []>} : vector<1x96xbf16>, vector<96x128xbf16>, vector<1x128xf32> -> vector<1x128xf32>
    %261 = arith.addf %255, %260 : vector<1x128xf32>
    %262 = vector.extract_strided_slice %232 {offsets = [5, 0], sizes = [1, 96], strides = [1, 1]} : vector<6x96xf32> to vector<1x96xf32>
    %263 = arith.truncf %262 : vector<1x96xf32> to vector<1x96xbf16>
    %c5 = arith.constant 5 : index
    %c0_164 = arith.constant 0 : index
    %c0_165 = arith.constant 0 : index
    %264 = vector.load %arg9[%c5, %c0_164, %c0_165] : memref<6x96x128xbf16, #tpu.memory_space<vmem>>, vector<1x96x128xbf16>
    %265 = vector.shape_cast %264 : vector<1x96x128xbf16> to vector<96x128xbf16>
    %cst_166 = arith.constant dense<0.000000e+00> : vector<1x128xf32>
    %266 = tpu.matmul %263, %265, %cst_166 {dimension_numbers = #tpu.dot_dimension_numbers<[1], [0], [0], [1], [0, 0, 1, 1], [], []>} : vector<1x96xbf16>, vector<96x128xbf16>, vector<1x128xf32> -> vector<1x128xf32>
    %267 = arith.addf %261, %266 : vector<1x128xf32>
    %c0_167 = arith.constant 0 : index
    %c0_168 = arith.constant 0 : index
    %268 = vector.load %arg10[%c0_167, %c0_168] : memref<1x128xf32, #tpu.memory_space<vmem>>, vector<1x128xf32>
    %269 = arith.addf %267, %268 : vector<1x128xf32>
    %cst_169 = arith.constant 0.000000e+00 : f32
    %270 = vector.broadcast %cst_169 : f32 to vector<1x128xf32>
    %271 = arith.maximumf %269, %270 : vector<1x128xf32>
    %272 = arith.truncf %271 : vector<1x128xf32> to vector<1x128xbf16>
    %c0_170 = arith.constant 0 : index
    %c0_171 = arith.constant 0 : index
    %273 = vector.load %arg11[%c0_170, %c0_171] : memref<128x128xbf16, #tpu.memory_space<vmem>>, vector<128x128xbf16>
    %cst_172 = arith.constant dense<0.000000e+00> : vector<1x128xf32>
    %274 = tpu.matmul %272, %273, %cst_172 {dimension_numbers = #tpu.dot_dimension_numbers<[1], [0], [0], [1], [0, 0, 1, 1], [], []>} : vector<1x128xbf16>, vector<128x128xbf16>, vector<1x128xf32> -> vector<1x128xf32>
    %c0_173 = arith.constant 0 : index
    %c0_174 = arith.constant 0 : index
    %275 = vector.load %arg12[%c0_173, %c0_174] : memref<1x128xf32, #tpu.memory_space<vmem>>, vector<1x128xf32>
    %276 = arith.addf %274, %275 : vector<1x128xf32>
    %cst_175 = arith.constant 0.000000e+00 : f32
    %277 = vector.broadcast %cst_175 : f32 to vector<1x128xf32>
    %278 = arith.maximumf %276, %277 : vector<1x128xf32>
    %279 = arith.truncf %278 : vector<1x128xf32> to vector<1x128xbf16>
    %c0_176 = arith.constant 0 : index
    %c0_177 = arith.constant 0 : index
    %280 = vector.load %arg13[%c0_176, %c0_177] : memref<128x128xbf16, #tpu.memory_space<vmem>>, vector<128x128xbf16>
    %cst_178 = arith.constant dense<0.000000e+00> : vector<1x128xf32>
    %281 = tpu.matmul %279, %280, %cst_178 {dimension_numbers = #tpu.dot_dimension_numbers<[1], [0], [0], [1], [0, 0, 1, 1], [], []>} : vector<1x128xbf16>, vector<128x128xbf16>, vector<1x128xf32> -> vector<1x128xf32>
    %c0_179 = arith.constant 0 : index
    %c0_180 = arith.constant 0 : index
    %282 = vector.load %arg14[%c0_179, %c0_180] : memref<1x128xf32, #tpu.memory_space<vmem>>, vector<1x128xf32>
    %283 = arith.addf %281, %282 : vector<1x128xf32>
    %cst_181 = arith.constant 0.000000e+00 : f32
    %284 = vector.broadcast %cst_181 : f32 to vector<1x128xf32>
    %285 = arith.maximumf %283, %284 : vector<1x128xf32>
    %c0_182 = arith.constant 0 : index
    %c0_183 = arith.constant 0 : index
    %c0_184 = arith.constant 0 : index
    %286 = vector.load %arg16[%c0_182, %c0_183, %c0_184] : memref<1x1x128xf32, #tpu.memory_space<vmem>>, vector<1x1x128xf32>
    %287 = vector.shape_cast %286 : vector<1x1x128xf32> to vector<1x128xf32>
    %288 = vector.shape_cast %278 : vector<1x128xf32> to vector<1x1x128xf32>
    tpu.vector_store %arg16[%c0_182, %c0_183, %c0_184], %288 {strides = array<i32>} : memref<1x1x128xf32, #tpu.memory_space<vmem>>, vector<1x1x128xf32>,
    %c0_185 = arith.constant 0 : index
    %c0_186 = arith.constant 0 : index
    %c0_187 = arith.constant 0 : index
    %289 = vector.load %arg15[%c0_185, %c0_186, %c0_187] : memref<1x1x128xf32, #tpu.memory_space<vmem>>, vector<1x1x128xf32>
    %290 = vector.shape_cast %289 : vector<1x1x128xf32> to vector<1x128xf32>
    %291 = vector.shape_cast %285 : vector<1x128xf32> to vector<1x1x128xf32>
    tpu.vector_store %arg15[%c0_185, %c0_186, %c0_187], %291 {strides = array<i32>} : memref<1x1x128xf32, #tpu.memory_space<vmem>>, vector<1x1x128xf32>,
    return
  }
  func.func @transform_0(%arg0: i32) -> (i32, i32, i32) {
    %c0_i32 = arith.constant 0 : i32
    %c0_i32_0 = arith.constant 0 : i32
    %c0_i32_1 = arith.constant 0 : i32
    return %arg0, %c0_i32, %c0_i32_0 : i32, i32, i32
  }
  func.func @transform_1(%arg0: i32) -> (i32, i32, i32) {
    %c0_i32 = arith.constant 0 : i32
    %c0_i32_0 = arith.constant 0 : i32
    %c0_i32_1 = arith.constant 0 : i32
    return %arg0, %c0_i32, %c0_i32_0 : i32, i32, i32
  }
  func.func @transform_2(%arg0: i32) -> (i32, i32, i32) {
    %c0_i32 = arith.constant 0 : i32
    %c0_i32_0 = arith.constant 0 : i32
    %c0_i32_1 = arith.constant 0 : i32
    return %arg0, %c0_i32, %c0_i32_0 : i32, i32, i32
  }
  func.func @transform_3(%arg0: i32) -> (i32, i32, i32) {
    %c0_i32 = arith.constant 0 : i32
    %c0_i32_0 = arith.constant 0 : i32
    %c0_i32_1 = arith.constant 0 : i32
    return %arg0, %c0_i32, %c0_i32_0 : i32, i32, i32
  }
  func.func @transform_4(%arg0: i32) -> (i32, i32, i32) {
    %c0_i32 = arith.constant 0 : i32
    %c0_i32_0 = arith.constant 0 : i32
    %c0_i32_1 = arith.constant 0 : i32
    %c0_i32_2 = arith.constant 0 : i32
    return %c0_i32, %c0_i32_0, %c0_i32_1 : i32, i32, i32
  }
  func.func @transform_5(%arg0: i32) -> (i32, i32) {
    %c0_i32 = arith.constant 0 : i32
    %c0_i32_0 = arith.constant 0 : i32
    %c0_i32_1 = arith.constant 0 : i32
    return %c0_i32, %c0_i32_0 : i32, i32
  }
  func.func @transform_6(%arg0: i32) -> (i32, i32, i32) {
    %c0_i32 = arith.constant 0 : i32
    %c0_i32_0 = arith.constant 0 : i32
    %c0_i32_1 = arith.constant 0 : i32
    %c0_i32_2 = arith.constant 0 : i32
    return %c0_i32, %c0_i32_0, %c0_i32_1 : i32, i32, i32
  }
  func.func @transform_7(%arg0: i32) -> (i32, i32) {
    %c0_i32 = arith.constant 0 : i32
    %c0_i32_0 = arith.constant 0 : i32
    %c0_i32_1 = arith.constant 0 : i32
    return %c0_i32, %c0_i32_0 : i32, i32
  }
  func.func @transform_8(%arg0: i32) -> (i32, i32, i32) {
    %c0_i32 = arith.constant 0 : i32
    %c0_i32_0 = arith.constant 0 : i32
    %c0_i32_1 = arith.constant 0 : i32
    %c0_i32_2 = arith.constant 0 : i32
    return %c0_i32, %c0_i32_0, %c0_i32_1 : i32, i32, i32
  }
  func.func @transform_9(%arg0: i32) -> (i32, i32) {
    %c0_i32 = arith.constant 0 : i32
    %c0_i32_0 = arith.constant 0 : i32
    %c0_i32_1 = arith.constant 0 : i32
    return %c0_i32, %c0_i32_0 : i32, i32
  }
  func.func @transform_10(%arg0: i32) -> (i32, i32) {
    %c0_i32 = arith.constant 0 : i32
    %c0_i32_0 = arith.constant 0 : i32
    %c0_i32_1 = arith.constant 0 : i32
    return %c0_i32, %c0_i32_0 : i32, i32
  }
  func.func @transform_11(%arg0: i32) -> (i32, i32) {
    %c0_i32 = arith.constant 0 : i32
    %c0_i32_0 = arith.constant 0 : i32
    %c0_i32_1 = arith.constant 0 : i32
    return %c0_i32, %c0_i32_0 : i32, i32
  }
  func.func @transform_12(%arg0: i32) -> (i32, i32) {
    %c0_i32 = arith.constant 0 : i32
    %c0_i32_0 = arith.constant 0 : i32
    %c0_i32_1 = arith.constant 0 : i32
    return %c0_i32, %c0_i32_0 : i32, i32
  }
  func.func @transform_13(%arg0: i32) -> (i32, i32) {
    %c0_i32 = arith.constant 0 : i32
    %c0_i32_0 = arith.constant 0 : i32
    %c0_i32_1 = arith.constant 0 : i32
    return %c0_i32, %c0_i32_0 : i32, i32
  }
  func.func @transform_14(%arg0: i32) -> (i32, i32, i32) {
    %c0_i32 = arith.constant 0 : i32
    %c0_i32_0 = arith.constant 0 : i32
    %c0_i32_1 = arith.constant 0 : i32
    return %arg0, %c0_i32, %c0_i32_0 : i32, i32, i32
  }
  func.func @transform_15(%arg0: i32) -> (i32, i32, i32) {
    %c0_i32 = arith.constant 0 : i32
    %c0_i32_0 = arith.constant 0 : i32
    %c0_i32_1 = arith.constant 0 : i32
    return %arg0, %c0_i32, %c0_i32_0 : i32, i32, i32
  }
}

</mosaic_0001>

<llo_original>
// kernel: _lambda_.1
$region0: #{_lambda_.1}
  #allocation0 [shape = 'u32[]', space=smem, size = 0x4, offset = 0x4, fixed_abs, tag = 'smem constant byte address 0x4 - core index']
  #allocation1 [shape = 'u32[144,128]{1,0:T(1,128)}', space=vmem, size = 0x12000, scoped, tag = 'internal scratch']
  %s0 = inlined_call_operand.vmem [shape: f32[2,9,108], index: 0, kind: input, shape index: {}]
  %s1 = inlined_call_operand.vmem [shape: f32[2,9,108], index: 1, kind: input, shape index: {}]
  %s2 = inlined_call_operand.vmem [shape: f32[2,9,108], index: 2, kind: input, shape index: {}]
  %s3 = inlined_call_operand.vmem [shape: f32[2,9,108], index: 3, kind: input, shape index: {}]
  %s4 = inlined_call_operand.vmem [shape: bf16[5,108,256], index: 4, kind: input, shape index: {}]
  %s5 = inlined_call_operand.vmem [shape: f32[1,256], index: 5, kind: input, shape index: {}]
  %s6 = inlined_call_operand.vmem [shape: bf16[5,96,256], index: 6, kind: input, shape index: {}]
  %s7 = inlined_call_operand.vmem [shape: f32[1,256], index: 7, kind: input, shape index: {}]
  %s8 = inlined_call_operand.vmem [shape: bf16[6,96,128], index: 8, kind: input, shape index: {}]
  %s9 = inlined_call_operand.vmem [shape: f32[1,128], index: 9, kind: input, shape index: {}]
  %s10 = inlined_call_operand.vmem [shape: bf16[128,128], index: 10, kind: input, shape index: {}]
  %s11 = inlined_call_operand.vmem [shape: f32[1,128], index: 11, kind: input, shape index: {}]
  %s12 = inlined_call_operand.vmem [shape: bf16[128,128], index: 12, kind: input, shape index: {}]
  %s13 = inlined_call_operand.vmem [shape: f32[1,128], index: 13, kind: input, shape index: {}]
  %s14 = inlined_call_operand.hbm [shape: f32[2,1,128], index: 14, kind: output, shape index: {0}]
  %s15 = inlined_call_operand.hbm [shape: f32[2,1,128], index: 15, kind: output, shape index: {1}]
  %16 = xla_tuple %s14, %s15
  %s17 = sld [smem:[#allocation0]]
  $region97: #{_lambda_.1} parent=0
    _
  %s19 = ssub.s32 1, %s17
  %s20 = scalar_select 0, %s19, %s17
  $region1: #{_lambda_.1} parent=0
    #allocation2 [shape = 'u8[1024]{0}', space=vmem, size = 0x400, scoped, tag = 'output window, operand 0']
    #allocation3 [shape = 's32[2]{0}', space=sflag, size = 0x8, scoped, tag = 'scoped memory for _lambda_.1']
    #allocation4 [shape = 'u8[1024]{0}', space=vmem, size = 0x400, scoped, tag = 'output window, operand 1']
    #allocation5 [shape = 's32[2]{0}', space=sflag, size = 0x8, scoped, tag = 'scoped memory for _lambda_.1']
    %21 = vsyncpa [#allocation3], 0
    %s22 = scalar_lea.sflag [#allocation3], 1
    %23 = vsyncpa %s22, 0
    %24 = vsyncpa [#allocation5], 0
    %s25 = scalar_lea.sflag [#allocation5], 1
    %26 = vsyncpa %s25, 0
    loop: start=0, step=1, limit=4
    $region2: #{_lambda_.1} parent=1 // loop_pre_header
      _
    $region3: #{_lambda_.1} parent=1 // loop_header
      %s28 = sphi 0, %s32
      %p29 = scmp.ge.s32.totalorder %s28, 4
      %s38 = sphi 0, %s40
      %s41 = sphi 0, %s38
      %s42 = sphi 0, %s41
      %s58 = sphi 0, %s42
      %s64 = sphi 0, %s66
      %s67 = sphi 0, %s64
      %s68 = sphi 0, %s67
      %s84 = sphi 0, %s68
      %s90 = sphi 0, %s92
      %s93 = sphi 0, %s90
      %s94 = sphi 0, %s93
      %s110 = sphi 0, %s94
      %s116 = sphi 0, %s118
      %s119 = sphi 0, %s116
      %s120 = sphi 0, %s119
      %s136 = sphi 0, %s120
      %s140 = sphi 0, %s140
      %s142 = sphi 0, %s140
      %s143 = sphi 0, %s142
      %s157 = sphi 0, %s143
      %s161 = sphi 0, %s161
      %s163 = sphi 0, %s161
      %s164 = sphi 0, %s163
      %s178 = sphi 0, %s164
      %s182 = sphi 0, %s182
      %s184 = sphi 0, %s182
      %s185 = sphi 0, %s184
      %s199 = sphi 0, %s185
      %s203 = sphi 0, %s203
      %s205 = sphi 0, %s203
      %s206 = sphi 0, %s205
      %s220 = sphi 0, %s206
      %s224 = sphi 0, %s224
      %s226 = sphi 0, %s224
      %s227 = sphi 0, %s226
      %s241 = sphi 0, %s227
      %s245 = sphi 0, %s245
      %s247 = sphi 0, %s245
      %s248 = sphi 0, %s247
      %s262 = sphi 0, %s248
      %s266 = sphi 0, %s266
      %s268 = sphi 0, %s266
      %s269 = sphi 0, %s268
      %s283 = sphi 0, %s269
      %s287 = sphi 0, %s287
      %s289 = sphi 0, %s287
      %s290 = sphi 0, %s289
      %s304 = sphi 0, %s290
      %s308 = sphi 0, %s308
      %s310 = sphi 0, %s308
      %s311 = sphi 0, %s310
      %s325 = sphi 0, %s311
      %s329 = sphi 0, %s329
      %s331 = sphi 0, %s329
      %s332 = sphi 0, %s331
      %s346 = sphi 0, %s332
      %s352 = sphi 0, %s354
      %s355 = sphi 0, %s352
      %s356 = sphi 0, %s355
      %s372 = sphi 0, %s356
      %s378 = sphi 0, %s380
      %s381 = sphi 0, %s378
      %s382 = sphi 0, %s381
      %s398 = sphi 0, %s382
    $region4: #{_lambda_.1} parent=1 // loop_header_branch
      %31 = sbr.rel (%p29) target = $region8
    $region5: #{_lambda_.1} parent=1 // loop_body
      %s33 = ssub.s32 %s28, 1
      %s34 = ssub.s32 %s28, 2
      %s35 = sadd.s32 %s28, 1
      %s36 = ssub.s32 %s28, %s35
      %p37 = scmp.eq.s32.totalorder %s36, 0
      %s39 = sadd.s32 %s38, 1
      %s40 = scalar_select %p37, %s38, %s39
      %p43 = pneg %p37
      %p44 = scmp.eq.s32.totalorder %s28, 1
      %p45 = por %p43, %p44
      %p46 = scmp.ne.s32.totalorder %s38, %s41
      %p47 = scmp.eq.s32.totalorder %s28, 0
      %p48 = por %p46, %p47
      %p49 = scmp.ne.s32.totalorder %s38, %s41
      %p50 = scmp.eq.s32.totalorder %s33, 1
      %p51 = por %p49, %p50
      %p52 = scmp.ne.s32.totalorder %s41, %s42
      %p53 = scmp.eq.s32.totalorder %s33, 0
      %p54 = por %p52, %p53
      %p55 = scmp.ne.s32.totalorder %s41, %s42
      %p56 = scmp.eq.s32.totalorder %s34, 1
      %p57 = por %p55, %p56
      %p59 = scmp.ne.s32.totalorder %s42, %s58
      %p60 = scmp.eq.s32.totalorder %s34, 0
      %p61 = por %p59, %p60
      %s62 = ssub.s32 %s28, %s35
      %p63 = scmp.eq.s32.totalorder %s62, 0
      %s65 = sadd.s32 %s64, 1
      %s66 = scalar_select %p63, %s64, %s65
      %p69 = pneg %p63
      %p70 = scmp.eq.s32.totalorder %s28, 1
      %p71 = por %p69, %p70
      %p72 = scmp.ne.s32.totalorder %s64, %s67
      %p73 = scmp.eq.s32.totalorder %s28, 0
      %p74 = por %p72, %p73
      %p75 = scmp.ne.s32.totalorder %s64, %s67
      %p76 = scmp.eq.s32.totalorder %s33, 1
      %p77 = por %p75, %p76
      %p78 = scmp.ne.s32.totalorder %s67, %s68
      %p79 = scmp.eq.s32.totalorder %s33, 0
      %p80 = por %p78, %p79
      %p81 = scmp.ne.s32.totalorder %s67, %s68
      %p82 = scmp.eq.s32.totalorder %s34, 1
      %p83 = por %p81, %p82
      %p85 = scmp.ne.s32.totalorder %s68, %s84
      %p86 = scmp.eq.s32.totalorder %s34, 0
      %p87 = por %p85, %p86
      %s88 = ssub.s32 %s28, %s35
      %p89 = scmp.eq.s32.totalorder %s88, 0
      %s91 = sadd.s32 %s90, 1
      %s92 = scalar_select %p89, %s90, %s91
      %p95 = pneg %p89
      %p96 = scmp.eq.s32.totalorder %s28, 1
      %p97 = por %p95, %p96
      %p98 = scmp.ne.s32.totalorder %s90, %s93
      %p99 = scmp.eq.s32.totalorder %s28, 0
      %p100 = por %p98, %p99
      %p101 = scmp.ne.s32.totalorder %s90, %s93
      %p102 = scmp.eq.s32.totalorder %s33, 1
      %p103 = por %p101, %p102
      %p104 = scmp.ne.s32.totalorder %s93, %s94
      %p105 = scmp.eq.s32.totalorder %s33, 0
      %p106 = por %p104, %p105
      %p107 = scmp.ne.s32.totalorder %s93, %s94
      %p108 = scmp.eq.s32.totalorder %s34, 1
      %p109 = por %p107, %p108
      %p111 = scmp.ne.s32.totalorder %s94, %s110
      %p112 = scmp.eq.s32.totalorder %s34, 0
      %p113 = por %p111, %p112
      %s114 = ssub.s32 %s28, %s35
      %p115 = scmp.eq.s32.totalorder %s114, 0
      %s117 = sadd.s32 %s116, 1
      %s118 = scalar_select %p115, %s116, %s117
      %p121 = pneg %p115
      %p122 = scmp.eq.s32.totalorder %s28, 1
      %p123 = por %p121, %p122
      %p124 = scmp.ne.s32.totalorder %s116, %s119
      %p125 = scmp.eq.s32.totalorder %s28, 0
      %p126 = por %p124, %p125
      %p127 = scmp.ne.s32.totalorder %s116, %s119
      %p128 = scmp.eq.s32.totalorder %s33, 1
      %p129 = por %p127, %p128
      %p130 = scmp.ne.s32.totalorder %s119, %s120
      %p131 = scmp.eq.s32.totalorder %s33, 0
      %p132 = por %p130, %p131
      %p133 = scmp.ne.s32.totalorder %s119, %s120
      %p134 = scmp.eq.s32.totalorder %s34, 1
      %p135 = por %p133, %p134
      %p137 = scmp.ne.s32.totalorder %s120, %s136
      %p138 = scmp.eq.s32.totalorder %s34, 0
      %p139 = por %p137, %p138
      %s141 = sadd.s32 %s140, 1
      %p144 = scmp.eq.s32.totalorder %s28, 1
      %p145 = scmp.ne.s32.totalorder %s140, %s142
      %p146 = scmp.eq.s32.totalorder %s28, 0
      %p147 = por %p145, %p146
      %p148 = scmp.ne.s32.totalorder %s140, %s142
      %p149 = scmp.eq.s32.totalorder %s33, 1
      %p150 = por %p148, %p149
      %p151 = scmp.ne.s32.totalorder %s142, %s143
      %p152 = scmp.eq.s32.totalorder %s33, 0
      %p153 = por %p151, %p152
      %p154 = scmp.ne.s32.totalorder %s142, %s143
      %p155 = scmp.eq.s32.totalorder %s34, 1
      %p156 = por %p154, %p155
      %p158 = scmp.ne.s32.totalorder %s143, %s157
      %p159 = scmp.eq.s32.totalorder %s34, 0
      %p160 = por %p158, %p159
      %s162 = sadd.s32 %s161, 1
      %p165 = scmp.eq.s32.totalorder %s28, 1
      %p166 = scmp.ne.s32.totalorder %s161, %s163
      %p167 = scmp.eq.s32.totalorder %s28, 0
      %p168 = por %p166, %p167
      %p169 = scmp.ne.s32.totalorder %s161, %s163
      %p170 = scmp.eq.s32.totalorder %s33, 1
      %p171 = por %p169, %p170
      %p172 = scmp.ne.s32.totalorder %s163, %s164
      %p173 = scmp.eq.s32.totalorder %s33, 0
      %p174 = por %p172, %p173
      %p175 = scmp.ne.s32.totalorder %s163, %s164
      %p176 = scmp.eq.s32.totalorder %s34, 1
      %p177 = por %p175, %p176
      %p179 = scmp.ne.s32.totalorder %s164, %s178
      %p180 = scmp.eq.s32.totalorder %s34, 0
      %p181 = por %p179, %p180
      %s183 = sadd.s32 %s182, 1
      %p186 = scmp.eq.s32.totalorder %s28, 1
      %p187 = scmp.ne.s32.totalorder %s182, %s184
      %p188 = scmp.eq.s32.totalorder %s28, 0
      %p189 = por %p187, %p188
      %p190 = scmp.ne.s32.totalorder %s182, %s184
      %p191 = scmp.eq.s32.totalorder %s33, 1
      %p192 = por %p190, %p191
      %p193 = scmp.ne.s32.totalorder %s184, %s185
      %p194 = scmp.eq.s32.totalorder %s33, 0
      %p195 = por %p193, %p194
      %p196 = scmp.ne.s32.totalorder %s184, %s185
      %p197 = scmp.eq.s32.totalorder %s34, 1
      %p198 = por %p196, %p197
      %p200 = scmp.ne.s32.totalorder %s185, %s199
      %p201 = scmp.eq.s32.totalorder %s34, 0
      %p202 = por %p200, %p201
      %s204 = sadd.s32 %s203, 1
      %p207 = scmp.eq.s32.totalorder %s28, 1
      %p208 = scmp.ne.s32.totalorder %s203, %s205
      %p209 = scmp.eq.s32.totalorder %s28, 0
      %p210 = por %p208, %p209
      %p211 = scmp.ne.s32.totalorder %s203, %s205
      %p212 = scmp.eq.s32.totalorder %s33, 1
      %p213 = por %p211, %p212
      %p214 = scmp.ne.s32.totalorder %s205, %s206
      %p215 = scmp.eq.s32.totalorder %s33, 0
      %p216 = por %p214, %p215
      %p217 = scmp.ne.s32.totalorder %s205, %s206
      %p218 = scmp.eq.s32.totalorder %s34, 1
      %p219 = por %p217, %p218
      %p221 = scmp.ne.s32.totalorder %s206, %s220
      %p222 = scmp.eq.s32.totalorder %s34, 0
      %p223 = por %p221, %p222
      %s225 = sadd.s32 %s224, 1
      %p228 = scmp.eq.s32.totalorder %s28, 1
      %p229 = scmp.ne.s32.totalorder %s224, %s226
      %p230 = scmp.eq.s32.totalorder %s28, 0
      %p231 = por %p229, %p230
      %p232 = scmp.ne.s32.totalorder %s224, %s226
      %p233 = scmp.eq.s32.totalorder %s33, 1
      %p234 = por %p232, %p233
      %p235 = scmp.ne.s32.totalorder %s226, %s227
      %p236 = scmp.eq.s32.totalorder %s33, 0
      %p237 = por %p235, %p236
      %p238 = scmp.ne.s32.totalorder %s226, %s227
      %p239 = scmp.eq.s32.totalorder %s34, 1
      %p240 = por %p238, %p239
      %p242 = scmp.ne.s32.totalorder %s227, %s241
      %p243 = scmp.eq.s32.totalorder %s34, 0
      %p244 = por %p242, %p243
      %s246 = sadd.s32 %s245, 1
      %p249 = scmp.eq.s32.totalorder %s28, 1
      %p250 = scmp.ne.s32.totalorder %s245, %s247
      %p251 = scmp.eq.s32.totalorder %s28, 0
      %p252 = por %p250, %p251
      %p253 = scmp.ne.s32.totalorder %s245, %s247
      %p254 = scmp.eq.s32.totalorder %s33, 1
      %p255 = por %p253, %p254
      %p256 = scmp.ne.s32.totalorder %s247, %s248
      %p257 = scmp.eq.s32.totalorder %s33, 0
      %p258 = por %p256, %p257
      %p259 = scmp.ne.s32.totalorder %s247, %s248
      %p260 = scmp.eq.s32.totalorder %s34, 1
      %p261 = por %p259, %p260
      %p263 = scmp.ne.s32.totalorder %s248, %s262
      %p264 = scmp.eq.s32.totalorder %s34, 0
      %p265 = por %p263, %p264
      %s267 = sadd.s32 %s266, 1
      %p270 = scmp.eq.s32.totalorder %s28, 1
      %p271 = scmp.ne.s32.totalorder %s266, %s268
      %p272 = scmp.eq.s32.totalorder %s28, 0
      %p273 = por %p271, %p272
      %p274 = scmp.ne.s32.totalorder %s266, %s268
      %p275 = scmp.eq.s32.totalorder %s33, 1
      %p276 = por %p274, %p275
      %p277 = scmp.ne.s32.totalorder %s268, %s269
      %p278 = scmp.eq.s32.totalorder %s33, 0
      %p279 = por %p277, %p278
      %p280 = scmp.ne.s32.totalorder %s268, %s269
      %p281 = scmp.eq.s32.totalorder %s34, 1
      %p282 = por %p280, %p281
      %p284 = scmp.ne.s32.totalorder %s269, %s283
      %p285 = scmp.eq.s32.totalorder %s34, 0
      %p286 = por %p284, %p285
      %s288 = sadd.s32 %s287, 1
      %p291 = scmp.eq.s32.totalorder %s28, 1
      %p292 = scmp.ne.s32.totalorder %s287, %s289
      %p293 = scmp.eq.s32.totalorder %s28, 0
      %p294 = por %p292, %p293
      %p295 = scmp.ne.s32.totalorder %s287, %s289
      %p296 = scmp.eq.s32.totalorder %s33, 1
      %p297 = por %p295, %p296
      %p298 = scmp.ne.s32.totalorder %s289, %s290
      %p299 = scmp.eq.s32.totalorder %s33, 0
      %p300 = por %p298, %p299
      %p301 = scmp.ne.s32.totalorder %s289, %s290
      %p302 = scmp.eq.s32.totalorder %s34, 1
      %p303 = por %p301, %p302
      %p305 = scmp.ne.s32.totalorder %s290, %s304
      %p306 = scmp.eq.s32.totalorder %s34, 0
      %p307 = por %p305, %p306
      %s309 = sadd.s32 %s308, 1
      %p312 = scmp.eq.s32.totalorder %s28, 1
      %p313 = scmp.ne.s32.totalorder %s308, %s310
      %p314 = scmp.eq.s32.totalorder %s28, 0
      %p315 = por %p313, %p314
      %p316 = scmp.ne.s32.totalorder %s308, %s310
      %p317 = scmp.eq.s32.totalorder %s33, 1
      %p318 = por %p316, %p317
      %p319 = scmp.ne.s32.totalorder %s310, %s311
      %p320 = scmp.eq.s32.totalorder %s33, 0
      %p321 = por %p319, %p320
      %p322 = scmp.ne.s32.totalorder %s310, %s311
      %p323 = scmp.eq.s32.totalorder %s34, 1
      %p324 = por %p322, %p323
      %p326 = scmp.ne.s32.totalorder %s311, %s325
      %p327 = scmp.eq.s32.totalorder %s34, 0
      %p328 = por %p326, %p327
      %s330 = sadd.s32 %s329, 1
      %p333 = scmp.eq.s32.totalorder %s28, 1
      %p334 = scmp.ne.s32.totalorder %s329, %s331
      %p335 = scmp.eq.s32.totalorder %s28, 0
      %p336 = por %p334, %p335
      %p337 = scmp.ne.s32.totalorder %s329, %s331
      %p338 = scmp.eq.s32.totalorder %s33, 1
      %p339 = por %p337, %p338
      %p340 = scmp.ne.s32.totalorder %s331, %s332
      %p341 = scmp.eq.s32.totalorder %s33, 0
      %p342 = por %p340, %p341
      %p343 = scmp.ne.s32.totalorder %s331, %s332
      %p344 = scmp.eq.s32.totalorder %s34, 1
      %p345 = por %p343, %p344
      %p347 = scmp.ne.s32.totalorder %s332, %s346
      %p348 = scmp.eq.s32.totalorder %s34, 0
      %p349 = por %p347, %p348
      %s350 = ssub.s32 %s28, %s35
      %p351 = scmp.eq.s32.totalorder %s350, 0
      %s353 = sadd.s32 %s352, 1
      %s354 = scalar_select %p351, %s352, %s353
      %p357 = pneg %p351
      %p358 = scmp.eq.s32.totalorder %s28, 1
      %p359 = por %p357, %p358
      %p360 = scmp.ne.s32.totalorder %s352, %s355
      %p361 = scmp.eq.s32.totalorder %s28, 0
      %p362 = por %p360, %p361
      %p363 = scmp.ne.s32.totalorder %s352, %s355
      %p364 = scmp.eq.s32.totalorder %s33, 1
      %p365 = por %p363, %p364
      %p366 = scmp.ne.s32.totalorder %s355, %s356
      %p367 = scmp.eq.s32.totalorder %s33, 0
      %p368 = por %p366, %p367
      %p369 = scmp.ne.s32.totalorder %s355, %s356
      %p370 = scmp.eq.s32.totalorder %s34, 1
      %p371 = por %p369, %p370
      %p373 = scmp.ne.s32.totalorder %s356, %s372
      %p374 = scmp.eq.s32.totalorder %s34, 0
      %p375 = por %p373, %p374
      %s376 = ssub.s32 %s28, %s35
      %p377 = scmp.eq.s32.totalorder %s376, 0
      %s379 = sadd.s32 %s378, 1
      %s380 = scalar_select %p377, %s378, %s379
      %p383 = pneg %p377
      %p384 = scmp.eq.s32.totalorder %s28, 1
      %p385 = por %p383, %p384
      %p386 = scmp.ne.s32.totalorder %s378, %s381
      %p387 = scmp.eq.s32.totalorder %s28, 0
      %p388 = por %p386, %p387
      %p389 = scmp.ne.s32.totalorder %s378, %s381
      %p390 = scmp.eq.s32.totalorder %s33, 1
      %p391 = por %p389, %p390
      %p392 = scmp.ne.s32.totalorder %s381, %s382
      %p393 = scmp.eq.s32.totalorder %s33, 0
      %p394 = por %p392, %p393
      %p395 = scmp.ne.s32.totalorder %s381, %s382
      %p396 = scmp.eq.s32.totalorder %s34, 1
      %p397 = por %p395, %p396
      %p399 = scmp.ne.s32.totalorder %s382, %s398
      %p400 = scmp.eq.s32.totalorder %s34, 0
      %p401 = por %p399, %p400
      %p402 = scmp.le.s32.totalorder 1, %s28
      %p403 = scmp.lt.s32.totalorder %s28, 3
      %p404 = pnand %p402, %p403
      %p405 = pneg %p404
      // Predicated region
      $region9: #{_lambda_.1} parent=5 // pred_check
        _
      $region10: #{_lambda_.1} parent=5 // pred_check_branch
        %407 = sbr.rel (%p404) target = $region12
      $region11: #{_lambda_.1} parent=5 // pred_region
        %s408 = ssub.s32 %s28, 1
        // Predicated region
        $region13: #{_lambda_.1} parent=11 // pred_check
          %p409 = pneg %p153
        $region14: #{_lambda_.1} parent=11 // pred_check_branch
          %411 = sbr.rel (%p409) target = $region16
        $region15: #{_lambda_.1} parent=11 // pred_region
          _
        $region16: #{_lambda_.1} parent=11 // pred_fallthru
          _
        // Predicated region
        $region17: #{_lambda_.1} parent=11 // pred_check
          %p412 = pneg %p174
        $region18: #{_lambda_.1} parent=11 // pred_check_branch
          %414 = sbr.rel (%p412) target = $region20
        $region19: #{_lambda_.1} parent=11 // pred_region
          _
        $region20: #{_lambda_.1} parent=11 // pred_fallthru
          _
        // Predicated region
        $region21: #{_lambda_.1} parent=11 // pred_check
          %p415 = pneg %p195
        $region22: #{_lambda_.1} parent=11 // pred_check_branch
          %417 = sbr.rel (%p415) target = $region24
        $region23: #{_lambda_.1} parent=11 // pred_region
          _
        $region24: #{_lambda_.1} parent=11 // pred_fallthru
          _
        // Predicated region
        $region25: #{_lambda_.1} parent=11 // pred_check
          %p418 = pneg %p216
        $region26: #{_lambda_.1} parent=11 // pred_check_branch
          %420 = sbr.rel (%p418) target = $region28
        $region27: #{_lambda_.1} parent=11 // pred_region
          _
        $region28: #{_lambda_.1} parent=11 // pred_fallthru
          _
        // Predicated region
        $region29: #{_lambda_.1} parent=11 // pred_check
          %p421 = pneg %p237
        $region30: #{_lambda_.1} parent=11 // pred_check_branch
          %423 = sbr.rel (%p421) target = $region32
        $region31: #{_lambda_.1} parent=11 // pred_region
          _
        $region32: #{_lambda_.1} parent=11 // pred_fallthru
          _
        // Predicated region
        $region33: #{_lambda_.1} parent=11 // pred_check
          %p424 = pneg %p258
        $region34: #{_lambda_.1} parent=11 // pred_check_branch
          %426 = sbr.rel (%p424) target = $region36
        $region35: #{_lambda_.1} parent=11 // pred_region
          _
        $region36: #{_lambda_.1} parent=11 // pred_fallthru
          _
        // Predicated region
        $region37: #{_lambda_.1} parent=11 // pred_check
          %p427 = pneg %p279
        $region38: #{_lambda_.1} parent=11 // pred_check_branch
          %429 = sbr.rel (%p427) target = $region40
        $region39: #{_lambda_.1} parent=11 // pred_region
          _
        $region40: #{_lambda_.1} parent=11 // pred_fallthru
          _
        // Predicated region
        $region41: #{_lambda_.1} parent=11 // pred_check
          %p430 = pneg %p300
        $region42: #{_lambda_.1} parent=11 // pred_check_branch
          %432 = sbr.rel (%p430) target = $region44
        $region43: #{_lambda_.1} parent=11 // pred_region
          _
        $region44: #{_lambda_.1} parent=11 // pred_fallthru
          _
        // Predicated region
        $region45: #{_lambda_.1} parent=11 // pred_check
          %p433 = pneg %p321
        $region46: #{_lambda_.1} parent=11 // pred_check_branch
          %435 = sbr.rel (%p433) target = $region48
        $region47: #{_lambda_.1} parent=11 // pred_region
          _
        $region48: #{_lambda_.1} parent=11 // pred_fallthru
          _
        // Predicated region
        $region49: #{_lambda_.1} parent=11 // pred_check
          %p436 = pneg %p342
        $region50: #{_lambda_.1} parent=11 // pred_check_branch
          %438 = sbr.rel (%p436) target = $region52
        $region51: #{_lambda_.1} parent=11 // pred_region
          _
        $region52: #{_lambda_.1} parent=11 // pred_fallthru
          _
      $region12: #{_lambda_.1} parent=5 // pred_fallthru
        _
      %p439 = scmp.lt.s32.totalorder %s28, 2
      // Predicated region
      $region53: #{_lambda_.1} parent=5 // pred_check
        %p440 = pneg %p439
      $region54: #{_lambda_.1} parent=5 // pred_check_branch
        %442 = sbr.rel (%p440) target = $region56
      $region55: #{_lambda_.1} parent=5 // pred_region
        // Predicated region
        $region57: #{_lambda_.1} parent=55 // pred_check
          %p443 = pneg %p48
        $region58: #{_lambda_.1} parent=55 // pred_check_branch
          %445 = sbr.rel (%p443) target = $region60
        $region59: #{_lambda_.1} parent=55 // pred_region
          %p446 = scmp.lt.s32.totalorder %s28, 1
          %s447 = scalar_select %p446, %s28, 1
          %s448 = smul.addr %s447, 2
          %s449 = smul.addr %s448, 8
          %s450 = scalar_lea.vmem %s0, %s449
        $region60: #{_lambda_.1} parent=55 // pred_fallthru
          _
        // Predicated region
        $region61: #{_lambda_.1} parent=55 // pred_check
          %p451 = pneg %p74
        $region62: #{_lambda_.1} parent=55 // pred_check_branch
          %453 = sbr.rel (%p451) target = $region64
        $region63: #{_lambda_.1} parent=55 // pred_region
          %p454 = scmp.lt.s32.totalorder %s28, 1
          %s455 = scalar_select %p454, %s28, 1
          %s456 = smul.addr %s455, 2
          %s457 = smul.addr %s456, 8
          %s458 = scalar_lea.vmem %s1, %s457
        $region64: #{_lambda_.1} parent=55 // pred_fallthru
          _
        // Predicated region
        $region65: #{_lambda_.1} parent=55 // pred_check
          %p459 = pneg %p100
        $region66: #{_lambda_.1} parent=55 // pred_check_branch
          %461 = sbr.rel (%p459) target = $region68
        $region67: #{_lambda_.1} parent=55 // pred_region
          %p462 = scmp.lt.s32.totalorder %s28, 1
          %s463 = scalar_select %p462, %s28, 1
          %s464 = smul.addr %s463, 2
          %s465 = smul.addr %s464, 8
          %s466 = scalar_lea.vmem %s2, %s465
        $region68: #{_lambda_.1} parent=55 // pred_fallthru
          _
        // Predicated region
        $region69: #{_lambda_.1} parent=55 // pred_check
          %p467 = pneg %p126
        $region70: #{_lambda_.1} parent=55 // pred_check_branch
          %469 = sbr.rel (%p467) target = $region72
        $region71: #{_lambda_.1} parent=55 // pred_region
          %p470 = scmp.lt.s32.totalorder %s28, 1
          %s471 = scalar_select %p470, %s28, 1
          %s472 = smul.addr %s471, 2
          %s473 = smul.addr %s472, 8
          %s474 = scalar_lea.vmem %s3, %s473
        $region72: #{_lambda_.1} parent=55 // pred_fallthru
          _
      $region56: #{_lambda_.1} parent=5 // pred_fallthru
        _
      %p475 = scmp.le.s32.totalorder 1, %s28
      %p476 = scmp.lt.s32.totalorder %s28, 3
      %p477 = pnand %p475, %p476
      %p478 = pneg %p477
      // Predicated region
      $region73: #{_lambda_.1} parent=5 // pred_check
        _
      $region74: #{_lambda_.1} parent=5 // pred_check_branch
        %480 = sbr.rel (%p477) target = $region76
      $region75: #{_lambda_.1} parent=5 // pred_region
        %s481 = ssub.s32 %s28, 1
        %p482 = scmp.lt.s32.totalorder %s33, 1
        %s483 = scalar_select %p482, %s33, 1
        %s484 = smul.addr %s483, 2
        %s485 = smul.addr %s484, 8
        %s486 = scalar_lea.vmem %s0, %s485
        %p487 = pneg %p54
        %p488 = pneg %p51
        %p489 = scmp.lt.s32.totalorder %s33, 1
        %s490 = scalar_select %p489, %s33, 1
        %s491 = smul.addr %s490, 2
        %s492 = smul.addr %s491, 8
        %s493 = scalar_lea.vmem %s1, %s492
        %p494 = pneg %p80
        %p495 = pneg %p77
        %p496 = scmp.lt.s32.totalorder %s33, 1
        %s497 = scalar_select %p496, %s33, 1
        %s498 = smul.addr %s497, 2
        %s499 = smul.addr %s498, 8
        %s500 = scalar_lea.vmem %s2, %s499
        %p501 = pneg %p106
        %p502 = pneg %p103
        %p503 = scmp.lt.s32.totalorder %s33, 1
        %s504 = scalar_select %p503, %s33, 1
        %s505 = smul.addr %s504, 2
        %s506 = smul.addr %s505, 8
        %s507 = scalar_lea.vmem %s3, %s506
        %p508 = pneg %p132
        %p509 = pneg %p129
        %p510 = pneg %p153
        %p511 = pneg %p150
        %p512 = pneg %p174
        %p513 = pneg %p171
        %p514 = pneg %p195
        %p515 = pneg %p192
        %p516 = pneg %p216
        %p517 = pneg %p213
        %p518 = pneg %p237
        %p519 = pneg %p234
        %p520 = pneg %p258
        %p521 = pneg %p255
        %p522 = pneg %p279
        %p523 = pneg %p276
        %p524 = pneg %p300
        %p525 = pneg %p297
        %p526 = pneg %p321
        %p527 = pneg %p318
        %p528 = pneg %p342
        %p529 = pneg %p339
        %p530 = pneg %p368
        %p531 = pneg %p365
        %s532 = sand.u32 %s355, 1
        %s533 = scalar_lea.sflag [#allocation3], %s532
        %s534 = sand.u32 %s355, 1
        %s535 = scalar_lea.vmem [#allocation2], %s534
        %p536 = pneg %p394
        %p537 = pneg %p391
        %s538 = sand.u32 %s381, 1
        %s539 = scalar_lea.sflag [#allocation5], %s538
        %s540 = sand.u32 %s381, 1
        %s541 = scalar_lea.vmem [#allocation4], %s540
        %p542 = scmp.lt.s32.totalorder %s33, 1
        %s543 = scalar_select %p542, %s33, 1
        %s544 = smul.addr %s543, 2
        %s545 = smul.addr %s544, 8
        %s546 = scalar_lea.vmem %s0, %s545
        %p547 = scmp.lt.s32.totalorder %s33, 1
        %s548 = scalar_select %p547, %s33, 1
        %s549 = smul.addr %s548, 2
        %s550 = smul.addr %s549, 8
        %s551 = scalar_lea.vmem %s1, %s550
        %p552 = scmp.lt.s32.totalorder %s33, 1
        %s553 = scalar_select %p552, %s33, 1
        %s554 = smul.addr %s553, 2
        %s555 = smul.addr %s554, 8
        %s556 = scalar_lea.vmem %s2, %s555
        %p557 = scmp.lt.s32.totalorder %s33, 1
        %s558 = scalar_select %p557, %s33, 1
        %s559 = smul.addr %s558, 2
        %s560 = smul.addr %s559, 8
        %s561 = scalar_lea.vmem %s3, %s560
        %v563 = vld [vmem:[%s546] sm:$0xff]
        %v564 = vld [vmem:[%s546 + $0x8] sm:$0x1]
        %v565 = vld [vmem:[%s551] sm:$0xff]
        %v566 = vld [vmem:[%s551 + $0x8] sm:$0x1]
        %v567 = vld [vmem:[%s556] sm:$0xff]
        %v568 = vld [vmem:[%s556 + $0x8] sm:$0x1]
        %v569 = vld [vmem:[%s561] sm:$0xff]
        %v570 = vld [vmem:[%s561 + $0x8] sm:$0x1]
        %v571 = vpack.c.bf16 %v563, %v563
        %v572 = vld [vmem:[%s4] sm:$0xff]
        %v573 = vld [vmem:[%s4 + $0x8] sm:$0xff]
        %v574 = vld [vmem:[%s4 + $0x10] sm:$0xff]
        %v575 = vld [vmem:[%s4 + $0x18] sm:$0xff]
        %v576 = vld [vmem:[%s4 + $0x20] sm:$0xff]
        %v577 = vld [vmem:[%s4 + $0x28] sm:$0xff]
        %v578 = vld [vmem:[%s4 + $0x30] sm:$0xff]
        %v579 = vld [vmem:[%s4 + $0x38] sm:$0xff]
        %v580 = vld [vmem:[%s4 + $0x40] sm:$0xff]
        %v581 = vld [vmem:[%s4 + $0x48] sm:$0xff]
        %v582 = vld [vmem:[%s4 + $0x50] sm:$0xff]
        %v583 = vld [vmem:[%s4 + $0x58] sm:$0xff]
        %v584 = vld [vmem:[%s4 + $0x60] sm:$0xff]
        %v585 = vld [vmem:[%s4 + $0x68] sm:$0x33]
        %v586 = vpack.c.bf16 %v565, %v565
        %s587 = scalar_lea.vmem %s4, 112
        %v588 = vld [vmem:[%s587] sm:$0xff]
        %v589 = vld [vmem:[%s587 + $0x8] sm:$0xff]
        %v590 = vld [vmem:[%s587 + $0x10] sm:$0xff]
        %v591 = vld [vmem:[%s587 + $0x18] sm:$0xff]
        %v592 = vld [vmem:[%s587 + $0x20] sm:$0xff]
        %v593 = vld [vmem:[%s587 + $0x28] sm:$0xff]
        %v594 = vld [vmem:[%s587 + $0x30] sm:$0xff]
        %v595 = vld [vmem:[%s587 + $0x38] sm:$0xff]
        %v596 = vld [vmem:[%s587 + $0x40] sm:$0xff]
        %v597 = vld [vmem:[%s587 + $0x48] sm:$0xff]
        %v598 = vld [vmem:[%s587 + $0x50] sm:$0xff]
        %v599 = vld [vmem:[%s587 + $0x58] sm:$0xff]
        %v600 = vld [vmem:[%s587 + $0x60] sm:$0xff]
        %v601 = vld [vmem:[%s587 + $0x68] sm:$0x33]
        %v616 = vunpack.c.l.b16 %v588
        %v617 = vunpack.c.h.b16 %v588
        %v618 = vunpack.c.l.b16 %v589
        %v619 = vunpack.c.h.b16 %v589
        %v620 = vunpack.c.l.b16 %v590
        %v621 = vunpack.c.h.b16 %v590
        %v622 = vunpack.c.l.b16 %v591
        %v623 = vunpack.c.h.b16 %v591
        %v624 = vunpack.c.l.b16 %v592
        %v625 = vunpack.c.h.b16 %v592
        %v626 = vunpack.c.l.b16 %v593
        %v627 = vunpack.c.h.b16 %v593
        %v628 = vunpack.c.l.b16 %v594
        %v629 = vunpack.c.h.b16 %v594
        %v630 = vunpack.c.l.b16 %v595
        %v631 = vunpack.c.h.b16 %v595
        %v632 = vunpack.c.l.b16 %v596
        %v633 = vunpack.c.h.b16 %v596
        %v634 = vunpack.c.l.b16 %v597
        %v635 = vunpack.c.h.b16 %v597
        %v636 = vunpack.c.l.b16 %v598
        %v637 = vunpack.c.h.b16 %v598
        %v638 = vunpack.c.l.b16 %v599
        %v639 = vunpack.c.h.b16 %v599
        %v640 = vunpack.c.l.b16 %v600
        %v641 = vunpack.c.h.b16 %v600
        %v642 = vunpack.c.l.b16 %v601
        %v643 = vunpack.c.h.b16 %v601
        %v644 = vpack.c.b16 %v618, %v616
        %v645 = vpack.c.b16 %v619, %v617
        %v646 = vpack.c.b16 %v622, %v620
        %v647 = vpack.c.b16 %v623, %v621
        %v648 = vpack.c.b16 %v626, %v624
        %v649 = vpack.c.b16 %v627, %v625
        %v650 = vpack.c.b16 %v630, %v628
        %v651 = vpack.c.b16 %v631, %v629
        %v652 = vpack.c.b16 %v634, %v632
        %v653 = vpack.c.b16 %v635, %v633
        %v654 = vpack.c.b16 %v638, %v636
        %v655 = vpack.c.b16 %v639, %v637
        %v656 = vpack.c.b16 %v642, %v640
        %v657 = vpack.c.b16 %v643, %v641
        %vm670 = vcmask 883712
        %v672 = vsel %vm670, %v586, 0
        %vm674 = vcmask 1045504
        %v676 = vsel %vm674, %v656, 0
        %v679 = vsel %vm674, %v657, 0
        %681 = vmatprep.subr.bf16.mxu0 %v645
        %682 = vmatpush1.bf16.msra.mxu0 %v644
        %683 = vmatprep.subr.bf16.mxu0 %v647
        %684 = vmatpush1.bf16.msra.mxu0 %v646
        %685 = vmatprep.subr.bf16.mxu0 %v649
        %686 = vmatpush1.bf16.msra.mxu0 %v648
        %687 = vmatprep.subr.bf16.mxu0 %v651
        %688 = vmatpush1.bf16.msra.mxu0 %v650
        %689 = vmatprep.subr.bf16.mxu0 %v653
        %690 = vmatpush1.bf16.msra.mxu0 %v652
        %691 = vmatprep.subr.bf16.mxu0 %v655
        %692 = vmatpush1.bf16.msra.mxu0 %v654
        %693 = vmatprep.subr.bf16.mxu0 %v679
        %694 = vmatpush1.bf16.msra.mxu0 %v676
        %695 = vmatprep.subr.bf16.mxu0 0
        %696 = vmatpush1.bf16.msra.mxu0 0
        %697 = vmatprep.subr.bf16.mxu0 0
        %698 = vmatpush1.bf16.msra.mxu0 0
        %699 = vmatprep.subr.bf16.mxu0 0
        %700 = vmatpush1.bf16.msra.mxu0 0
        %701 = vmatprep.subr.bf16.mxu0 0
        %702 = vmatpush1.bf16.msra.mxu0 0
        %703 = vmatprep.subr.bf16.mxu0 0
        %704 = vmatpush1.bf16.msra.mxu0 0
        %705 = vmatprep.subr.bf16.mxu0 0
        %706 = vmatpush1.bf16.msra.mxu0 0
        %707 = vmatprep.subr.bf16.mxu0 0
        %708 = vmatpush1.bf16.msra.mxu0 0
        %709 = vmatprep.subr.bf16.mxu0 0
        %710 = vmatpush1.bf16.msra.mxu0 0
        %711 = vmatprep.subr.bf16.mxu0 0
        %712 = vmatpush1.bf16.msra.mxu0 0
        %713 = vmatprep.mubr.bf16.mxu0 0
        %714 = vmatmul.mubr.bf16.gmra.mrb[0].mxu0 %v672
        %v715 = vpop.f32.mrb[0].mxu0
        %v716 = vadd.f32 0.0, %v715
        %v717 = vpop.f32.mrb[0].mxu0
        %v718 = vadd.f32 0.0, %v717
        %v719 = vpop.f32.mrb[0].mxu0
        %v720 = vpop.f32.mrb[0].mxu0
        %721 = vdwg.mxu0
        %v736 = vunpack.c.l.b16 %v572
        %v737 = vunpack.c.h.b16 %v572
        %v738 = vunpack.c.l.b16 %v573
        %v739 = vunpack.c.h.b16 %v573
        %v740 = vunpack.c.l.b16 %v574
        %v741 = vunpack.c.h.b16 %v574
        %v742 = vunpack.c.l.b16 %v575
        %v743 = vunpack.c.h.b16 %v575
        %v744 = vunpack.c.l.b16 %v576
        %v745 = vunpack.c.h.b16 %v576
        %v746 = vunpack.c.l.b16 %v577
        %v747 = vunpack.c.h.b16 %v577
        %v748 = vunpack.c.l.b16 %v578
        %v749 = vunpack.c.h.b16 %v578
        %v750 = vunpack.c.l.b16 %v579
        %v751 = vunpack.c.h.b16 %v579
        %v752 = vunpack.c.l.b16 %v580
        %v753 = vunpack.c.h.b16 %v580
        %v754 = vunpack.c.l.b16 %v581
        %v755 = vunpack.c.h.b16 %v581
        %v756 = vunpack.c.l.b16 %v582
        %v757 = vunpack.c.h.b16 %v582
        %v758 = vunpack.c.l.b16 %v583
        %v759 = vunpack.c.h.b16 %v583
        %v760 = vunpack.c.l.b16 %v584
        %v761 = vunpack.c.h.b16 %v584
        %v762 = vunpack.c.l.b16 %v585
        %v763 = vunpack.c.h.b16 %v585
        %v764 = vpack.c.b16 %v738, %v736
        %v765 = vpack.c.b16 %v739, %v737
        %v766 = vpack.c.b16 %v742, %v740
        %v767 = vpack.c.b16 %v743, %v741
        %v768 = vpack.c.b16 %v746, %v744
        %v769 = vpack.c.b16 %v747, %v745
        %v770 = vpack.c.b16 %v750, %v748
        %v771 = vpack.c.b16 %v751, %v749
        %v772 = vpack.c.b16 %v754, %v752
        %v773 = vpack.c.b16 %v755, %v753
        %v774 = vpack.c.b16 %v758, %v756
        %v775 = vpack.c.b16 %v759, %v757
        %v776 = vpack.c.b16 %v762, %v760
        %v777 = vpack.c.b16 %v763, %v761
        %v791 = vsel %vm670, %v571, 0
        %v794 = vsel %vm674, %v776, 0
        %v797 = vsel %vm674, %v777, 0
        %799 = vmatprep.subr.bf16.mxu0 %v765
        %800 = vmatpush1.bf16.msra.mxu0 %v764
        %801 = vmatprep.subr.bf16.mxu0 %v767
        %802 = vmatpush1.bf16.msra.mxu0 %v766
        %803 = vmatprep.subr.bf16.mxu0 %v769
        %804 = vmatpush1.bf16.msra.mxu0 %v768
        %805 = vmatprep.subr.bf16.mxu0 %v771
        %806 = vmatpush1.bf16.msra.mxu0 %v770
        %807 = vmatprep.subr.bf16.mxu0 %v773
        %808 = vmatpush1.bf16.msra.mxu0 %v772
        %809 = vmatprep.subr.bf16.mxu0 %v775
        %810 = vmatpush1.bf16.msra.mxu0 %v774
        %811 = vmatprep.subr.bf16.mxu0 %v797
        %812 = vmatpush1.bf16.msra.mxu0 %v794
        %813 = vmatprep.subr.bf16.mxu0 0
        %814 = vmatpush1.bf16.msra.mxu0 0
        %815 = vmatprep.subr.bf16.mxu0 0
        %816 = vmatpush1.bf16.msra.mxu0 0
        %817 = vmatprep.subr.bf16.mxu0 0
        %818 = vmatpush1.bf16.msra.mxu0 0
        %819 = vmatprep.subr.bf16.mxu0 0
        %820 = vmatpush1.bf16.msra.mxu0 0
        %821 = vmatprep.subr.bf16.mxu0 0
        %822 = vmatpush1.bf16.msra.mxu0 0
        %823 = vmatprep.subr.bf16.mxu0 0
        %824 = vmatpush1.bf16.msra.mxu0 0
        %825 = vmatprep.subr.bf16.mxu0 0
        %826 = vmatpush1.bf16.msra.mxu0 0
        %827 = vmatprep.subr.bf16.mxu0 0
        %828 = vmatpush1.bf16.msra.mxu0 0
        %829 = vmatprep.subr.bf16.mxu0 0
        %830 = vmatpush1.bf16.msra.mxu0 0
        %831 = vmatprep.mubr.bf16.mxu0 0
        %832 = vmatmul.mubr.bf16.gmra.mrb[0].mxu0 %v791
        %v833 = vpop.f32.mrb[0].mxu0
        %v834 = vadd.f32 %v716, %v833
        %v835 = vpop.f32.mrb[0].mxu0
        %v836 = vadd.f32 %v718, %v835
        %v837 = vpop.f32.mrb[0].mxu0
        %v838 = vpop.f32.mrb[0].mxu0
        %839 = vdwg.mxu0
        %v840 = vpack.c.bf16 %v567, %v567
        %s841 = scalar_lea.vmem %s4, 224
        %v842 = vld [vmem:[%s841] sm:$0xff]
        %v843 = vld [vmem:[%s841 + $0x8] sm:$0xff]
        %v844 = vld [vmem:[%s841 + $0x10] sm:$0xff]
        %v845 = vld [vmem:[%s841 + $0x18] sm:$0xff]
        %v846 = vld [vmem:[%s841 + $0x20] sm:$0xff]
        %v847 = vld [vmem:[%s841 + $0x28] sm:$0xff]
        %v848 = vld [vmem:[%s841 + $0x30] sm:$0xff]
        %v849 = vld [vmem:[%s841 + $0x38] sm:$0xff]
        %v850 = vld [vmem:[%s841 + $0x40] sm:$0xff]
        %v851 = vld [vmem:[%s841 + $0x48] sm:$0xff]
        %v852 = vld [vmem:[%s841 + $0x50] sm:$0xff]
        %v853 = vld [vmem:[%s841 + $0x58] sm:$0xff]
        %v854 = vld [vmem:[%s841 + $0x60] sm:$0xff]
        %v855 = vld [vmem:[%s841 + $0x68] sm:$0x33]
        %v870 = vunpack.c.l.b16 %v842
        %v871 = vunpack.c.h.b16 %v842
        %v872 = vunpack.c.l.b16 %v843
        %v873 = vunpack.c.h.b16 %v843
        %v874 = vunpack.c.l.b16 %v844
        %v875 = vunpack.c.h.b16 %v844
        %v876 = vunpack.c.l.b16 %v845
        %v877 = vunpack.c.h.b16 %v845
        %v878 = vunpack.c.l.b16 %v846
        %v879 = vunpack.c.h.b16 %v846
        %v880 = vunpack.c.l.b16 %v847
        %v881 = vunpack.c.h.b16 %v847
        %v882 = vunpack.c.l.b16 %v848
        %v883 = vunpack.c.h.b16 %v848
        %v884 = vunpack.c.l.b16 %v849
        %v885 = vunpack.c.h.b16 %v849
        %v886 = vunpack.c.l.b16 %v850
        %v887 = vunpack.c.h.b16 %v850
        %v888 = vunpack.c.l.b16 %v851
        %v889 = vunpack.c.h.b16 %v851
        %v890 = vunpack.c.l.b16 %v852
        %v891 = vunpack.c.h.b16 %v852
        %v892 = vunpack.c.l.b16 %v853
        %v893 = vunpack.c.h.b16 %v853
        %v894 = vunpack.c.l.b16 %v854
        %v895 = vunpack.c.h.b16 %v854
        %v896 = vunpack.c.l.b16 %v855
        %v897 = vunpack.c.h.b16 %v855
        %v898 = vpack.c.b16 %v872, %v870
        %v899 = vpack.c.b16 %v873, %v871
        %v900 = vpack.c.b16 %v876, %v874
        %v901 = vpack.c.b16 %v877, %v875
        %v902 = vpack.c.b16 %v880, %v878
        %v903 = vpack.c.b16 %v881, %v879
        %v904 = vpack.c.b16 %v884, %v882
        %v905 = vpack.c.b16 %v885, %v883
        %v906 = vpack.c.b16 %v888, %v886
        %v907 = vpack.c.b16 %v889, %v887
        %v908 = vpack.c.b16 %v892, %v890
        %v909 = vpack.c.b16 %v893, %v891
        %v910 = vpack.c.b16 %v896, %v894
        %v911 = vpack.c.b16 %v897, %v895
        %v925 = vsel %vm670, %v840, 0
        %v928 = vsel %vm674, %v910, 0
        %v931 = vsel %vm674, %v911, 0
        %933 = vmatprep.subr.bf16.mxu0 %v899
        %934 = vmatpush1.bf16.msra.mxu0 %v898
        %935 = vmatprep.subr.bf16.mxu0 %v901
        %936 = vmatpush1.bf16.msra.mxu0 %v900
        %937 = vmatprep.subr.bf16.mxu0 %v903
        %938 = vmatpush1.bf16.msra.mxu0 %v902
        %939 = vmatprep.subr.bf16.mxu0 %v905
        %940 = vmatpush1.bf16.msra.mxu0 %v904
        %941 = vmatprep.subr.bf16.mxu0 %v907
        %942 = vmatpush1.bf16.msra.mxu0 %v906
        %943 = vmatprep.subr.bf16.mxu0 %v909
        %944 = vmatpush1.bf16.msra.mxu0 %v908
        %945 = vmatprep.subr.bf16.mxu0 %v931
        %946 = vmatpush1.bf16.msra.mxu0 %v928
        %947 = vmatprep.subr.bf16.mxu0 0
        %948 = vmatpush1.bf16.msra.mxu0 0
        %949 = vmatprep.subr.bf16.mxu0 0
        %950 = vmatpush1.bf16.msra.mxu0 0
        %951 = vmatprep.subr.bf16.mxu0 0
        %952 = vmatpush1.bf16.msra.mxu0 0
        %953 = vmatprep.subr.bf16.mxu0 0
        %954 = vmatpush1.bf16.msra.mxu0 0
        %955 = vmatprep.subr.bf16.mxu0 0
        %956 = vmatpush1.bf16.msra.mxu0 0
        %957 = vmatprep.subr.bf16.mxu0 0
        %958 = vmatpush1.bf16.msra.mxu0 0
        %959 = vmatprep.subr.bf16.mxu0 0
        %960 = vmatpush1.bf16.msra.mxu0 0
        %961 = vmatprep.subr.bf16.mxu0 0
        %962 = vmatpush1.bf16.msra.mxu0 0
        %963 = vmatprep.subr.bf16.mxu0 0
        %964 = vmatpush1.bf16.msra.mxu0 0
        %965 = vmatprep.mubr.bf16.mxu0 0
        %966 = vmatmul.mubr.bf16.gmra.mrb[0].mxu0 %v925
        %v967 = vpop.f32.mrb[0].mxu0
        %v968 = vadd.f32 0.0, %v967
        %v969 = vpop.f32.mrb[0].mxu0
        %v970 = vadd.f32 0.0, %v969
        %v971 = vpop.f32.mrb[0].mxu0
        %v972 = vpop.f32.mrb[0].mxu0
        %973 = vdwg.mxu0
        %v974 = vadd.f32 %v834, %v968
        %v975 = vadd.f32 %v836, %v970
        %v976 = vpack.c.bf16 %v569, %v569
        %s977 = scalar_lea.vmem %s4, 336
        %v978 = vld [vmem:[%s977] sm:$0xff]
        %v979 = vld [vmem:[%s977 + $0x8] sm:$0xff]
        %v980 = vld [vmem:[%s977 + $0x10] sm:$0xff]
        %v981 = vld [vmem:[%s977 + $0x18] sm:$0xff]
        %v982 = vld [vmem:[%s977 + $0x20] sm:$0xff]
        %v983 = vld [vmem:[%s977 + $0x28] sm:$0xff]
        %v984 = vld [vmem:[%s977 + $0x30] sm:$0xff]
        %v985 = vld [vmem:[%s977 + $0x38] sm:$0xff]
        %v986 = vld [vmem:[%s977 + $0x40] sm:$0xff]
        %v987 = vld [vmem:[%s977 + $0x48] sm:$0xff]
        %v988 = vld [vmem:[%s977 + $0x50] sm:$0xff]
        %v989 = vld [vmem:[%s977 + $0x58] sm:$0xff]
        %v990 = vld [vmem:[%s977 + $0x60] sm:$0xff]
        %v991 = vld [vmem:[%s977 + $0x68] sm:$0x33]
        %v1006 = vunpack.c.l.b16 %v978
        %v1007 = vunpack.c.h.b16 %v978
        %v1008 = vunpack.c.l.b16 %v979
        %v1009 = vunpack.c.h.b16 %v979
        %v1010 = vunpack.c.l.b16 %v980
        %v1011 = vunpack.c.h.b16 %v980
        %v1012 = vunpack.c.l.b16 %v981
        %v1013 = vunpack.c.h.b16 %v981
        %v1014 = vunpack.c.l.b16 %v982
        %v1015 = vunpack.c.h.b16 %v982
        %v1016 = vunpack.c.l.b16 %v983
        %v1017 = vunpack.c.h.b16 %v983
        %v1018 = vunpack.c.l.b16 %v984
        %v1019 = vunpack.c.h.b16 %v984
        %v1020 = vunpack.c.l.b16 %v985
        %v1021 = vunpack.c.h.b16 %v985
        %v1022 = vunpack.c.l.b16 %v986
        %v1023 = vunpack.c.h.b16 %v986
        %v1024 = vunpack.c.l.b16 %v987
        %v1025 = vunpack.c.h.b16 %v987
        %v1026 = vunpack.c.l.b16 %v988
        %v1027 = vunpack.c.h.b16 %v988
        %v1028 = vunpack.c.l.b16 %v989
        %v1029 = vunpack.c.h.b16 %v989
        %v1030 = vunpack.c.l.b16 %v990
        %v1031 = vunpack.c.h.b16 %v990
        %v1032 = vunpack.c.l.b16 %v991
        %v1033 = vunpack.c.h.b16 %v991
        %v1034 = vpack.c.b16 %v1008, %v1006
        %v1035 = vpack.c.b16 %v1009, %v1007
        %v1036 = vpack.c.b16 %v1012, %v1010
        %v1037 = vpack.c.b16 %v1013, %v1011
        %v1038 = vpack.c.b16 %v1016, %v1014
        %v1039 = vpack.c.b16 %v1017, %v1015
        %v1040 = vpack.c.b16 %v1020, %v1018
        %v1041 = vpack.c.b16 %v1021, %v1019
        %v1042 = vpack.c.b16 %v1024, %v1022
        %v1043 = vpack.c.b16 %v1025, %v1023
        %v1044 = vpack.c.b16 %v1028, %v1026
        %v1045 = vpack.c.b16 %v1029, %v1027
        %v1046 = vpack.c.b16 %v1032, %v1030
        %v1047 = vpack.c.b16 %v1033, %v1031
        %v1061 = vsel %vm670, %v976, 0
        %v1064 = vsel %vm674, %v1046, 0
        %v1067 = vsel %vm674, %v1047, 0
        %1069 = vmatprep.subr.bf16.mxu0 %v1035
        %1070 = vmatpush1.bf16.msra.mxu0 %v1034
        %1071 = vmatprep.subr.bf16.mxu0 %v1037
        %1072 = vmatpush1.bf16.msra.mxu0 %v1036
        %1073 = vmatprep.subr.bf16.mxu0 %v1039
        %1074 = vmatpush1.bf16.msra.mxu0 %v1038
        %1075 = vmatprep.subr.bf16.mxu0 %v1041
        %1076 = vmatpush1.bf16.msra.mxu0 %v1040
        %1077 = vmatprep.subr.bf16.mxu0 %v1043
        %1078 = vmatpush1.bf16.msra.mxu0 %v1042
        %1079 = vmatprep.subr.bf16.mxu0 %v1045
        %1080 = vmatpush1.bf16.msra.mxu0 %v1044
        %1081 = vmatprep.subr.bf16.mxu0 %v1067
        %1082 = vmatpush1.bf16.msra.mxu0 %v1064
        %1083 = vmatprep.subr.bf16.mxu0 0
        %1084 = vmatpush1.bf16.msra.mxu0 0
        %1085 = vmatprep.subr.bf16.mxu0 0
        %1086 = vmatpush1.bf16.msra.mxu0 0
        %1087 = vmatprep.subr.bf16.mxu0 0
        %1088 = vmatpush1.bf16.msra.mxu0 0
        %1089 = vmatprep.subr.bf16.mxu0 0
        %1090 = vmatpush1.bf16.msra.mxu0 0
        %1091 = vmatprep.subr.bf16.mxu0 0
        %1092 = vmatpush1.bf16.msra.mxu0 0
        %1093 = vmatprep.subr.bf16.mxu0 0
        %1094 = vmatpush1.bf16.msra.mxu0 0
        %1095 = vmatprep.subr.bf16.mxu0 0
        %1096 = vmatpush1.bf16.msra.mxu0 0
        %1097 = vmatprep.subr.bf16.mxu0 0
        %1098 = vmatpush1.bf16.msra.mxu0 0
        %1099 = vmatprep.subr.bf16.mxu0 0
        %1100 = vmatpush1.bf16.msra.mxu0 0
        %1101 = vmatprep.mubr.bf16.mxu0 0
        %1102 = vmatmul.mubr.bf16.gmra.mrb[0].mxu0 %v1061
        %v1103 = vpop.f32.mrb[0].mxu0
        %v1104 = vadd.f32 0.0, %v1103
        %v1105 = vpop.f32.mrb[0].mxu0
        %v1106 = vadd.f32 0.0, %v1105
        %v1107 = vpop.f32.mrb[0].mxu0
        %v1108 = vpop.f32.mrb[0].mxu0
        %1109 = vdwg.mxu0
        %v1110 = vadd.f32 %v974, %v1104
        %v1111 = vadd.f32 %v975, %v1106
        %v1112 = vpack.c.bf16 %v564, %v563
        %s1113 = scalar_lea.vmem %s4, 448
        %v1114 = vld [vmem:[%s1113] sm:$0xff]
        %v1115 = vld [vmem:[%s1113 + $0x8] sm:$0xff]
        %v1116 = vld [vmem:[%s1113 + $0x10] sm:$0xff]
        %v1117 = vld [vmem:[%s1113 + $0x18] sm:$0xff]
        %v1118 = vld [vmem:[%s1113 + $0x20] sm:$0xff]
        %v1119 = vld [vmem:[%s1113 + $0x28] sm:$0xff]
        %v1120 = vld [vmem:[%s1113 + $0x30] sm:$0xff]
        %v1121 = vld [vmem:[%s1113 + $0x38] sm:$0xff]
        %v1122 = vld [vmem:[%s1113 + $0x40] sm:$0xff]
        %v1123 = vld [vmem:[%s1113 + $0x48] sm:$0xff]
        %v1124 = vld [vmem:[%s1113 + $0x50] sm:$0xff]
        %v1125 = vld [vmem:[%s1113 + $0x58] sm:$0xff]
        %v1126 = vld [vmem:[%s1113 + $0x60] sm:$0xff]
        %v1127 = vld [vmem:[%s1113 + $0x68] sm:$0x33]
        %v1129 = vshrl.u32 %v1112, 16
        %v1131 = vshll.u32 %v1112, 16
        %v1133 = vrot.slane %v1131, 1
        %v1134 = vor.u32 %v1129, %v1133
        %v1149 = vunpack.c.l.b16 %v1114
        %v1150 = vunpack.c.h.b16 %v1114
        %v1151 = vunpack.c.l.b16 %v1115
        %v1152 = vunpack.c.h.b16 %v1115
        %v1153 = vunpack.c.l.b16 %v1116
        %v1154 = vunpack.c.h.b16 %v1116
        %v1155 = vunpack.c.l.b16 %v1117
        %v1156 = vunpack.c.h.b16 %v1117
        %v1157 = vunpack.c.l.b16 %v1118
        %v1158 = vunpack.c.h.b16 %v1118
        %v1159 = vunpack.c.l.b16 %v1119
        %v1160 = vunpack.c.h.b16 %v1119
        %v1161 = vunpack.c.l.b16 %v1120
        %v1162 = vunpack.c.h.b16 %v1120
        %v1163 = vunpack.c.l.b16 %v1121
        %v1164 = vunpack.c.h.b16 %v1121
        %v1165 = vunpack.c.l.b16 %v1122
        %v1166 = vunpack.c.h.b16 %v1122
        %v1167 = vunpack.c.l.b16 %v1123
        %v1168 = vunpack.c.h.b16 %v1123
        %v1169 = vunpack.c.l.b16 %v1124
        %v1170 = vunpack.c.h.b16 %v1124
        %v1171 = vunpack.c.l.b16 %v1125
        %v1172 = vunpack.c.h.b16 %v1125
        %v1173 = vunpack.c.l.b16 %v1126
        %v1174 = vunpack.c.h.b16 %v1126
        %v1175 = vunpack.c.l.b16 %v1127
        %v1176 = vunpack.c.h.b16 %v1127
        %v1177 = vpack.c.b16 %v1151, %v1149
        %v1178 = vpack.c.b16 %v1152, %v1150
        %v1179 = vpack.c.b16 %v1155, %v1153
        %v1180 = vpack.c.b16 %v1156, %v1154
        %v1181 = vpack.c.b16 %v1159, %v1157
        %v1182 = vpack.c.b16 %v1160, %v1158
        %v1183 = vpack.c.b16 %v1163, %v1161
        %v1184 = vpack.c.b16 %v1164, %v1162
        %v1185 = vpack.c.b16 %v1167, %v1165
        %v1186 = vpack.c.b16 %v1168, %v1166
        %v1187 = vpack.c.b16 %v1171, %v1169
        %v1188 = vpack.c.b16 %v1172, %v1170
        %v1189 = vpack.c.b16 %v1175, %v1173
        %v1190 = vpack.c.b16 %v1176, %v1174
        %v1204 = vsel %vm670, %v1134, 0
        %v1207 = vsel %vm674, %v1189, 0
        %v1210 = vsel %vm674, %v1190, 0
        %1212 = vmatprep.subr.bf16.mxu0 %v1178
        %1213 = vmatpush1.bf16.msra.mxu0 %v1177
        %1214 = vmatprep.subr.bf16.mxu0 %v1180
        %1215 = vmatpush1.bf16.msra.mxu0 %v1179
        %1216 = vmatprep.subr.bf16.mxu0 %v1182
        %1217 = vmatpush1.bf16.msra.mxu0 %v1181
        %1218 = vmatprep.subr.bf16.mxu0 %v1184
        %1219 = vmatpush1.bf16.msra.mxu0 %v1183
        %1220 = vmatprep.subr.bf16.mxu0 %v1186
        %1221 = vmatpush1.bf16.msra.mxu0 %v1185
        %1222 = vmatprep.subr.bf16.mxu0 %v1188
        %1223 = vmatpush1.bf16.msra.mxu0 %v1187
        %1224 = vmatprep.subr.bf16.mxu0 %v1210
        %1225 = vmatpush1.bf16.msra.mxu0 %v1207
        %1226 = vmatprep.subr.bf16.mxu0 0
        %1227 = vmatpush1.bf16.msra.mxu0 0
        %1228 = vmatprep.subr.bf16.mxu0 0
        %1229 = vmatpush1.bf16.msra.mxu0 0
        %1230 = vmatprep.subr.bf16.mxu0 0
        %1231 = vmatpush1.bf16.msra.mxu0 0
        %1232 = vmatprep.subr.bf16.mxu0 0
        %1233 = vmatpush1.bf16.msra.mxu0 0
        %1234 = vmatprep.subr.bf16.mxu0 0
        %1235 = vmatpush1.bf16.msra.mxu0 0
        %1236 = vmatprep.subr.bf16.mxu0 0
        %1237 = vmatpush1.bf16.msra.mxu0 0
        %1238 = vmatprep.subr.bf16.mxu0 0
        %1239 = vmatpush1.bf16.msra.mxu0 0
        %1240 = vmatprep.subr.bf16.mxu0 0
        %1241 = vmatpush1.bf16.msra.mxu0 0
        %1242 = vmatprep.subr.bf16.mxu0 0
        %1243 = vmatpush1.bf16.msra.mxu0 0
        %1244 = vmatprep.mubr.bf16.mxu0 0
        %1245 = vmatmul.mubr.bf16.gmra.mrb[0].mxu0 %v1204
        %v1246 = vpop.f32.mrb[0].mxu0
        %v1247 = vadd.f32 0.0, %v1246
        %v1248 = vpop.f32.mrb[0].mxu0
        %v1249 = vadd.f32 0.0, %v1248
        %v1250 = vpop.f32.mrb[0].mxu0
        %v1251 = vpop.f32.mrb[0].mxu0
        %1252 = vdwg.mxu0
        %v1253 = vadd.f32 %v1110, %v1247
        %v1254 = vadd.f32 %v1111, %v1249
        %v1255 = vld [vmem:[%s5] sm:$0x3]
        %v1257 = vlaneseq
        %v1258 = vshrl.u32 %v1257, 7
        %v1259 = vsub.s32 0, %v1258
        %v1260 = vrot.slane %v1255, %v1259
        %v1261 = vlaneseq
        %v1262 = vshrl.u32 %v1261, 7
        %v1263 = vsub.s32 1, %v1262
        %v1264 = vrot.slane %v1255, %v1263
        %v1267 = vadd.f32 %v1253, %v1260
        %v1268 = vadd.f32 %v1254, %v1264
        %v1269 = vmax.f32 %v1267, 0.0
        %v1270 = vmax.f32 %v1268, 0.0
        %v1271 = vmax.f32 %v1269, %v1270
        %1272 = vmatprep.subr.bf16.mxu0 %v645
        %1273 = vmatpush1.bf16.msra.mxu0 %v644
        %1274 = vmatprep.subr.bf16.mxu0 %v647
        %1275 = vmatpush1.bf16.msra.mxu0 %v646
        %1276 = vmatprep.subr.bf16.mxu0 %v649
        %1277 = vmatpush1.bf16.msra.mxu0 %v648
        %1278 = vmatprep.subr.bf16.mxu0 %v651
        %1279 = vmatpush1.bf16.msra.mxu0 %v650
        %1280 = vmatprep.subr.bf16.mxu0 %v653
        %1281 = vmatpush1.bf16.msra.mxu0 %v652
        %1282 = vmatprep.subr.bf16.mxu0 %v655
        %1283 = vmatpush1.bf16.msra.mxu0 %v654
        %1284 = vmatprep.subr.bf16.mxu0 %v679
        %1285 = vmatpush1.bf16.msra.mxu0 %v676
        %1286 = vmatprep.subr.bf16.mxu0 0
        %1287 = vmatpush1.bf16.msra.mxu0 0
        %1288 = vmatprep.subr.bf16.mxu0 0
        %1289 = vmatpush1.bf16.msra.mxu0 0
        %1290 = vmatprep.subr.bf16.mxu0 0
        %1291 = vmatpush1.bf16.msra.mxu0 0
        %1292 = vmatprep.subr.bf16.mxu0 0
        %1293 = vmatpush1.bf16.msra.mxu0 0
        %1294 = vmatprep.subr.bf16.mxu0 0
        %1295 = vmatpush1.bf16.msra.mxu0 0
        %1296 = vmatprep.subr.bf16.mxu0 0
        %1297 = vmatpush1.bf16.msra.mxu0 0
        %1298 = vmatprep.subr.bf16.mxu0 0
        %1299 = vmatpush1.bf16.msra.mxu0 0
        %1300 = vmatprep.subr.bf16.mxu0 0
        %1301 = vmatpush1.bf16.msra.mxu0 0
        %1302 = vmatprep.subr.bf16.mxu0 0
        %1303 = vmatpush1.bf16.msra.mxu0 0
        %1304 = vmatprep.mubr.bf16.mxu0 0
        %1305 = vmatmul.mubr.bf16.gmra.mrb[0].mxu0 %v925
        %v1306 = vpop.f32.mrb[0].mxu0
        %v1307 = vadd.f32 0.0, %v1306
        %v1308 = vpop.f32.mrb[0].mxu0
        %v1309 = vadd.f32 0.0, %v1308
        %v1310 = vpop.f32.mrb[0].mxu0
        %v1311 = vpop.f32.mrb[0].mxu0
        %1312 = vdwg.mxu0
        %1313 = vmatprep.subr.bf16.mxu0 %v765
        %1314 = vmatpush1.bf16.msra.mxu0 %v764
        %1315 = vmatprep.subr.bf16.mxu0 %v767
        %1316 = vmatpush1.bf16.msra.mxu0 %v766
        %1317 = vmatprep.subr.bf16.mxu0 %v769
        %1318 = vmatpush1.bf16.msra.mxu0 %v768
        %1319 = vmatprep.subr.bf16.mxu0 %v771
        %1320 = vmatpush1.bf16.msra.mxu0 %v770
        %1321 = vmatprep.subr.bf16.mxu0 %v773
        %1322 = vmatpush1.bf16.msra.mxu0 %v772
        %1323 = vmatprep.subr.bf16.mxu0 %v775
        %1324 = vmatpush1.bf16.msra.mxu0 %v774
        %1325 = vmatprep.subr.bf16.mxu0 %v797
        %1326 = vmatpush1.bf16.msra.mxu0 %v794
        %1327 = vmatprep.subr.bf16.mxu0 0
        %1328 = vmatpush1.bf16.msra.mxu0 0
        %1329 = vmatprep.subr.bf16.mxu0 0
        %1330 = vmatpush1.bf16.msra.mxu0 0
        %1331 = vmatprep.subr.bf16.mxu0 0
        %1332 = vmatpush1.bf16.msra.mxu0 0
        %1333 = vmatprep.subr.bf16.mxu0 0
        %1334 = vmatpush1.bf16.msra.mxu0 0
        %1335 = vmatprep.subr.bf16.mxu0 0
        %1336 = vmatpush1.bf16.msra.mxu0 0
        %1337 = vmatprep.subr.bf16.mxu0 0
        %1338 = vmatpush1.bf16.msra.mxu0 0
        %1339 = vmatprep.subr.bf16.mxu0 0
        %1340 = vmatpush1.bf16.msra.mxu0 0
        %1341 = vmatprep.subr.bf16.mxu0 0
        %1342 = vmatpush1.bf16.msra.mxu0 0
        %1343 = vmatprep.subr.bf16.mxu0 0
        %1344 = vmatpush1.bf16.msra.mxu0 0
        %1345 = vmatprep.mubr.bf16.mxu0 0
        %1346 = vmatmul.mubr.bf16.gmra.mrb[0].mxu0 %v672
        %v1347 = vpop.f32.mrb[0].mxu0
        %v1348 = vadd.f32 %v1307, %v1347
        %v1349 = vpop.f32.mrb[0].mxu0
        %v1350 = vadd.f32 %v1309, %v1349
        %v1351 = vpop.f32.mrb[0].mxu0
        %v1352 = vpop.f32.mrb[0].mxu0
        %1353 = vdwg.mxu0
        %1354 = vmatprep.subr.bf16.mxu0 %v899
        %1355 = vmatpush1.bf16.msra.mxu0 %v898
        %1356 = vmatprep.subr.bf16.mxu0 %v901
        %1357 = vmatpush1.bf16.msra.mxu0 %v900
        %1358 = vmatprep.subr.bf16.mxu0 %v903
        %1359 = vmatpush1.bf16.msra.mxu0 %v902
        %1360 = vmatprep.subr.bf16.mxu0 %v905
        %1361 = vmatpush1.bf16.msra.mxu0 %v904
        %1362 = vmatprep.subr.bf16.mxu0 %v907
        %1363 = vmatpush1.bf16.msra.mxu0 %v906
        %1364 = vmatprep.subr.bf16.mxu0 %v909
        %1365 = vmatpush1.bf16.msra.mxu0 %v908
        %1366 = vmatprep.subr.bf16.mxu0 %v931
        %1367 = vmatpush1.bf16.msra.mxu0 %v928
        %1368 = vmatprep.subr.bf16.mxu0 0
        %1369 = vmatpush1.bf16.msra.mxu0 0
        %1370 = vmatprep.subr.bf16.mxu0 0
        %1371 = vmatpush1.bf16.msra.mxu0 0
        %1372 = vmatprep.subr.bf16.mxu0 0
        %1373 = vmatpush1.bf16.msra.mxu0 0
        %1374 = vmatprep.subr.bf16.mxu0 0
        %1375 = vmatpush1.bf16.msra.mxu0 0
        %1376 = vmatprep.subr.bf16.mxu0 0
        %1377 = vmatpush1.bf16.msra.mxu0 0
        %1378 = vmatprep.subr.bf16.mxu0 0
        %1379 = vmatpush1.bf16.msra.mxu0 0
        %1380 = vmatprep.subr.bf16.mxu0 0
        %1381 = vmatpush1.bf16.msra.mxu0 0
        %1382 = vmatprep.subr.bf16.mxu0 0
        %1383 = vmatpush1.bf16.msra.mxu0 0
        %1384 = vmatprep.subr.bf16.mxu0 0
        %1385 = vmatpush1.bf16.msra.mxu0 0
        %1386 = vmatprep.mubr.bf16.mxu0 0
        %1387 = vmatmul.mubr.bf16.gmra.mrb[0].mxu0 %v1061
        %v1388 = vpop.f32.mrb[0].mxu0
        %v1389 = vadd.f32 0.0, %v1388
        %v1390 = vpop.f32.mrb[0].mxu0
        %v1391 = vadd.f32 0.0, %v1390
        %v1392 = vpop.f32.mrb[0].mxu0
        %v1393 = vpop.f32.mrb[0].mxu0
        %1394 = vdwg.mxu0
        %v1395 = vadd.f32 %v1348, %v1389
        %v1396 = vadd.f32 %v1350, %v1391
        %1397 = vmatprep.subr.bf16.mxu0 %v1035
        %1398 = vmatpush1.bf16.msra.mxu0 %v1034
        %1399 = vmatprep.subr.bf16.mxu0 %v1037
        %1400 = vmatpush1.bf16.msra.mxu0 %v1036
        %1401 = vmatprep.subr.bf16.mxu0 %v1039
        %1402 = vmatpush1.bf16.msra.mxu0 %v1038
        %1403 = vmatprep.subr.bf16.mxu0 %v1041
        %1404 = vmatpush1.bf16.msra.mxu0 %v1040
        %1405 = vmatprep.subr.bf16.mxu0 %v1043
        %1406 = vmatpush1.bf16.msra.mxu0 %v1042
        %1407 = vmatprep.subr.bf16.mxu0 %v1045
        %1408 = vmatpush1.bf16.msra.mxu0 %v1044
        %1409 = vmatprep.subr.bf16.mxu0 %v1067
        %1410 = vmatpush1.bf16.msra.mxu0 %v1064
        %1411 = vmatprep.subr.bf16.mxu0 0
        %1412 = vmatpush1.bf16.msra.mxu0 0
        %1413 = vmatprep.subr.bf16.mxu0 0
        %1414 = vmatpush1.bf16.msra.mxu0 0
        %1415 = vmatprep.subr.bf16.mxu0 0
        %1416 = vmatpush1.bf16.msra.mxu0 0
        %1417 = vmatprep.subr.bf16.mxu0 0
        %1418 = vmatpush1.bf16.msra.mxu0 0
        %1419 = vmatprep.subr.bf16.mxu0 0
        %1420 = vmatpush1.bf16.msra.mxu0 0
        %1421 = vmatprep.subr.bf16.mxu0 0
        %1422 = vmatpush1.bf16.msra.mxu0 0
        %1423 = vmatprep.subr.bf16.mxu0 0
        %1424 = vmatpush1.bf16.msra.mxu0 0
        %1425 = vmatprep.subr.bf16.mxu0 0
        %1426 = vmatpush1.bf16.msra.mxu0 0
        %1427 = vmatprep.subr.bf16.mxu0 0
        %1428 = vmatpush1.bf16.msra.mxu0 0
        %1429 = vmatprep.mubr.bf16.mxu0 0
        %1430 = vmatmul.mubr.bf16.gmra.mrb[0].mxu0 %v1204
        %v1431 = vpop.f32.mrb[0].mxu0
        %v1432 = vadd.f32 0.0, %v1431
        %v1433 = vpop.f32.mrb[0].mxu0
        %v1434 = vadd.f32 0.0, %v1433
        %v1435 = vpop.f32.mrb[0].mxu0
        %v1436 = vpop.f32.mrb[0].mxu0
        %1437 = vdwg.mxu0
        %v1438 = vadd.f32 %v1395, %v1432
        %v1439 = vadd.f32 %v1396, %v1434
        %v1440 = vpack.c.bf16 %v566, %v565
        %v1442 = vshrl.u32 %v1440, 16
        %v1444 = vshll.u32 %v1440, 16
        %v1446 = vrot.slane %v1444, 1
        %v1447 = vor.u32 %v1442, %v1446
        %v1449 = vsel %vm670, %v1447, 0
        %1451 = vmatprep.subr.bf16.mxu0 %v1178
        %1452 = vmatpush1.bf16.msra.mxu0 %v1177
        %1453 = vmatprep.subr.bf16.mxu0 %v1180
        %1454 = vmatpush1.bf16.msra.mxu0 %v1179
        %1455 = vmatprep.subr.bf16.mxu0 %v1182
        %1456 = vmatpush1.bf16.msra.mxu0 %v1181
        %1457 = vmatprep.subr.bf16.mxu0 %v1184
        %1458 = vmatpush1.bf16.msra.mxu0 %v1183
        %1459 = vmatprep.subr.bf16.mxu0 %v1186
        %1460 = vmatpush1.bf16.msra.mxu0 %v1185
        %1461 = vmatprep.subr.bf16.mxu0 %v1188
        %1462 = vmatpush1.bf16.msra.mxu0 %v1187
        %1463 = vmatprep.subr.bf16.mxu0 %v1210
        %1464 = vmatpush1.bf16.msra.mxu0 %v1207
        %1465 = vmatprep.subr.bf16.mxu0 0
        %1466 = vmatpush1.bf16.msra.mxu0 0
        %1467 = vmatprep.subr.bf16.mxu0 0
        %1468 = vmatpush1.bf16.msra.mxu0 0
        %1469 = vmatprep.subr.bf16.mxu0 0
        %1470 = vmatpush1.bf16.msra.mxu0 0
        %1471 = vmatprep.subr.bf16.mxu0 0
        %1472 = vmatpush1.bf16.msra.mxu0 0
        %1473 = vmatprep.subr.bf16.mxu0 0
        %1474 = vmatpush1.bf16.msra.mxu0 0
        %1475 = vmatprep.subr.bf16.mxu0 0
        %1476 = vmatpush1.bf16.msra.mxu0 0
        %1477 = vmatprep.subr.bf16.mxu0 0
        %1478 = vmatpush1.bf16.msra.mxu0 0
        %1479 = vmatprep.subr.bf16.mxu0 0
        %1480 = vmatpush1.bf16.msra.mxu0 0
        %1481 = vmatprep.subr.bf16.mxu0 0
        %1482 = vmatpush1.bf16.msra.mxu0 0
        %1483 = vmatprep.mubr.bf16.mxu0 0
        %1484 = vmatmul.mubr.bf16.gmra.mrb[0].mxu0 %v1449
        %v1485 = vpop.f32.mrb[0].mxu0
        %v1486 = vadd.f32 0.0, %v1485
        %v1487 = vpop.f32.mrb[0].mxu0
        %v1488 = vadd.f32 0.0, %v1487
        %v1489 = vpop.f32.mrb[0].mxu0
        %v1490 = vpop.f32.mrb[0].mxu0
        %1491 = vdwg.mxu0
        %v1492 = vadd.f32 %v1438, %v1486
        %v1493 = vadd.f32 %v1439, %v1488
        %v1494 = vadd.f32 %v1492, %v1260
        %v1495 = vadd.f32 %v1493, %v1264
        %v1496 = vmax.f32 %v1494, 0.0
        %v1497 = vmax.f32 %v1495, 0.0
        %v1498 = vmax.f32 %v1496, %v1497
        %1499 = vmatprep.subr.bf16.mxu0 %v645
        %1500 = vmatpush1.bf16.msra.mxu0 %v644
        %1501 = vmatprep.subr.bf16.mxu0 %v647
        %1502 = vmatpush1.bf16.msra.mxu0 %v646
        %1503 = vmatprep.subr.bf16.mxu0 %v649
        %1504 = vmatpush1.bf16.msra.mxu0 %v648
        %1505 = vmatprep.subr.bf16.mxu0 %v651
        %1506 = vmatpush1.bf16.msra.mxu0 %v650
        %1507 = vmatprep.subr.bf16.mxu0 %v653
        %1508 = vmatpush1.bf16.msra.mxu0 %v652
        %1509 = vmatprep.subr.bf16.mxu0 %v655
        %1510 = vmatpush1.bf16.msra.mxu0 %v654
        %1511 = vmatprep.subr.bf16.mxu0 %v679
        %1512 = vmatpush1.bf16.msra.mxu0 %v676
        %1513 = vmatprep.subr.bf16.mxu0 0
        %1514 = vmatpush1.bf16.msra.mxu0 0
        %1515 = vmatprep.subr.bf16.mxu0 0
        %1516 = vmatpush1.bf16.msra.mxu0 0
        %1517 = vmatprep.subr.bf16.mxu0 0
        %1518 = vmatpush1.bf16.msra.mxu0 0
        %1519 = vmatprep.subr.bf16.mxu0 0
        %1520 = vmatpush1.bf16.msra.mxu0 0
        %1521 = vmatprep.subr.bf16.mxu0 0
        %1522 = vmatpush1.bf16.msra.mxu0 0
        %1523 = vmatprep.subr.bf16.mxu0 0
        %1524 = vmatpush1.bf16.msra.mxu0 0
        %1525 = vmatprep.subr.bf16.mxu0 0
        %1526 = vmatpush1.bf16.msra.mxu0 0
        %1527 = vmatprep.subr.bf16.mxu0 0
        %1528 = vmatpush1.bf16.msra.mxu0 0
        %1529 = vmatprep.subr.bf16.mxu0 0
        %1530 = vmatpush1.bf16.msra.mxu0 0
        %1531 = vmatprep.mubr.bf16.mxu0 0
        %1532 = vmatmul.mubr.bf16.gmra.mrb[0].mxu0 %v1061
        %v1533 = vpop.f32.mrb[0].mxu0
        %v1534 = vadd.f32 0.0, %v1533
        %v1535 = vpop.f32.mrb[0].mxu0
        %v1536 = vadd.f32 0.0, %v1535
        %v1537 = vpop.f32.mrb[0].mxu0
        %v1538 = vpop.f32.mrb[0].mxu0
        %1539 = vdwg.mxu0
        %1540 = vmatprep.subr.bf16.mxu0 %v765
        %1541 = vmatpush1.bf16.msra.mxu0 %v764
        %1542 = vmatprep.subr.bf16.mxu0 %v767
        %1543 = vmatpush1.bf16.msra.mxu0 %v766
        %1544 = vmatprep.subr.bf16.mxu0 %v769
        %1545 = vmatpush1.bf16.msra.mxu0 %v768
        %1546 = vmatprep.subr.bf16.mxu0 %v771
        %1547 = vmatpush1.bf16.msra.mxu0 %v770
        %1548 = vmatprep.subr.bf16.mxu0 %v773
        %1549 = vmatpush1.bf16.msra.mxu0 %v772
        %1550 = vmatprep.subr.bf16.mxu0 %v775
        %1551 = vmatpush1.bf16.msra.mxu0 %v774
        %1552 = vmatprep.subr.bf16.mxu0 %v797
        %1553 = vmatpush1.bf16.msra.mxu0 %v794
        %1554 = vmatprep.subr.bf16.mxu0 0
        %1555 = vmatpush1.bf16.msra.mxu0 0
        %1556 = vmatprep.subr.bf16.mxu0 0
        %1557 = vmatpush1.bf16.msra.mxu0 0
        %1558 = vmatprep.subr.bf16.mxu0 0
        %1559 = vmatpush1.bf16.msra.mxu0 0
        %1560 = vmatprep.subr.bf16.mxu0 0
        %1561 = vmatpush1.bf16.msra.mxu0 0
        %1562 = vmatprep.subr.bf16.mxu0 0
        %1563 = vmatpush1.bf16.msra.mxu0 0
        %1564 = vmatprep.subr.bf16.mxu0 0
        %1565 = vmatpush1.bf16.msra.mxu0 0
        %1566 = vmatprep.subr.bf16.mxu0 0
        %1567 = vmatpush1.bf16.msra.mxu0 0
        %1568 = vmatprep.subr.bf16.mxu0 0
        %1569 = vmatpush1.bf16.msra.mxu0 0
        %1570 = vmatprep.subr.bf16.mxu0 0
        %1571 = vmatpush1.bf16.msra.mxu0 0
        %1572 = vmatprep.mubr.bf16.mxu0 0
        %1573 = vmatmul.mubr.bf16.gmra.mrb[0].mxu0 %v925
        %v1574 = vpop.f32.mrb[0].mxu0
        %v1575 = vadd.f32 %v1534, %v1574
        %v1576 = vpop.f32.mrb[0].mxu0
        %v1577 = vadd.f32 %v1536, %v1576
        %v1578 = vpop.f32.mrb[0].mxu0
        %v1579 = vpop.f32.mrb[0].mxu0
        %1580 = vdwg.mxu0
        %1581 = vmatprep.subr.bf16.mxu0 %v899
        %1582 = vmatpush1.bf16.msra.mxu0 %v898
        %1583 = vmatprep.subr.bf16.mxu0 %v901
        %1584 = vmatpush1.bf16.msra.mxu0 %v900
        %1585 = vmatprep.subr.bf16.mxu0 %v903
        %1586 = vmatpush1.bf16.msra.mxu0 %v902
        %1587 = vmatprep.subr.bf16.mxu0 %v905
        %1588 = vmatpush1.bf16.msra.mxu0 %v904
        %1589 = vmatprep.subr.bf16.mxu0 %v907
        %1590 = vmatpush1.bf16.msra.mxu0 %v906
        %1591 = vmatprep.subr.bf16.mxu0 %v909
        %1592 = vmatpush1.bf16.msra.mxu0 %v908
        %1593 = vmatprep.subr.bf16.mxu0 %v931
        %1594 = vmatpush1.bf16.msra.mxu0 %v928
        %1595 = vmatprep.subr.bf16.mxu0 0
        %1596 = vmatpush1.bf16.msra.mxu0 0
        %1597 = vmatprep.subr.bf16.mxu0 0
        %1598 = vmatpush1.bf16.msra.mxu0 0
        %1599 = vmatprep.subr.bf16.mxu0 0
        %1600 = vmatpush1.bf16.msra.mxu0 0
        %1601 = vmatprep.subr.bf16.mxu0 0
        %1602 = vmatpush1.bf16.msra.mxu0 0
        %1603 = vmatprep.subr.bf16.mxu0 0
        %1604 = vmatpush1.bf16.msra.mxu0 0
        %1605 = vmatprep.subr.bf16.mxu0 0
        %1606 = vmatpush1.bf16.msra.mxu0 0
        %1607 = vmatprep.subr.bf16.mxu0 0
        %1608 = vmatpush1.bf16.msra.mxu0 0
        %1609 = vmatprep.subr.bf16.mxu0 0
        %1610 = vmatpush1.bf16.msra.mxu0 0
        %1611 = vmatprep.subr.bf16.mxu0 0
        %1612 = vmatpush1.bf16.msra.mxu0 0
        %1613 = vmatprep.mubr.bf16.mxu0 0
        %1614 = vmatmul.mubr.bf16.gmra.mrb[0].mxu0 %v1204
        %v1615 = vpop.f32.mrb[0].mxu0
        %v1616 = vadd.f32 0.0, %v1615
        %v1617 = vpop.f32.mrb[0].mxu0
        %v1618 = vadd.f32 0.0, %v1617
        %v1619 = vpop.f32.mrb[0].mxu0
        %v1620 = vpop.f32.mrb[0].mxu0
        %1621 = vdwg.mxu0
        %v1622 = vadd.f32 %v1575, %v1616
        %v1623 = vadd.f32 %v1577, %v1618
        %1624 = vmatprep.subr.bf16.mxu0 %v1035
        %1625 = vmatpush1.bf16.msra.mxu0 %v1034
        %1626 = vmatprep.subr.bf16.mxu0 %v1037
        %1627 = vmatpush1.bf16.msra.mxu0 %v1036
        %1628 = vmatprep.subr.bf16.mxu0 %v1039
        %1629 = vmatpush1.bf16.msra.mxu0 %v1038
        %1630 = vmatprep.subr.bf16.mxu0 %v1041
        %1631 = vmatpush1.bf16.msra.mxu0 %v1040
        %1632 = vmatprep.subr.bf16.mxu0 %v1043
        %1633 = vmatpush1.bf16.msra.mxu0 %v1042
        %1634 = vmatprep.subr.bf16.mxu0 %v1045
        %1635 = vmatpush1.bf16.msra.mxu0 %v1044
        %1636 = vmatprep.subr.bf16.mxu0 %v1067
        %1637 = vmatpush1.bf16.msra.mxu0 %v1064
        %1638 = vmatprep.subr.bf16.mxu0 0
        %1639 = vmatpush1.bf16.msra.mxu0 0
        %1640 = vmatprep.subr.bf16.mxu0 0
        %1641 = vmatpush1.bf16.msra.mxu0 0
        %1642 = vmatprep.subr.bf16.mxu0 0
        %1643 = vmatpush1.bf16.msra.mxu0 0
        %1644 = vmatprep.subr.bf16.mxu0 0
        %1645 = vmatpush1.bf16.msra.mxu0 0
        %1646 = vmatprep.subr.bf16.mxu0 0
        %1647 = vmatpush1.bf16.msra.mxu0 0
        %1648 = vmatprep.subr.bf16.mxu0 0
        %1649 = vmatpush1.bf16.msra.mxu0 0
        %1650 = vmatprep.subr.bf16.mxu0 0
        %1651 = vmatpush1.bf16.msra.mxu0 0
        %1652 = vmatprep.subr.bf16.mxu0 0
        %1653 = vmatpush1.bf16.msra.mxu0 0
        %1654 = vmatprep.subr.bf16.mxu0 0
        %1655 = vmatpush1.bf16.msra.mxu0 0
        %1656 = vmatprep.mubr.bf16.mxu0 0
        %1657 = vmatmul.mubr.bf16.gmra.mrb[0].mxu0 %v1449
        %v1658 = vpop.f32.mrb[0].mxu0
        %v1659 = vadd.f32 0.0, %v1658
        %v1660 = vpop.f32.mrb[0].mxu0
        %v1661 = vadd.f32 0.0, %v1660
        %v1662 = vpop.f32.mrb[0].mxu0
        %v1663 = vpop.f32.mrb[0].mxu0
        %1664 = vdwg.mxu0
        %v1665 = vadd.f32 %v1622, %v1659
        %v1666 = vadd.f32 %v1623, %v1661
        %v1667 = vpack.c.bf16 %v568, %v567
        %v1669 = vshrl.u32 %v1667, 16
        %v1671 = vshll.u32 %v1667, 16
        %v1673 = vrot.slane %v1671, 1
        %v1674 = vor.u32 %v1669, %v1673
        %v1676 = vsel %vm670, %v1674, 0
        %1678 = vmatprep.subr.bf16.mxu0 %v1178
        %1679 = vmatpush1.bf16.msra.mxu0 %v1177
        %1680 = vmatprep.subr.bf16.mxu0 %v1180
        %1681 = vmatpush1.bf16.msra.mxu0 %v1179
        %1682 = vmatprep.subr.bf16.mxu0 %v1182
        %1683 = vmatpush1.bf16.msra.mxu0 %v1181
        %1684 = vmatprep.subr.bf16.mxu0 %v1184
        %1685 = vmatpush1.bf16.msra.mxu0 %v1183
        %1686 = vmatprep.subr.bf16.mxu0 %v1186
        %1687 = vmatpush1.bf16.msra.mxu0 %v1185
        %1688 = vmatprep.subr.bf16.mxu0 %v1188
        %1689 = vmatpush1.bf16.msra.mxu0 %v1187
        %1690 = vmatprep.subr.bf16.mxu0 %v1210
        %1691 = vmatpush1.bf16.msra.mxu0 %v1207
        %1692 = vmatprep.subr.bf16.mxu0 0
        %1693 = vmatpush1.bf16.msra.mxu0 0
        %1694 = vmatprep.subr.bf16.mxu0 0
        %1695 = vmatpush1.bf16.msra.mxu0 0
        %1696 = vmatprep.subr.bf16.mxu0 0
        %1697 = vmatpush1.bf16.msra.mxu0 0
        %1698 = vmatprep.subr.bf16.mxu0 0
        %1699 = vmatpush1.bf16.msra.mxu0 0
        %1700 = vmatprep.subr.bf16.mxu0 0
        %1701 = vmatpush1.bf16.msra.mxu0 0
        %1702 = vmatprep.subr.bf16.mxu0 0
        %1703 = vmatpush1.bf16.msra.mxu0 0
        %1704 = vmatprep.subr.bf16.mxu0 0
        %1705 = vmatpush1.bf16.msra.mxu0 0
        %1706 = vmatprep.subr.bf16.mxu0 0
        %1707 = vmatpush1.bf16.msra.mxu0 0
        %1708 = vmatprep.subr.bf16.mxu0 0
        %1709 = vmatpush1.bf16.msra.mxu0 0
        %1710 = vmatprep.mubr.bf16.mxu0 0
        %1711 = vmatmul.mubr.bf16.gmra.mrb[0].mxu0 %v1676
        %v1712 = vpop.f32.mrb[0].mxu0
        %v1713 = vadd.f32 0.0, %v1712
        %v1714 = vpop.f32.mrb[0].mxu0
        %v1715 = vadd.f32 0.0, %v1714
        %v1716 = vpop.f32.mrb[0].mxu0
        %v1717 = vpop.f32.mrb[0].mxu0
        %1718 = vdwg.mxu0
        %v1719 = vadd.f32 %v1665, %v1713
        %v1720 = vadd.f32 %v1666, %v1715
        %v1721 = vadd.f32 %v1719, %v1260
        %v1722 = vadd.f32 %v1720, %v1264
        %v1723 = vmax.f32 %v1721, 0.0
        %v1724 = vmax.f32 %v1722, 0.0
        %v1725 = vmax.f32 %v1723, %v1724
        %1726 = vmatprep.subr.bf16.mxu0 %v645
        %1727 = vmatpush1.bf16.msra.mxu0 %v644
        %1728 = vmatprep.subr.bf16.mxu0 %v647
        %1729 = vmatpush1.bf16.msra.mxu0 %v646
        %1730 = vmatprep.subr.bf16.mxu0 %v649
        %1731 = vmatpush1.bf16.msra.mxu0 %v648
        %1732 = vmatprep.subr.bf16.mxu0 %v651
        %1733 = vmatpush1.bf16.msra.mxu0 %v650
        %1734 = vmatprep.subr.bf16.mxu0 %v653
        %1735 = vmatpush1.bf16.msra.mxu0 %v652
        %1736 = vmatprep.subr.bf16.mxu0 %v655
        %1737 = vmatpush1.bf16.msra.mxu0 %v654
        %1738 = vmatprep.subr.bf16.mxu0 %v679
        %1739 = vmatpush1.bf16.msra.mxu0 %v676
        %1740 = vmatprep.subr.bf16.mxu0 0
        %1741 = vmatpush1.bf16.msra.mxu0 0
        %1742 = vmatprep.subr.bf16.mxu0 0
        %1743 = vmatpush1.bf16.msra.mxu0 0
        %1744 = vmatprep.subr.bf16.mxu0 0
        %1745 = vmatpush1.bf16.msra.mxu0 0
        %1746 = vmatprep.subr.bf16.mxu0 0
        %1747 = vmatpush1.bf16.msra.mxu0 0
        %1748 = vmatprep.subr.bf16.mxu0 0
        %1749 = vmatpush1.bf16.msra.mxu0 0
        %1750 = vmatprep.subr.bf16.mxu0 0
        %1751 = vmatpush1.bf16.msra.mxu0 0
        %1752 = vmatprep.subr.bf16.mxu0 0
        %1753 = vmatpush1.bf16.msra.mxu0 0
        %1754 = vmatprep.subr.bf16.mxu0 0
        %1755 = vmatpush1.bf16.msra.mxu0 0
        %1756 = vmatprep.subr.bf16.mxu0 0
        %1757 = vmatpush1.bf16.msra.mxu0 0
        %1758 = vmatprep.mubr.bf16.mxu0 0
        %1759 = vmatmul.mubr.bf16.gmra.mrb[0].mxu0 %v1204
        %v1760 = vpop.f32.mrb[0].mxu0
        %v1761 = vadd.f32 0.0, %v1760
        %v1762 = vpop.f32.mrb[0].mxu0
        %v1763 = vadd.f32 0.0, %v1762
        %v1764 = vpop.f32.mrb[0].mxu0
        %v1765 = vpop.f32.mrb[0].mxu0
        %1766 = vdwg.mxu0
        %1767 = vmatprep.subr.bf16.mxu0 %v765
        %1768 = vmatpush1.bf16.msra.mxu0 %v764
        %1769 = vmatprep.subr.bf16.mxu0 %v767
        %1770 = vmatpush1.bf16.msra.mxu0 %v766
        %1771 = vmatprep.subr.bf16.mxu0 %v769
        %1772 = vmatpush1.bf16.msra.mxu0 %v768
        %1773 = vmatprep.subr.bf16.mxu0 %v771
        %1774 = vmatpush1.bf16.msra.mxu0 %v770
        %1775 = vmatprep.subr.bf16.mxu0 %v773
        %1776 = vmatpush1.bf16.msra.mxu0 %v772
        %1777 = vmatprep.subr.bf16.mxu0 %v775
        %1778 = vmatpush1.bf16.msra.mxu0 %v774
        %1779 = vmatprep.subr.bf16.mxu0 %v797
        %1780 = vmatpush1.bf16.msra.mxu0 %v794
        %1781 = vmatprep.subr.bf16.mxu0 0
        %1782 = vmatpush1.bf16.msra.mxu0 0
        %1783 = vmatprep.subr.bf16.mxu0 0
        %1784 = vmatpush1.bf16.msra.mxu0 0
        %1785 = vmatprep.subr.bf16.mxu0 0
        %1786 = vmatpush1.bf16.msra.mxu0 0
        %1787 = vmatprep.subr.bf16.mxu0 0
        %1788 = vmatpush1.bf16.msra.mxu0 0
        %1789 = vmatprep.subr.bf16.mxu0 0
        %1790 = vmatpush1.bf16.msra.mxu0 0
        %1791 = vmatprep.subr.bf16.mxu0 0
        %1792 = vmatpush1.bf16.msra.mxu0 0
        %1793 = vmatprep.subr.bf16.mxu0 0
        %1794 = vmatpush1.bf16.msra.mxu0 0
        %1795 = vmatprep.subr.bf16.mxu0 0
        %1796 = vmatpush1.bf16.msra.mxu0 0
        %1797 = vmatprep.subr.bf16.mxu0 0
        %1798 = vmatpush1.bf16.msra.mxu0 0
        %1799 = vmatprep.mubr.bf16.mxu0 0
        %1800 = vmatmul.mubr.bf16.gmra.mrb[0].mxu0 %v1061
        %v1801 = vpop.f32.mrb[0].mxu0
        %v1802 = vadd.f32 %v1761, %v1801
        %v1803 = vpop.f32.mrb[0].mxu0
        %v1804 = vadd.f32 %v1763, %v1803
        %v1805 = vpop.f32.mrb[0].mxu0
        %v1806 = vpop.f32.mrb[0].mxu0
        %1807 = vdwg.mxu0
        %1808 = vmatprep.subr.bf16.mxu0 %v899
        %1809 = vmatpush1.bf16.msra.mxu0 %v898
        %1810 = vmatprep.subr.bf16.mxu0 %v901
        %1811 = vmatpush1.bf16.msra.mxu0 %v900
        %1812 = vmatprep.subr.bf16.mxu0 %v903
        %1813 = vmatpush1.bf16.msra.mxu0 %v902
        %1814 = vmatprep.subr.bf16.mxu0 %v905
        %1815 = vmatpush1.bf16.msra.mxu0 %v904
        %1816 = vmatprep.subr.bf16.mxu0 %v907
        %1817 = vmatpush1.bf16.msra.mxu0 %v906
        %1818 = vmatprep.subr.bf16.mxu0 %v909
        %1819 = vmatpush1.bf16.msra.mxu0 %v908
        %1820 = vmatprep.subr.bf16.mxu0 %v931
        %1821 = vmatpush1.bf16.msra.mxu0 %v928
        %1822 = vmatprep.subr.bf16.mxu0 0
        %1823 = vmatpush1.bf16.msra.mxu0 0
        %1824 = vmatprep.subr.bf16.mxu0 0
        %1825 = vmatpush1.bf16.msra.mxu0 0
        %1826 = vmatprep.subr.bf16.mxu0 0
        %1827 = vmatpush1.bf16.msra.mxu0 0
        %1828 = vmatprep.subr.bf16.mxu0 0
        %1829 = vmatpush1.bf16.msra.mxu0 0
        %1830 = vmatprep.subr.bf16.mxu0 0
        %1831 = vmatpush1.bf16.msra.mxu0 0
        %1832 = vmatprep.subr.bf16.mxu0 0
        %1833 = vmatpush1.bf16.msra.mxu0 0
        %1834 = vmatprep.subr.bf16.mxu0 0
        %1835 = vmatpush1.bf16.msra.mxu0 0
        %1836 = vmatprep.subr.bf16.mxu0 0
        %1837 = vmatpush1.bf16.msra.mxu0 0
        %1838 = vmatprep.subr.bf16.mxu0 0
        %1839 = vmatpush1.bf16.msra.mxu0 0
        %1840 = vmatprep.mubr.bf16.mxu0 0
        %1841 = vmatmul.mubr.bf16.gmra.mrb[0].mxu0 %v1449
        %v1842 = vpop.f32.mrb[0].mxu0
        %v1843 = vadd.f32 0.0, %v1842
        %v1844 = vpop.f32.mrb[0].mxu0
        %v1845 = vadd.f32 0.0, %v1844
        %v1846 = vpop.f32.mrb[0].mxu0
        %v1847 = vpop.f32.mrb[0].mxu0
        %1848 = vdwg.mxu0
        %v1849 = vadd.f32 %v1802, %v1843
        %v1850 = vadd.f32 %v1804, %v1845
        %1851 = vmatprep.subr.bf16.mxu0 %v1035
        %1852 = vmatpush1.bf16.msra.mxu0 %v1034
        %1853 = vmatprep.subr.bf16.mxu0 %v1037
        %1854 = vmatpush1.bf16.msra.mxu0 %v1036
        %1855 = vmatprep.subr.bf16.mxu0 %v1039
        %1856 = vmatpush1.bf16.msra.mxu0 %v1038
        %1857 = vmatprep.subr.bf16.mxu0 %v1041
        %1858 = vmatpush1.bf16.msra.mxu0 %v1040
        %1859 = vmatprep.subr.bf16.mxu0 %v1043
        %1860 = vmatpush1.bf16.msra.mxu0 %v1042
        %1861 = vmatprep.subr.bf16.mxu0 %v1045
        %1862 = vmatpush1.bf16.msra.mxu0 %v1044
        %1863 = vmatprep.subr.bf16.mxu0 %v1067
        %1864 = vmatpush1.bf16.msra.mxu0 %v1064
        %1865 = vmatprep.subr.bf16.mxu0 0
        %1866 = vmatpush1.bf16.msra.mxu0 0
        %1867 = vmatprep.subr.bf16.mxu0 0
        %1868 = vmatpush1.bf16.msra.mxu0 0
        %1869 = vmatprep.subr.bf16.mxu0 0
        %1870 = vmatpush1.bf16.msra.mxu0 0
        %1871 = vmatprep.subr.bf16.mxu0 0
        %1872 = vmatpush1.bf16.msra.mxu0 0
        %1873 = vmatprep.subr.bf16.mxu0 0
        %1874 = vmatpush1.bf16.msra.mxu0 0
        %1875 = vmatprep.subr.bf16.mxu0 0
        %1876 = vmatpush1.bf16.msra.mxu0 0
        %1877 = vmatprep.subr.bf16.mxu0 0
        %1878 = vmatpush1.bf16.msra.mxu0 0
        %1879 = vmatprep.subr.bf16.mxu0 0
        %1880 = vmatpush1.bf16.msra.mxu0 0
        %1881 = vmatprep.subr.bf16.mxu0 0
        %1882 = vmatpush1.bf16.msra.mxu0 0
        %1883 = vmatprep.mubr.bf16.mxu0 0
        %1884 = vmatmul.mubr.bf16.gmra.mrb[0].mxu0 %v1676
        %v1885 = vpop.f32.mrb[0].mxu0
        %v1886 = vadd.f32 0.0, %v1885
        %v1887 = vpop.f32.mrb[0].mxu0
        %v1888 = vadd.f32 0.0, %v1887
        %v1889 = vpop.f32.mrb[0].mxu0
        %v1890 = vpop.f32.mrb[0].mxu0
        %1891 = vdwg.mxu0
        %v1892 = vadd.f32 %v1849, %v1886
        %v1893 = vadd.f32 %v1850, %v1888
        %v1894 = vpack.c.bf16 %v570, %v569
        %v1896 = vshrl.u32 %v1894, 16
        %v1898 = vshll.u32 %v1894, 16
        %v1900 = vrot.slane %v1898, 1
        %v1901 = vor.u32 %v1896, %v1900
        %v1903 = vsel %vm670, %v1901, 0
        %1905 = vmatprep.subr.bf16.mxu0 %v1178
        %1906 = vmatpush1.bf16.msra.mxu0 %v1177
        %1907 = vmatprep.subr.bf16.mxu0 %v1180
        %1908 = vmatpush1.bf16.msra.mxu0 %v1179
        %1909 = vmatprep.subr.bf16.mxu0 %v1182
        %1910 = vmatpush1.bf16.msra.mxu0 %v1181
        %1911 = vmatprep.subr.bf16.mxu0 %v1184
        %1912 = vmatpush1.bf16.msra.mxu0 %v1183
        %1913 = vmatprep.subr.bf16.mxu0 %v1186
        %1914 = vmatpush1.bf16.msra.mxu0 %v1185
        %1915 = vmatprep.subr.bf16.mxu0 %v1188
        %1916 = vmatpush1.bf16.msra.mxu0 %v1187
        %1917 = vmatprep.subr.bf16.mxu0 %v1210
        %1918 = vmatpush1.bf16.msra.mxu0 %v1207
        %1919 = vmatprep.subr.bf16.mxu0 0
        %1920 = vmatpush1.bf16.msra.mxu0 0
        %1921 = vmatprep.subr.bf16.mxu0 0
        %1922 = vmatpush1.bf16.msra.mxu0 0
        %1923 = vmatprep.subr.bf16.mxu0 0
        %1924 = vmatpush1.bf16.msra.mxu0 0
        %1925 = vmatprep.subr.bf16.mxu0 0
        %1926 = vmatpush1.bf16.msra.mxu0 0
        %1927 = vmatprep.subr.bf16.mxu0 0
        %1928 = vmatpush1.bf16.msra.mxu0 0
        %1929 = vmatprep.subr.bf16.mxu0 0
        %1930 = vmatpush1.bf16.msra.mxu0 0
        %1931 = vmatprep.subr.bf16.mxu0 0
        %1932 = vmatpush1.bf16.msra.mxu0 0
        %1933 = vmatprep.subr.bf16.mxu0 0
        %1934 = vmatpush1.bf16.msra.mxu0 0
        %1935 = vmatprep.subr.bf16.mxu0 0
        %1936 = vmatpush1.bf16.msra.mxu0 0
        %1937 = vmatprep.mubr.bf16.mxu0 0
        %1938 = vmatmul.mubr.bf16.gmra.mrb[0].mxu0 %v1903
        %v1939 = vpop.f32.mrb[0].mxu0
        %v1940 = vadd.f32 0.0, %v1939
        %v1941 = vpop.f32.mrb[0].mxu0
        %v1942 = vadd.f32 0.0, %v1941
        %v1943 = vpop.f32.mrb[0].mxu0
        %v1944 = vpop.f32.mrb[0].mxu0
        %1945 = vdwg.mxu0
        %v1946 = vadd.f32 %v1892, %v1940
        %v1947 = vadd.f32 %v1893, %v1942
        %v1948 = vadd.f32 %v1946, %v1260
        %v1949 = vadd.f32 %v1947, %v1264
        %v1950 = vmax.f32 %v1948, 0.0
        %v1951 = vmax.f32 %v1949, 0.0
        %v1952 = vmax.f32 %v1950, %v1951
        %v1953 = vmax.f32 %v1271, %v1498
        %v1954 = vmax.f32 %v1725, %v1952
        %v1955 = vpack.c.bf16 %v1953, %v1953
        %v1956 = vld [vmem:[%s6] sm:$0xff]
        %v1957 = vld [vmem:[%s6 + $0x8] sm:$0xff]
        %v1958 = vld [vmem:[%s6 + $0x10] sm:$0xff]
        %v1959 = vld [vmem:[%s6 + $0x18] sm:$0xff]
        %v1960 = vld [vmem:[%s6 + $0x20] sm:$0xff]
        %v1961 = vld [vmem:[%s6 + $0x28] sm:$0xff]
        %v1962 = vld [vmem:[%s6 + $0x30] sm:$0xff]
        %v1963 = vld [vmem:[%s6 + $0x38] sm:$0xff]
        %v1964 = vld [vmem:[%s6 + $0x40] sm:$0xff]
        %v1965 = vld [vmem:[%s6 + $0x48] sm:$0xff]
        %v1966 = vld [vmem:[%s6 + $0x50] sm:$0xff]
        %v1967 = vld [vmem:[%s6 + $0x58] sm:$0xff]
        %v1968 = vpack.c.bf16 %v1954, %v1954
        %s1969 = scalar_lea.vmem %s6, 96
        %v1970 = vld [vmem:[%s1969] sm:$0xff]
        %v1971 = vld [vmem:[%s1969 + $0x8] sm:$0xff]
        %v1972 = vld [vmem:[%s1969 + $0x10] sm:$0xff]
        %v1973 = vld [vmem:[%s1969 + $0x18] sm:$0xff]
        %v1974 = vld [vmem:[%s1969 + $0x20] sm:$0xff]
        %v1975 = vld [vmem:[%s1969 + $0x28] sm:$0xff]
        %v1976 = vld [vmem:[%s1969 + $0x30] sm:$0xff]
        %v1977 = vld [vmem:[%s1969 + $0x38] sm:$0xff]
        %v1978 = vld [vmem:[%s1969 + $0x40] sm:$0xff]
        %v1979 = vld [vmem:[%s1969 + $0x48] sm:$0xff]
        %v1980 = vld [vmem:[%s1969 + $0x50] sm:$0xff]
        %v1981 = vld [vmem:[%s1969 + $0x58] sm:$0xff]
        %v1994 = vunpack.c.l.b16 %v1970
        %v1995 = vunpack.c.h.b16 %v1970
        %v1996 = vunpack.c.l.b16 %v1971
        %v1997 = vunpack.c.h.b16 %v1971
        %v1998 = vunpack.c.l.b16 %v1972
        %v1999 = vunpack.c.h.b16 %v1972
        %v2000 = vunpack.c.l.b16 %v1973
        %v2001 = vunpack.c.h.b16 %v1973
        %v2002 = vunpack.c.l.b16 %v1974
        %v2003 = vunpack.c.h.b16 %v1974
        %v2004 = vunpack.c.l.b16 %v1975
        %v2005 = vunpack.c.h.b16 %v1975
        %v2006 = vunpack.c.l.b16 %v1976
        %v2007 = vunpack.c.h.b16 %v1976
        %v2008 = vunpack.c.l.b16 %v1977
        %v2009 = vunpack.c.h.b16 %v1977
        %v2010 = vunpack.c.l.b16 %v1978
        %v2011 = vunpack.c.h.b16 %v1978
        %v2012 = vunpack.c.l.b16 %v1979
        %v2013 = vunpack.c.h.b16 %v1979
        %v2014 = vunpack.c.l.b16 %v1980
        %v2015 = vunpack.c.h.b16 %v1980
        %v2016 = vunpack.c.l.b16 %v1981
        %v2017 = vunpack.c.h.b16 %v1981
        %v2018 = vpack.c.b16 %v1996, %v1994
        %v2019 = vpack.c.b16 %v1997, %v1995
        %v2020 = vpack.c.b16 %v2000, %v1998
        %v2021 = vpack.c.b16 %v2001, %v1999
        %v2022 = vpack.c.b16 %v2004, %v2002
        %v2023 = vpack.c.b16 %v2005, %v2003
        %v2024 = vpack.c.b16 %v2008, %v2006
        %v2025 = vpack.c.b16 %v2009, %v2007
        %v2026 = vpack.c.b16 %v2012, %v2010
        %v2027 = vpack.c.b16 %v2013, %v2011
        %v2028 = vpack.c.b16 %v2016, %v2014
        %v2029 = vpack.c.b16 %v2017, %v2015
        %vm2042 = vcmask 785408
        %v2044 = vsel %vm2042, %v1968, 0
        %2046 = vmatprep.subr.bf16.mxu0 %v2019
        %2047 = vmatpush1.bf16.msra.mxu0 %v2018
        %2048 = vmatprep.subr.bf16.mxu0 %v2021
        %2049 = vmatpush1.bf16.msra.mxu0 %v2020
        %2050 = vmatprep.subr.bf16.mxu0 %v2023
        %2051 = vmatpush1.bf16.msra.mxu0 %v2022
        %2052 = vmatprep.subr.bf16.mxu0 %v2025
        %2053 = vmatpush1.bf16.msra.mxu0 %v2024
        %2054 = vmatprep.subr.bf16.mxu0 %v2027
        %2055 = vmatpush1.bf16.msra.mxu0 %v2026
        %2056 = vmatprep.subr.bf16.mxu0 %v2029
        %2057 = vmatpush1.bf16.msra.mxu0 %v2028
        %2058 = vmatprep.subr.bf16.mxu0 0
        %2059 = vmatpush1.bf16.msra.mxu0 0
        %2060 = vmatprep.subr.bf16.mxu0 0
        %2061 = vmatpush1.bf16.msra.mxu0 0
        %2062 = vmatprep.subr.bf16.mxu0 0
        %2063 = vmatpush1.bf16.msra.mxu0 0
        %2064 = vmatprep.subr.bf16.mxu0 0
        %2065 = vmatpush1.bf16.msra.mxu0 0
        %2066 = vmatprep.subr.bf16.mxu0 0
        %2067 = vmatpush1.bf16.msra.mxu0 0
        %2068 = vmatprep.subr.bf16.mxu0 0
        %2069 = vmatpush1.bf16.msra.mxu0 0
        %2070 = vmatprep.subr.bf16.mxu0 0
        %2071 = vmatpush1.bf16.msra.mxu0 0
        %2072 = vmatprep.subr.bf16.mxu0 0
        %2073 = vmatpush1.bf16.msra.mxu0 0
        %2074 = vmatprep.subr.bf16.mxu0 0
        %2075 = vmatpush1.bf16.msra.mxu0 0
        %2076 = vmatprep.subr.bf16.mxu0 0
        %2077 = vmatpush1.bf16.msra.mxu0 0
        %2078 = vmatprep.mubr.bf16.mxu0 0
        %2079 = vmatmul.mubr.bf16.gmra.mrb[0].mxu0 %v2044
        %v2080 = vpop.f32.mrb[0].mxu0
        %v2081 = vadd.f32 0.0, %v2080
        %v2082 = vpop.f32.mrb[0].mxu0
        %v2083 = vadd.f32 0.0, %v2082
        %v2084 = vpop.f32.mrb[0].mxu0
        %v2085 = vpop.f32.mrb[0].mxu0
        %2086 = vdwg.mxu0
        %v2099 = vunpack.c.l.b16 %v1956
        %v2100 = vunpack.c.h.b16 %v1956
        %v2101 = vunpack.c.l.b16 %v1957
        %v2102 = vunpack.c.h.b16 %v1957
        %v2103 = vunpack.c.l.b16 %v1958
        %v2104 = vunpack.c.h.b16 %v1958
        %v2105 = vunpack.c.l.b16 %v1959
        %v2106 = vunpack.c.h.b16 %v1959
        %v2107 = vunpack.c.l.b16 %v1960
        %v2108 = vunpack.c.h.b16 %v1960
        %v2109 = vunpack.c.l.b16 %v1961
        %v2110 = vunpack.c.h.b16 %v1961
        %v2111 = vunpack.c.l.b16 %v1962
        %v2112 = vunpack.c.h.b16 %v1962
        %v2113 = vunpack.c.l.b16 %v1963
        %v2114 = vunpack.c.h.b16 %v1963
        %v2115 = vunpack.c.l.b16 %v1964
        %v2116 = vunpack.c.h.b16 %v1964
        %v2117 = vunpack.c.l.b16 %v1965
        %v2118 = vunpack.c.h.b16 %v1965
        %v2119 = vunpack.c.l.b16 %v1966
        %v2120 = vunpack.c.h.b16 %v1966
        %v2121 = vunpack.c.l.b16 %v1967
        %v2122 = vunpack.c.h.b16 %v1967
        %v2123 = vpack.c.b16 %v2101, %v2099
        %v2124 = vpack.c.b16 %v2102, %v2100
        %v2125 = vpack.c.b16 %v2105, %v2103
        %v2126 = vpack.c.b16 %v2106, %v2104
        %v2127 = vpack.c.b16 %v2109, %v2107
        %v2128 = vpack.c.b16 %v2110, %v2108
        %v2129 = vpack.c.b16 %v2113, %v2111
        %v2130 = vpack.c.b16 %v2114, %v2112
        %v2131 = vpack.c.b16 %v2117, %v2115
        %v2132 = vpack.c.b16 %v2118, %v2116
        %v2133 = vpack.c.b16 %v2121, %v2119
        %v2134 = vpack.c.b16 %v2122, %v2120
        %v2148 = vsel %vm2042, %v1955, 0
        %2150 = vmatprep.subr.bf16.mxu0 %v2124
        %2151 = vmatpush1.bf16.msra.mxu0 %v2123
        %2152 = vmatprep.subr.bf16.mxu0 %v2126
        %2153 = vmatpush1.bf16.msra.mxu0 %v2125
        %2154 = vmatprep.subr.bf16.mxu0 %v2128
        %2155 = vmatpush1.bf16.msra.mxu0 %v2127
        %2156 = vmatprep.subr.bf16.mxu0 %v2130
        %2157 = vmatpush1.bf16.msra.mxu0 %v2129
        %2158 = vmatprep.subr.bf16.mxu0 %v2132
        %2159 = vmatpush1.bf16.msra.mxu0 %v2131
        %2160 = vmatprep.subr.bf16.mxu0 %v2134
        %2161 = vmatpush1.bf16.msra.mxu0 %v2133
        %2162 = vmatprep.subr.bf16.mxu0 0
        %2163 = vmatpush1.bf16.msra.mxu0 0
        %2164 = vmatprep.subr.bf16.mxu0 0
        %2165 = vmatpush1.bf16.msra.mxu0 0
        %2166 = vmatprep.subr.bf16.mxu0 0
        %2167 = vmatpush1.bf16.msra.mxu0 0
        %2168 = vmatprep.subr.bf16.mxu0 0
        %2169 = vmatpush1.bf16.msra.mxu0 0
        %2170 = vmatprep.subr.bf16.mxu0 0
        %2171 = vmatpush1.bf16.msra.mxu0 0
        %2172 = vmatprep.subr.bf16.mxu0 0
        %2173 = vmatpush1.bf16.msra.mxu0 0
        %2174 = vmatprep.subr.bf16.mxu0 0
        %2175 = vmatpush1.bf16.msra.mxu0 0
        %2176 = vmatprep.subr.bf16.mxu0 0
        %2177 = vmatpush1.bf16.msra.mxu0 0
        %2178 = vmatprep.subr.bf16.mxu0 0
        %2179 = vmatpush1.bf16.msra.mxu0 0
        %2180 = vmatprep.subr.bf16.mxu0 0
        %2181 = vmatpush1.bf16.msra.mxu0 0
        %2182 = vmatprep.mubr.bf16.mxu0 0
        %2183 = vmatmul.mubr.bf16.gmra.mrb[0].mxu0 %v2148
        %v2184 = vpop.f32.mrb[0].mxu0
        %v2185 = vadd.f32 %v2081, %v2184
        %v2186 = vpop.f32.mrb[0].mxu0
        %v2187 = vadd.f32 %v2083, %v2186
        %v2188 = vpop.f32.mrb[0].mxu0
        %v2189 = vpop.f32.mrb[0].mxu0
        %2190 = vdwg.mxu0
        %s2191 = scalar_lea.vmem %s6, 192
        %v2192 = vld [vmem:[%s2191] sm:$0xff]
        %v2193 = vld [vmem:[%s2191 + $0x8] sm:$0xff]
        %v2194 = vld [vmem:[%s2191 + $0x10] sm:$0xff]
        %v2195 = vld [vmem:[%s2191 + $0x18] sm:$0xff]
        %v2196 = vld [vmem:[%s2191 + $0x20] sm:$0xff]
        %v2197 = vld [vmem:[%s2191 + $0x28] sm:$0xff]
        %v2198 = vld [vmem:[%s2191 + $0x30] sm:$0xff]
        %v2199 = vld [vmem:[%s2191 + $0x38] sm:$0xff]
        %v2200 = vld [vmem:[%s2191 + $0x40] sm:$0xff]
        %v2201 = vld [vmem:[%s2191 + $0x48] sm:$0xff]
        %v2202 = vld [vmem:[%s2191 + $0x50] sm:$0xff]
        %v2203 = vld [vmem:[%s2191 + $0x58] sm:$0xff]
        %v2204 = vshrl.u32 %v1955, 16
        %v2206 = vshll.u32 %v1955, 16
        %v2208 = vrot.slane %v2206, 1
        %v2209 = vor.u32 %v2204, %v2208
        %v2222 = vunpack.c.l.b16 %v2192
        %v2223 = vunpack.c.h.b16 %v2192
        %v2224 = vunpack.c.l.b16 %v2193
        %v2225 = vunpack.c.h.b16 %v2193
        %v2226 = vunpack.c.l.b16 %v2194
        %v2227 = vunpack.c.h.b16 %v2194
        %v2228 = vunpack.c.l.b16 %v2195
        %v2229 = vunpack.c.h.b16 %v2195
        %v2230 = vunpack.c.l.b16 %v2196
        %v2231 = vunpack.c.h.b16 %v2196
        %v2232 = vunpack.c.l.b16 %v2197
        %v2233 = vunpack.c.h.b16 %v2197
        %v2234 = vunpack.c.l.b16 %v2198
        %v2235 = vunpack.c.h.b16 %v2198
        %v2236 = vunpack.c.l.b16 %v2199
        %v2237 = vunpack.c.h.b16 %v2199
        %v2238 = vunpack.c.l.b16 %v2200
        %v2239 = vunpack.c.h.b16 %v2200
        %v2240 = vunpack.c.l.b16 %v2201
        %v2241 = vunpack.c.h.b16 %v2201
        %v2242 = vunpack.c.l.b16 %v2202
        %v2243 = vunpack.c.h.b16 %v2202
        %v2244 = vunpack.c.l.b16 %v2203
        %v2245 = vunpack.c.h.b16 %v2203
        %v2246 = vpack.c.b16 %v2224, %v2222
        %v2247 = vpack.c.b16 %v2225, %v2223
        %v2248 = vpack.c.b16 %v2228, %v2226
        %v2249 = vpack.c.b16 %v2229, %v2227
        %v2250 = vpack.c.b16 %v2232, %v2230
        %v2251 = vpack.c.b16 %v2233, %v2231
        %v2252 = vpack.c.b16 %v2236, %v2234
        %v2253 = vpack.c.b16 %v2237, %v2235
        %v2254 = vpack.c.b16 %v2240, %v2238
        %v2255 = vpack.c.b16 %v2241, %v2239
        %v2256 = vpack.c.b16 %v2244, %v2242
        %v2257 = vpack.c.b16 %v2245, %v2243
        %v2271 = vsel %vm2042, %v2209, 0
        %2273 = vmatprep.subr.bf16.mxu0 %v2247
        %2274 = vmatpush1.bf16.msra.mxu0 %v2246
        %2275 = vmatprep.subr.bf16.mxu0 %v2249
        %2276 = vmatpush1.bf16.msra.mxu0 %v2248
        %2277 = vmatprep.subr.bf16.mxu0 %v2251
        %2278 = vmatpush1.bf16.msra.mxu0 %v2250
        %2279 = vmatprep.subr.bf16.mxu0 %v2253
        %2280 = vmatpush1.bf16.msra.mxu0 %v2252
        %2281 = vmatprep.subr.bf16.mxu0 %v2255
        %2282 = vmatpush1.bf16.msra.mxu0 %v2254
        %2283 = vmatprep.subr.bf16.mxu0 %v2257
        %2284 = vmatpush1.bf16.msra.mxu0 %v2256
        %2285 = vmatprep.subr.bf16.mxu0 0
        %2286 = vmatpush1.bf16.msra.mxu0 0
        %2287 = vmatprep.subr.bf16.mxu0 0
        %2288 = vmatpush1.bf16.msra.mxu0 0
        %2289 = vmatprep.subr.bf16.mxu0 0
        %2290 = vmatpush1.bf16.msra.mxu0 0
        %2291 = vmatprep.subr.bf16.mxu0 0
        %2292 = vmatpush1.bf16.msra.mxu0 0
        %2293 = vmatprep.subr.bf16.mxu0 0
        %2294 = vmatpush1.bf16.msra.mxu0 0
        %2295 = vmatprep.subr.bf16.mxu0 0
        %2296 = vmatpush1.bf16.msra.mxu0 0
        %2297 = vmatprep.subr.bf16.mxu0 0
        %2298 = vmatpush1.bf16.msra.mxu0 0
        %2299 = vmatprep.subr.bf16.mxu0 0
        %2300 = vmatpush1.bf16.msra.mxu0 0
        %2301 = vmatprep.subr.bf16.mxu0 0
        %2302 = vmatpush1.bf16.msra.mxu0 0
        %2303 = vmatprep.subr.bf16.mxu0 0
        %2304 = vmatpush1.bf16.msra.mxu0 0
        %2305 = vmatprep.mubr.bf16.mxu0 0
        %2306 = vmatmul.mubr.bf16.gmra.mrb[0].mxu0 %v2271
        %v2307 = vpop.f32.mrb[0].mxu0
        %v2308 = vadd.f32 0.0, %v2307
        %v2309 = vpop.f32.mrb[0].mxu0
        %v2310 = vadd.f32 0.0, %v2309
        %v2311 = vpop.f32.mrb[0].mxu0
        %v2312 = vpop.f32.mrb[0].mxu0
        %2313 = vdwg.mxu0
        %v2314 = vadd.f32 %v2185, %v2308
        %v2315 = vadd.f32 %v2187, %v2310
        %s2316 = scalar_lea.vmem %s6, 288
        %v2317 = vld [vmem:[%s2316] sm:$0xff]
        %v2318 = vld [vmem:[%s2316 + $0x8] sm:$0xff]
        %v2319 = vld [vmem:[%s2316 + $0x10] sm:$0xff]
        %v2320 = vld [vmem:[%s2316 + $0x18] sm:$0xff]
        %v2321 = vld [vmem:[%s2316 + $0x20] sm:$0xff]
        %v2322 = vld [vmem:[%s2316 + $0x28] sm:$0xff]
        %v2323 = vld [vmem:[%s2316 + $0x30] sm:$0xff]
        %v2324 = vld [vmem:[%s2316 + $0x38] sm:$0xff]
        %v2325 = vld [vmem:[%s2316 + $0x40] sm:$0xff]
        %v2326 = vld [vmem:[%s2316 + $0x48] sm:$0xff]
        %v2327 = vld [vmem:[%s2316 + $0x50] sm:$0xff]
        %v2328 = vld [vmem:[%s2316 + $0x58] sm:$0xff]
        %v2329 = vshrl.u32 %v1968, 16
        %v2331 = vshll.u32 %v1968, 16
        %v2333 = vrot.slane %v2331, 1
        %v2334 = vor.u32 %v2329, %v2333
        %v2347 = vunpack.c.l.b16 %v2317
        %v2348 = vunpack.c.h.b16 %v2317
        %v2349 = vunpack.c.l.b16 %v2318
        %v2350 = vunpack.c.h.b16 %v2318
        %v2351 = vunpack.c.l.b16 %v2319
        %v2352 = vunpack.c.h.b16 %v2319
        %v2353 = vunpack.c.l.b16 %v2320
        %v2354 = vunpack.c.h.b16 %v2320
        %v2355 = vunpack.c.l.b16 %v2321
        %v2356 = vunpack.c.h.b16 %v2321
        %v2357 = vunpack.c.l.b16 %v2322
        %v2358 = vunpack.c.h.b16 %v2322
        %v2359 = vunpack.c.l.b16 %v2323
        %v2360 = vunpack.c.h.b16 %v2323
        %v2361 = vunpack.c.l.b16 %v2324
        %v2362 = vunpack.c.h.b16 %v2324
        %v2363 = vunpack.c.l.b16 %v2325
        %v2364 = vunpack.c.h.b16 %v2325
        %v2365 = vunpack.c.l.b16 %v2326
        %v2366 = vunpack.c.h.b16 %v2326
        %v2367 = vunpack.c.l.b16 %v2327
        %v2368 = vunpack.c.h.b16 %v2327
        %v2369 = vunpack.c.l.b16 %v2328
        %v2370 = vunpack.c.h.b16 %v2328
        %v2371 = vpack.c.b16 %v2349, %v2347
        %v2372 = vpack.c.b16 %v2350, %v2348
        %v2373 = vpack.c.b16 %v2353, %v2351
        %v2374 = vpack.c.b16 %v2354, %v2352
        %v2375 = vpack.c.b16 %v2357, %v2355
        %v2376 = vpack.c.b16 %v2358, %v2356
        %v2377 = vpack.c.b16 %v2361, %v2359
        %v2378 = vpack.c.b16 %v2362, %v2360
        %v2379 = vpack.c.b16 %v2365, %v2363
        %v2380 = vpack.c.b16 %v2366, %v2364
        %v2381 = vpack.c.b16 %v2369, %v2367
        %v2382 = vpack.c.b16 %v2370, %v2368
        %v2396 = vsel %vm2042, %v2334, 0
        %2398 = vmatprep.subr.bf16.mxu0 %v2372
        %2399 = vmatpush1.bf16.msra.mxu0 %v2371
        %2400 = vmatprep.subr.bf16.mxu0 %v2374
        %2401 = vmatpush1.bf16.msra.mxu0 %v2373
        %2402 = vmatprep.subr.bf16.mxu0 %v2376
        %2403 = vmatpush1.bf16.msra.mxu0 %v2375
        %2404 = vmatprep.subr.bf16.mxu0 %v2378
        %2405 = vmatpush1.bf16.msra.mxu0 %v2377
        %2406 = vmatprep.subr.bf16.mxu0 %v2380
        %2407 = vmatpush1.bf16.msra.mxu0 %v2379
        %2408 = vmatprep.subr.bf16.mxu0 %v2382
        %2409 = vmatpush1.bf16.msra.mxu0 %v2381
        %2410 = vmatprep.subr.bf16.mxu0 0
        %2411 = vmatpush1.bf16.msra.mxu0 0
        %2412 = vmatprep.subr.bf16.mxu0 0
        %2413 = vmatpush1.bf16.msra.mxu0 0
        %2414 = vmatprep.subr.bf16.mxu0 0
        %2415 = vmatpush1.bf16.msra.mxu0 0
        %2416 = vmatprep.subr.bf16.mxu0 0
        %2417 = vmatpush1.bf16.msra.mxu0 0
        %2418 = vmatprep.subr.bf16.mxu0 0
        %2419 = vmatpush1.bf16.msra.mxu0 0
        %2420 = vmatprep.subr.bf16.mxu0 0
        %2421 = vmatpush1.bf16.msra.mxu0 0
        %2422 = vmatprep.subr.bf16.mxu0 0
        %2423 = vmatpush1.bf16.msra.mxu0 0
        %2424 = vmatprep.subr.bf16.mxu0 0
        %2425 = vmatpush1.bf16.msra.mxu0 0
        %2426 = vmatprep.subr.bf16.mxu0 0
        %2427 = vmatpush1.bf16.msra.mxu0 0
        %2428 = vmatprep.subr.bf16.mxu0 0
        %2429 = vmatpush1.bf16.msra.mxu0 0
        %2430 = vmatprep.mubr.bf16.mxu0 0
        %2431 = vmatmul.mubr.bf16.gmra.mrb[0].mxu0 %v2396
        %v2432 = vpop.f32.mrb[0].mxu0
        %v2433 = vadd.f32 0.0, %v2432
        %v2434 = vpop.f32.mrb[0].mxu0
        %v2435 = vadd.f32 0.0, %v2434
        %v2436 = vpop.f32.mrb[0].mxu0
        %v2437 = vpop.f32.mrb[0].mxu0
        %2438 = vdwg.mxu0
        %v2439 = vadd.f32 %v2314, %v2433
        %v2440 = vadd.f32 %v2315, %v2435
        %s2441 = scalar_lea.vmem %s6, 384
        %v2442 = vld [vmem:[%s2441] sm:$0xff]
        %v2443 = vld [vmem:[%s2441 + $0x8] sm:$0xff]
        %v2444 = vld [vmem:[%s2441 + $0x10] sm:$0xff]
        %v2445 = vld [vmem:[%s2441 + $0x18] sm:$0xff]
        %v2446 = vld [vmem:[%s2441 + $0x20] sm:$0xff]
        %v2447 = vld [vmem:[%s2441 + $0x28] sm:$0xff]
        %v2448 = vld [vmem:[%s2441 + $0x30] sm:$0xff]
        %v2449 = vld [vmem:[%s2441 + $0x38] sm:$0xff]
        %v2450 = vld [vmem:[%s2441 + $0x40] sm:$0xff]
        %v2451 = vld [vmem:[%s2441 + $0x48] sm:$0xff]
        %v2452 = vld [vmem:[%s2441 + $0x50] sm:$0xff]
        %v2453 = vld [vmem:[%s2441 + $0x58] sm:$0xff]
        %v2455 = vrot.slane %v1955, 1
        %v2468 = vunpack.c.l.b16 %v2442
        %v2469 = vunpack.c.h.b16 %v2442
        %v2470 = vunpack.c.l.b16 %v2443
        %v2471 = vunpack.c.h.b16 %v2443
        %v2472 = vunpack.c.l.b16 %v2444
        %v2473 = vunpack.c.h.b16 %v2444
        %v2474 = vunpack.c.l.b16 %v2445
        %v2475 = vunpack.c.h.b16 %v2445
        %v2476 = vunpack.c.l.b16 %v2446
        %v2477 = vunpack.c.h.b16 %v2446
        %v2478 = vunpack.c.l.b16 %v2447
        %v2479 = vunpack.c.h.b16 %v2447
        %v2480 = vunpack.c.l.b16 %v2448
        %v2481 = vunpack.c.h.b16 %v2448
        %v2482 = vunpack.c.l.b16 %v2449
        %v2483 = vunpack.c.h.b16 %v2449
        %v2484 = vunpack.c.l.b16 %v2450
        %v2485 = vunpack.c.h.b16 %v2450
        %v2486 = vunpack.c.l.b16 %v2451
        %v2487 = vunpack.c.h.b16 %v2451
        %v2488 = vunpack.c.l.b16 %v2452
        %v2489 = vunpack.c.h.b16 %v2452
        %v2490 = vunpack.c.l.b16 %v2453
        %v2491 = vunpack.c.h.b16 %v2453
        %v2492 = vpack.c.b16 %v2470, %v2468
        %v2493 = vpack.c.b16 %v2471, %v2469
        %v2494 = vpack.c.b16 %v2474, %v2472
        %v2495 = vpack.c.b16 %v2475, %v2473
        %v2496 = vpack.c.b16 %v2478, %v2476
        %v2497 = vpack.c.b16 %v2479, %v2477
        %v2498 = vpack.c.b16 %v2482, %v2480
        %v2499 = vpack.c.b16 %v2483, %v2481
        %v2500 = vpack.c.b16 %v2486, %v2484
        %v2501 = vpack.c.b16 %v2487, %v2485
        %v2502 = vpack.c.b16 %v2490, %v2488
        %v2503 = vpack.c.b16 %v2491, %v2489
        %v2517 = vsel %vm2042, %v2455, 0
        %2519 = vmatprep.subr.bf16.mxu0 %v2493
        %2520 = vmatpush1.bf16.msra.mxu0 %v2492
        %2521 = vmatprep.subr.bf16.mxu0 %v2495
        %2522 = vmatpush1.bf16.msra.mxu0 %v2494
        %2523 = vmatprep.subr.bf16.mxu0 %v2497
        %2524 = vmatpush1.bf16.msra.mxu0 %v2496
        %2525 = vmatprep.subr.bf16.mxu0 %v2499
        %2526 = vmatpush1.bf16.msra.mxu0 %v2498
        %2527 = vmatprep.subr.bf16.mxu0 %v2501
        %2528 = vmatpush1.bf16.msra.mxu0 %v2500
        %2529 = vmatprep.subr.bf16.mxu0 %v2503
        %2530 = vmatpush1.bf16.msra.mxu0 %v2502
        %2531 = vmatprep.subr.bf16.mxu0 0
        %2532 = vmatpush1.bf16.msra.mxu0 0
        %2533 = vmatprep.subr.bf16.mxu0 0
        %2534 = vmatpush1.bf16.msra.mxu0 0
        %2535 = vmatprep.subr.bf16.mxu0 0
        %2536 = vmatpush1.bf16.msra.mxu0 0
        %2537 = vmatprep.subr.bf16.mxu0 0
        %2538 = vmatpush1.bf16.msra.mxu0 0
        %2539 = vmatprep.subr.bf16.mxu0 0
        %2540 = vmatpush1.bf16.msra.mxu0 0
        %2541 = vmatprep.subr.bf16.mxu0 0
        %2542 = vmatpush1.bf16.msra.mxu0 0
        %2543 = vmatprep.subr.bf16.mxu0 0
        %2544 = vmatpush1.bf16.msra.mxu0 0
        %2545 = vmatprep.subr.bf16.mxu0 0
        %2546 = vmatpush1.bf16.msra.mxu0 0
        %2547 = vmatprep.subr.bf16.mxu0 0
        %2548 = vmatpush1.bf16.msra.mxu0 0
        %2549 = vmatprep.subr.bf16.mxu0 0
        %2550 = vmatpush1.bf16.msra.mxu0 0
        %2551 = vmatprep.mubr.bf16.mxu0 0
        %2552 = vmatmul.mubr.bf16.gmra.mrb[0].mxu0 %v2517
        %v2553 = vpop.f32.mrb[0].mxu0
        %v2554 = vadd.f32 0.0, %v2553
        %v2555 = vpop.f32.mrb[0].mxu0
        %v2556 = vadd.f32 0.0, %v2555
        %v2557 = vpop.f32.mrb[0].mxu0
        %v2558 = vpop.f32.mrb[0].mxu0
        %2559 = vdwg.mxu0
        %v2560 = vadd.f32 %v2439, %v2554
        %v2561 = vadd.f32 %v2440, %v2556
        %v2562 = vld [vmem:[%s7] sm:$0x3]
        %v2564 = vlaneseq
        %v2565 = vshrl.u32 %v2564, 7
        %v2566 = vsub.s32 0, %v2565
        %v2567 = vrot.slane %v2562, %v2566
        %v2568 = vlaneseq
        %v2569 = vshrl.u32 %v2568, 7
        %v2570 = vsub.s32 1, %v2569
        %v2571 = vrot.slane %v2562, %v2570
        %v2574 = vadd.f32 %v2560, %v2567
        %v2575 = vadd.f32 %v2561, %v2571
        %v2576 = vmax.f32 %v2574, 0.0
        %v2577 = vmax.f32 %v2575, 0.0
        %v2578 = vmax.f32 %v2576, %v2577
        %2579 = vmatprep.subr.bf16.mxu0 %v2019
        %2580 = vmatpush1.bf16.msra.mxu0 %v2018
        %2581 = vmatprep.subr.bf16.mxu0 %v2021
        %2582 = vmatpush1.bf16.msra.mxu0 %v2020
        %2583 = vmatprep.subr.bf16.mxu0 %v2023
        %2584 = vmatpush1.bf16.msra.mxu0 %v2022
        %2585 = vmatprep.subr.bf16.mxu0 %v2025
        %2586 = vmatpush1.bf16.msra.mxu0 %v2024
        %2587 = vmatprep.subr.bf16.mxu0 %v2027
        %2588 = vmatpush1.bf16.msra.mxu0 %v2026
        %2589 = vmatprep.subr.bf16.mxu0 %v2029
        %2590 = vmatpush1.bf16.msra.mxu0 %v2028
        %2591 = vmatprep.subr.bf16.mxu0 0
        %2592 = vmatpush1.bf16.msra.mxu0 0
        %2593 = vmatprep.subr.bf16.mxu0 0
        %2594 = vmatpush1.bf16.msra.mxu0 0
        %2595 = vmatprep.subr.bf16.mxu0 0
        %2596 = vmatpush1.bf16.msra.mxu0 0
        %2597 = vmatprep.subr.bf16.mxu0 0
        %2598 = vmatpush1.bf16.msra.mxu0 0
        %2599 = vmatprep.subr.bf16.mxu0 0
        %2600 = vmatpush1.bf16.msra.mxu0 0
        %2601 = vmatprep.subr.bf16.mxu0 0
        %2602 = vmatpush1.bf16.msra.mxu0 0
        %2603 = vmatprep.subr.bf16.mxu0 0
        %2604 = vmatpush1.bf16.msra.mxu0 0
        %2605 = vmatprep.subr.bf16.mxu0 0
        %2606 = vmatpush1.bf16.msra.mxu0 0
        %2607 = vmatprep.subr.bf16.mxu0 0
        %2608 = vmatpush1.bf16.msra.mxu0 0
        %2609 = vmatprep.subr.bf16.mxu0 0
        %2610 = vmatpush1.bf16.msra.mxu0 0
        %2611 = vmatprep.mubr.bf16.mxu0 0
        %2612 = vmatmul.mubr.bf16.gmra.mrb[0].mxu0 %v2271
        %v2613 = vpop.f32.mrb[0].mxu0
        %v2614 = vadd.f32 0.0, %v2613
        %v2615 = vpop.f32.mrb[0].mxu0
        %v2616 = vadd.f32 0.0, %v2615
        %v2617 = vpop.f32.mrb[0].mxu0
        %v2618 = vpop.f32.mrb[0].mxu0
        %2619 = vdwg.mxu0
        %2620 = vmatprep.subr.bf16.mxu0 %v2124
        %2621 = vmatpush1.bf16.msra.mxu0 %v2123
        %2622 = vmatprep.subr.bf16.mxu0 %v2126
        %2623 = vmatpush1.bf16.msra.mxu0 %v2125
        %2624 = vmatprep.subr.bf16.mxu0 %v2128
        %2625 = vmatpush1.bf16.msra.mxu0 %v2127
        %2626 = vmatprep.subr.bf16.mxu0 %v2130
        %2627 = vmatpush1.bf16.msra.mxu0 %v2129
        %2628 = vmatprep.subr.bf16.mxu0 %v2132
        %2629 = vmatpush1.bf16.msra.mxu0 %v2131
        %2630 = vmatprep.subr.bf16.mxu0 %v2134
        %2631 = vmatpush1.bf16.msra.mxu0 %v2133
        %2632 = vmatprep.subr.bf16.mxu0 0
        %2633 = vmatpush1.bf16.msra.mxu0 0
        %2634 = vmatprep.subr.bf16.mxu0 0
        %2635 = vmatpush1.bf16.msra.mxu0 0
        %2636 = vmatprep.subr.bf16.mxu0 0
        %2637 = vmatpush1.bf16.msra.mxu0 0
        %2638 = vmatprep.subr.bf16.mxu0 0
        %2639 = vmatpush1.bf16.msra.mxu0 0
        %2640 = vmatprep.subr.bf16.mxu0 0
        %2641 = vmatpush1.bf16.msra.mxu0 0
        %2642 = vmatprep.subr.bf16.mxu0 0
        %2643 = vmatpush1.bf16.msra.mxu0 0
        %2644 = vmatprep.subr.bf16.mxu0 0
        %2645 = vmatpush1.bf16.msra.mxu0 0
        %2646 = vmatprep.subr.bf16.mxu0 0
        %2647 = vmatpush1.bf16.msra.mxu0 0
        %2648 = vmatprep.subr.bf16.mxu0 0
        %2649 = vmatpush1.bf16.msra.mxu0 0
        %2650 = vmatprep.subr.bf16.mxu0 0
        %2651 = vmatpush1.bf16.msra.mxu0 0
        %2652 = vmatprep.mubr.bf16.mxu0 0
        %2653 = vmatmul.mubr.bf16.gmra.mrb[0].mxu0 %v2044
        %v2654 = vpop.f32.mrb[0].mxu0
        %v2655 = vadd.f32 %v2614, %v2654
        %v2656 = vpop.f32.mrb[0].mxu0
        %v2657 = vadd.f32 %v2616, %v2656
        %v2658 = vpop.f32.mrb[0].mxu0
        %v2659 = vpop.f32.mrb[0].mxu0
        %2660 = vdwg.mxu0
        %2661 = vmatprep.subr.bf16.mxu0 %v2247
        %2662 = vmatpush1.bf16.msra.mxu0 %v2246
        %2663 = vmatprep.subr.bf16.mxu0 %v2249
        %2664 = vmatpush1.bf16.msra.mxu0 %v2248
        %2665 = vmatprep.subr.bf16.mxu0 %v2251
        %2666 = vmatpush1.bf16.msra.mxu0 %v2250
        %2667 = vmatprep.subr.bf16.mxu0 %v2253
        %2668 = vmatpush1.bf16.msra.mxu0 %v2252
        %2669 = vmatprep.subr.bf16.mxu0 %v2255
        %2670 = vmatpush1.bf16.msra.mxu0 %v2254
        %2671 = vmatprep.subr.bf16.mxu0 %v2257
        %2672 = vmatpush1.bf16.msra.mxu0 %v2256
        %2673 = vmatprep.subr.bf16.mxu0 0
        %2674 = vmatpush1.bf16.msra.mxu0 0
        %2675 = vmatprep.subr.bf16.mxu0 0
        %2676 = vmatpush1.bf16.msra.mxu0 0
        %2677 = vmatprep.subr.bf16.mxu0 0
        %2678 = vmatpush1.bf16.msra.mxu0 0
        %2679 = vmatprep.subr.bf16.mxu0 0
        %2680 = vmatpush1.bf16.msra.mxu0 0
        %2681 = vmatprep.subr.bf16.mxu0 0
        %2682 = vmatpush1.bf16.msra.mxu0 0
        %2683 = vmatprep.subr.bf16.mxu0 0
        %2684 = vmatpush1.bf16.msra.mxu0 0
        %2685 = vmatprep.subr.bf16.mxu0 0
        %2686 = vmatpush1.bf16.msra.mxu0 0
        %2687 = vmatprep.subr.bf16.mxu0 0
        %2688 = vmatpush1.bf16.msra.mxu0 0
        %2689 = vmatprep.subr.bf16.mxu0 0
        %2690 = vmatpush1.bf16.msra.mxu0 0
        %2691 = vmatprep.subr.bf16.mxu0 0
        %2692 = vmatpush1.bf16.msra.mxu0 0
        %2693 = vmatprep.mubr.bf16.mxu0 0
        %2694 = vmatmul.mubr.bf16.gmra.mrb[0].mxu0 %v2396
        %v2695 = vpop.f32.mrb[0].mxu0
        %v2696 = vadd.f32 0.0, %v2695
        %v2697 = vpop.f32.mrb[0].mxu0
        %v2698 = vadd.f32 0.0, %v2697
        %v2699 = vpop.f32.mrb[0].mxu0
        %v2700 = vpop.f32.mrb[0].mxu0
        %2701 = vdwg.mxu0
        %v2702 = vadd.f32 %v2655, %v2696
        %v2703 = vadd.f32 %v2657, %v2698
        %2704 = vmatprep.subr.bf16.mxu0 %v2372
        %2705 = vmatpush1.bf16.msra.mxu0 %v2371
        %2706 = vmatprep.subr.bf16.mxu0 %v2374
        %2707 = vmatpush1.bf16.msra.mxu0 %v2373
        %2708 = vmatprep.subr.bf16.mxu0 %v2376
        %2709 = vmatpush1.bf16.msra.mxu0 %v2375
        %2710 = vmatprep.subr.bf16.mxu0 %v2378
        %2711 = vmatpush1.bf16.msra.mxu0 %v2377
        %2712 = vmatprep.subr.bf16.mxu0 %v2380
        %2713 = vmatpush1.bf16.msra.mxu0 %v2379
        %2714 = vmatprep.subr.bf16.mxu0 %v2382
        %2715 = vmatpush1.bf16.msra.mxu0 %v2381
        %2716 = vmatprep.subr.bf16.mxu0 0
        %2717 = vmatpush1.bf16.msra.mxu0 0
        %2718 = vmatprep.subr.bf16.mxu0 0
        %2719 = vmatpush1.bf16.msra.mxu0 0
        %2720 = vmatprep.subr.bf16.mxu0 0
        %2721 = vmatpush1.bf16.msra.mxu0 0
        %2722 = vmatprep.subr.bf16.mxu0 0
        %2723 = vmatpush1.bf16.msra.mxu0 0
        %2724 = vmatprep.subr.bf16.mxu0 0
        %2725 = vmatpush1.bf16.msra.mxu0 0
        %2726 = vmatprep.subr.bf16.mxu0 0
        %2727 = vmatpush1.bf16.msra.mxu0 0
        %2728 = vmatprep.subr.bf16.mxu0 0
        %2729 = vmatpush1.bf16.msra.mxu0 0
        %2730 = vmatprep.subr.bf16.mxu0 0
        %2731 = vmatpush1.bf16.msra.mxu0 0
        %2732 = vmatprep.subr.bf16.mxu0 0
        %2733 = vmatpush1.bf16.msra.mxu0 0
        %2734 = vmatprep.subr.bf16.mxu0 0
        %2735 = vmatpush1.bf16.msra.mxu0 0
        %2736 = vmatprep.mubr.bf16.mxu0 0
        %2737 = vmatmul.mubr.bf16.gmra.mrb[0].mxu0 %v2517
        %v2738 = vpop.f32.mrb[0].mxu0
        %v2739 = vadd.f32 0.0, %v2738
        %v2740 = vpop.f32.mrb[0].mxu0
        %v2741 = vadd.f32 0.0, %v2740
        %v2742 = vpop.f32.mrb[0].mxu0
        %v2743 = vpop.f32.mrb[0].mxu0
        %2744 = vdwg.mxu0
        %v2745 = vadd.f32 %v2702, %v2739
        %v2746 = vadd.f32 %v2703, %v2741
        %v2748 = vrot.slane %v1968, 1
        %v2750 = vsel %vm2042, %v2748, 0
        %2752 = vmatprep.subr.bf16.mxu0 %v2493
        %2753 = vmatpush1.bf16.msra.mxu0 %v2492
        %2754 = vmatprep.subr.bf16.mxu0 %v2495
        %2755 = vmatpush1.bf16.msra.mxu0 %v2494
        %2756 = vmatprep.subr.bf16.mxu0 %v2497
        %2757 = vmatpush1.bf16.msra.mxu0 %v2496
        %2758 = vmatprep.subr.bf16.mxu0 %v2499
        %2759 = vmatpush1.bf16.msra.mxu0 %v2498
        %2760 = vmatprep.subr.bf16.mxu0 %v2501
        %2761 = vmatpush1.bf16.msra.mxu0 %v2500
        %2762 = vmatprep.subr.bf16.mxu0 %v2503
        %2763 = vmatpush1.bf16.msra.mxu0 %v2502
        %2764 = vmatprep.subr.bf16.mxu0 0
        %2765 = vmatpush1.bf16.msra.mxu0 0
        %2766 = vmatprep.subr.bf16.mxu0 0
        %2767 = vmatpush1.bf16.msra.mxu0 0
        %2768 = vmatprep.subr.bf16.mxu0 0
        %2769 = vmatpush1.bf16.msra.mxu0 0
        %2770 = vmatprep.subr.bf16.mxu0 0
        %2771 = vmatpush1.bf16.msra.mxu0 0
        %2772 = vmatprep.subr.bf16.mxu0 0
        %2773 = vmatpush1.bf16.msra.mxu0 0
        %2774 = vmatprep.subr.bf16.mxu0 0
        %2775 = vmatpush1.bf16.msra.mxu0 0
        %2776 = vmatprep.subr.bf16.mxu0 0
        %2777 = vmatpush1.bf16.msra.mxu0 0
        %2778 = vmatprep.subr.bf16.mxu0 0
        %2779 = vmatpush1.bf16.msra.mxu0 0
        %2780 = vmatprep.subr.bf16.mxu0 0
        %2781 = vmatpush1.bf16.msra.mxu0 0
        %2782 = vmatprep.subr.bf16.mxu0 0
        %2783 = vmatpush1.bf16.msra.mxu0 0
        %2784 = vmatprep.mubr.bf16.mxu0 0
        %2785 = vmatmul.mubr.bf16.gmra.mrb[0].mxu0 %v2750
        %v2786 = vpop.f32.mrb[0].mxu0
        %v2787 = vadd.f32 0.0, %v2786
        %v2788 = vpop.f32.mrb[0].mxu0
        %v2789 = vadd.f32 0.0, %v2788
        %v2790 = vpop.f32.mrb[0].mxu0
        %v2791 = vpop.f32.mrb[0].mxu0
        %2792 = vdwg.mxu0
        %v2793 = vadd.f32 %v2745, %v2787
        %v2794 = vadd.f32 %v2746, %v2789
        %v2795 = vadd.f32 %v2793, %v2567
        %v2796 = vadd.f32 %v2794, %v2571
        %v2797 = vmax.f32 %v2795, 0.0
        %v2798 = vmax.f32 %v2796, 0.0
        %v2799 = vmax.f32 %v2797, %v2798
        %v2800 = vmax.f32 %v2578, %v2799
        %v2801 = vpack.c.bf16 %v2800, %v2800
        %v2802 = vld [vmem:[%s8] sm:$0xf]
        %v2803 = vld [vmem:[%s8 + $0x4] sm:$0xf]
        %v2804 = vld [vmem:[%s8 + $0x8] sm:$0xf]
        %v2805 = vld [vmem:[%s8 + $0xc] sm:$0xf]
        %v2806 = vld [vmem:[%s8 + $0x10] sm:$0xf]
        %v2807 = vld [vmem:[%s8 + $0x14] sm:$0xf]
        %v2808 = vld [vmem:[%s8 + $0x18] sm:$0xf]
        %v2809 = vld [vmem:[%s8 + $0x1c] sm:$0xf]
        %v2810 = vld [vmem:[%s8 + $0x20] sm:$0xf]
        %v2811 = vld [vmem:[%s8 + $0x24] sm:$0xf]
        %v2812 = vld [vmem:[%s8 + $0x28] sm:$0xf]
        %v2813 = vld [vmem:[%s8 + $0x2c] sm:$0xf]
        %s2814 = scalar_lea.vmem %s8, 48
        %v2815 = vld [vmem:[%s2814] sm:$0xf]
        %v2816 = vld [vmem:[%s2814 + $0x4] sm:$0xf]
        %v2817 = vld [vmem:[%s2814 + $0x8] sm:$0xf]
        %v2818 = vld [vmem:[%s2814 + $0xc] sm:$0xf]
        %v2819 = vld [vmem:[%s2814 + $0x10] sm:$0xf]
        %v2820 = vld [vmem:[%s2814 + $0x14] sm:$0xf]
        %v2821 = vld [vmem:[%s2814 + $0x18] sm:$0xf]
        %v2822 = vld [vmem:[%s2814 + $0x1c] sm:$0xf]
        %v2823 = vld [vmem:[%s2814 + $0x20] sm:$0xf]
        %v2824 = vld [vmem:[%s2814 + $0x24] sm:$0xf]
        %v2825 = vld [vmem:[%s2814 + $0x28] sm:$0xf]
        %v2826 = vld [vmem:[%s2814 + $0x2c] sm:$0xf]
        %v2828 = vshrl.u32 %v2801, 16
        %v2842 = vunpack.c.l.b16 %v2815
        %v2843 = vunpack.c.l.b16 %v2816
        %v2844 = vunpack.c.l.b16 %v2817
        %v2845 = vunpack.c.l.b16 %v2818
        %v2846 = vunpack.c.l.b16 %v2819
        %v2847 = vunpack.c.l.b16 %v2820
        %v2848 = vunpack.c.l.b16 %v2821
        %v2849 = vunpack.c.l.b16 %v2822
        %v2850 = vunpack.c.l.b16 %v2823
        %v2851 = vunpack.c.l.b16 %v2824
        %v2852 = vunpack.c.l.b16 %v2825
        %v2853 = vunpack.c.l.b16 %v2826
        %v2854 = vpack.c.b16 %v2843, %v2842
        %v2855 = vpack.c.b16 %v2845, %v2844
        %v2856 = vpack.c.b16 %v2847, %v2846
        %v2857 = vpack.c.b16 %v2849, %v2848
        %v2858 = vpack.c.b16 %v2851, %v2850
        %v2859 = vpack.c.b16 %v2853, %v2852
        %v2867 = vsel %vm2042, %v2828, 0
        %2869 = vmatprep.subr.bf16.mxu0 0
        %2870 = vmatpush1.bf16.msra.mxu0 %v2854
        %2871 = vmatprep.subr.bf16.mxu0 0
        %2872 = vmatpush1.bf16.msra.mxu0 %v2855
        %2873 = vmatprep.subr.bf16.mxu0 0
        %2874 = vmatpush1.bf16.msra.mxu0 %v2856
        %2875 = vmatprep.subr.bf16.mxu0 0
        %2876 = vmatpush1.bf16.msra.mxu0 %v2857
        %2877 = vmatprep.subr.bf16.mxu0 0
        %2878 = vmatpush1.bf16.msra.mxu0 %v2858
        %2879 = vmatprep.subr.bf16.mxu0 0
        %2880 = vmatpush1.bf16.msra.mxu0 %v2859
        %2881 = vmatprep.subr.bf16.mxu0 0
        %2882 = vmatpush1.bf16.msra.mxu0 0
        %2883 = vmatprep.subr.bf16.mxu0 0
        %2884 = vmatpush1.bf16.msra.mxu0 0
        %2885 = vmatprep.subr.bf16.mxu0 0
        %2886 = vmatpush1.bf16.msra.mxu0 0
        %2887 = vmatprep.subr.bf16.mxu0 0
        %2888 = vmatpush1.bf16.msra.mxu0 0
        %2889 = vmatprep.subr.bf16.mxu0 0
        %2890 = vmatpush1.bf16.msra.mxu0 0
        %2891 = vmatprep.subr.bf16.mxu0 0
        %2892 = vmatpush1.bf16.msra.mxu0 0
        %2893 = vmatprep.subr.bf16.mxu0 0
        %2894 = vmatpush1.bf16.msra.mxu0 0
        %2895 = vmatprep.subr.bf16.mxu0 0
        %2896 = vmatpush1.bf16.msra.mxu0 0
        %2897 = vmatprep.subr.bf16.mxu0 0
        %2898 = vmatpush1.bf16.msra.mxu0 0
        %2899 = vmatprep.subr.bf16.mxu0 0
        %2900 = vmatpush1.bf16.msra.mxu0 0
        %2901 = vmatprep.mubr.bf16.mxu0 0
        %2902 = vmatmul.mubr.bf16.gmra.mrb[0].mxu0 %v2867
        %v2903 = vpop.f32.mrb[0].mxu0
        %v2904 = vadd.f32 0.0, %v2903
        %v2905 = vpop.f32.mrb[0].mxu0
        %v2906 = vpop.f32.mrb[0].mxu0
        %v2907 = vpop.f32.mrb[0].mxu0
        %2908 = vdwg.mxu0
        %v2921 = vunpack.c.l.b16 %v2802
        %v2922 = vunpack.c.l.b16 %v2803
        %v2923 = vunpack.c.l.b16 %v2804
        %v2924 = vunpack.c.l.b16 %v2805
        %v2925 = vunpack.c.l.b16 %v2806
        %v2926 = vunpack.c.l.b16 %v2807
        %v2927 = vunpack.c.l.b16 %v2808
        %v2928 = vunpack.c.l.b16 %v2809
        %v2929 = vunpack.c.l.b16 %v2810
        %v2930 = vunpack.c.l.b16 %v2811
        %v2931 = vunpack.c.l.b16 %v2812
        %v2932 = vunpack.c.l.b16 %v2813
        %v2933 = vpack.c.b16 %v2922, %v2921
        %v2934 = vpack.c.b16 %v2924, %v2923
        %v2935 = vpack.c.b16 %v2926, %v2925
        %v2936 = vpack.c.b16 %v2928, %v2927
        %v2937 = vpack.c.b16 %v2930, %v2929
        %v2938 = vpack.c.b16 %v2932, %v2931
        %v2945 = vsel %vm2042, %v2801, 0
        %2947 = vmatprep.subr.bf16.mxu0 0
        %2948 = vmatpush1.bf16.msra.mxu0 %v2933
        %2949 = vmatprep.subr.bf16.mxu0 0
        %2950 = vmatpush1.bf16.msra.mxu0 %v2934
        %2951 = vmatprep.subr.bf16.mxu0 0
        %2952 = vmatpush1.bf16.msra.mxu0 %v2935
        %2953 = vmatprep.subr.bf16.mxu0 0
        %2954 = vmatpush1.bf16.msra.mxu0 %v2936
        %2955 = vmatprep.subr.bf16.mxu0 0
        %2956 = vmatpush1.bf16.msra.mxu0 %v2937
        %2957 = vmatprep.subr.bf16.mxu0 0
        %2958 = vmatpush1.bf16.msra.mxu0 %v2938
        %2959 = vmatprep.subr.bf16.mxu0 0
        %2960 = vmatpush1.bf16.msra.mxu0 0
        %2961 = vmatprep.subr.bf16.mxu0 0
        %2962 = vmatpush1.bf16.msra.mxu0 0
        %2963 = vmatprep.subr.bf16.mxu0 0
        %2964 = vmatpush1.bf16.msra.mxu0 0
        %2965 = vmatprep.subr.bf16.mxu0 0
        %2966 = vmatpush1.bf16.msra.mxu0 0
        %2967 = vmatprep.subr.bf16.mxu0 0
        %2968 = vmatpush1.bf16.msra.mxu0 0
        %2969 = vmatprep.subr.bf16.mxu0 0
        %2970 = vmatpush1.bf16.msra.mxu0 0
        %2971 = vmatprep.subr.bf16.mxu0 0
        %2972 = vmatpush1.bf16.msra.mxu0 0
        %2973 = vmatprep.subr.bf16.mxu0 0
        %2974 = vmatpush1.bf16.msra.mxu0 0
        %2975 = vmatprep.subr.bf16.mxu0 0
        %2976 = vmatpush1.bf16.msra.mxu0 0
        %2977 = vmatprep.subr.bf16.mxu0 0
        %2978 = vmatpush1.bf16.msra.mxu0 0
        %2979 = vmatprep.mubr.bf16.mxu0 0
        %2980 = vmatmul.mubr.bf16.gmra.mrb[0].mxu0 %v2945
        %v2981 = vpop.f32.mrb[0].mxu0
        %v2982 = vadd.f32 %v2904, %v2981
        %v2983 = vpop.f32.mrb[0].mxu0
        %v2984 = vpop.f32.mrb[0].mxu0
        %v2985 = vpop.f32.mrb[0].mxu0
        %2986 = vdwg.mxu0
        %s2987 = scalar_lea.vmem %s8, 96
        %v2988 = vld [vmem:[%s2987] sm:$0xf]
        %v2989 = vld [vmem:[%s2987 + $0x4] sm:$0xf]
        %v2990 = vld [vmem:[%s2987 + $0x8] sm:$0xf]
        %v2991 = vld [vmem:[%s2987 + $0xc] sm:$0xf]
        %v2992 = vld [vmem:[%s2987 + $0x10] sm:$0xf]
        %v2993 = vld [vmem:[%s2987 + $0x14] sm:$0xf]
        %v2994 = vld [vmem:[%s2987 + $0x18] sm:$0xf]
        %v2995 = vld [vmem:[%s2987 + $0x1c] sm:$0xf]
        %v2996 = vld [vmem:[%s2987 + $0x20] sm:$0xf]
        %v2997 = vld [vmem:[%s2987 + $0x24] sm:$0xf]
        %v2998 = vld [vmem:[%s2987 + $0x28] sm:$0xf]
        %v2999 = vld [vmem:[%s2987 + $0x2c] sm:$0xf]
        %v3001 = vrot.slane %v2801, 1
        %v3014 = vunpack.c.l.b16 %v2988
        %v3015 = vunpack.c.l.b16 %v2989
        %v3016 = vunpack.c.l.b16 %v2990
        %v3017 = vunpack.c.l.b16 %v2991
        %v3018 = vunpack.c.l.b16 %v2992
        %v3019 = vunpack.c.l.b16 %v2993
        %v3020 = vunpack.c.l.b16 %v2994
        %v3021 = vunpack.c.l.b16 %v2995
        %v3022 = vunpack.c.l.b16 %v2996
        %v3023 = vunpack.c.l.b16 %v2997
        %v3024 = vunpack.c.l.b16 %v2998
        %v3025 = vunpack.c.l.b16 %v2999
        %v3026 = vpack.c.b16 %v3015, %v3014
        %v3027 = vpack.c.b16 %v3017, %v3016
        %v3028 = vpack.c.b16 %v3019, %v3018
        %v3029 = vpack.c.b16 %v3021, %v3020
        %v3030 = vpack.c.b16 %v3023, %v3022
        %v3031 = vpack.c.b16 %v3025, %v3024
        %v3039 = vsel %vm2042, %v3001, 0
        %3041 = vmatprep.subr.bf16.mxu0 0
        %3042 = vmatpush1.bf16.msra.mxu0 %v3026
        %3043 = vmatprep.subr.bf16.mxu0 0
        %3044 = vmatpush1.bf16.msra.mxu0 %v3027
        %3045 = vmatprep.subr.bf16.mxu0 0
        %3046 = vmatpush1.bf16.msra.mxu0 %v3028
        %3047 = vmatprep.subr.bf16.mxu0 0
        %3048 = vmatpush1.bf16.msra.mxu0 %v3029
        %3049 = vmatprep.subr.bf16.mxu0 0
        %3050 = vmatpush1.bf16.msra.mxu0 %v3030
        %3051 = vmatprep.subr.bf16.mxu0 0
        %3052 = vmatpush1.bf16.msra.mxu0 %v3031
        %3053 = vmatprep.subr.bf16.mxu0 0
        %3054 = vmatpush1.bf16.msra.mxu0 0
        %3055 = vmatprep.subr.bf16.mxu0 0
        %3056 = vmatpush1.bf16.msra.mxu0 0
        %3057 = vmatprep.subr.bf16.mxu0 0
        %3058 = vmatpush1.bf16.msra.mxu0 0
        %3059 = vmatprep.subr.bf16.mxu0 0
        %3060 = vmatpush1.bf16.msra.mxu0 0
        %3061 = vmatprep.subr.bf16.mxu0 0
        %3062 = vmatpush1.bf16.msra.mxu0 0
        %3063 = vmatprep.subr.bf16.mxu0 0
        %3064 = vmatpush1.bf16.msra.mxu0 0
        %3065 = vmatprep.subr.bf16.mxu0 0
        %3066 = vmatpush1.bf16.msra.mxu0 0
        %3067 = vmatprep.subr.bf16.mxu0 0
        %3068 = vmatpush1.bf16.msra.mxu0 0
        %3069 = vmatprep.subr.bf16.mxu0 0
        %3070 = vmatpush1.bf16.msra.mxu0 0
        %3071 = vmatprep.subr.bf16.mxu0 0
        %3072 = vmatpush1.bf16.msra.mxu0 0
        %3073 = vmatprep.mubr.bf16.mxu0 0
        %3074 = vmatmul.mubr.bf16.gmra.mrb[0].mxu0 %v3039
        %v3075 = vpop.f32.mrb[0].mxu0
        %v3076 = vadd.f32 0.0, %v3075
        %v3077 = vpop.f32.mrb[0].mxu0
        %v3078 = vpop.f32.mrb[0].mxu0
        %v3079 = vpop.f32.mrb[0].mxu0
        %3080 = vdwg.mxu0
        %v3081 = vadd.f32 %v2982, %v3076
        %s3082 = scalar_lea.vmem %s8, 144
        %v3083 = vld [vmem:[%s3082] sm:$0xf]
        %v3084 = vld [vmem:[%s3082 + $0x4] sm:$0xf]
        %v3085 = vld [vmem:[%s3082 + $0x8] sm:$0xf]
        %v3086 = vld [vmem:[%s3082 + $0xc] sm:$0xf]
        %v3087 = vld [vmem:[%s3082 + $0x10] sm:$0xf]
        %v3088 = vld [vmem:[%s3082 + $0x14] sm:$0xf]
        %v3089 = vld [vmem:[%s3082 + $0x18] sm:$0xf]
        %v3090 = vld [vmem:[%s3082 + $0x1c] sm:$0xf]
        %v3091 = vld [vmem:[%s3082 + $0x20] sm:$0xf]
        %v3092 = vld [vmem:[%s3082 + $0x24] sm:$0xf]
        %v3093 = vld [vmem:[%s3082 + $0x28] sm:$0xf]
        %v3094 = vld [vmem:[%s3082 + $0x2c] sm:$0xf]
        %v3095 = vrot.slane %v2828, 1
        %v3108 = vunpack.c.l.b16 %v3083
        %v3109 = vunpack.c.l.b16 %v3084
        %v3110 = vunpack.c.l.b16 %v3085
        %v3111 = vunpack.c.l.b16 %v3086
        %v3112 = vunpack.c.l.b16 %v3087
        %v3113 = vunpack.c.l.b16 %v3088
        %v3114 = vunpack.c.l.b16 %v3089
        %v3115 = vunpack.c.l.b16 %v3090
        %v3116 = vunpack.c.l.b16 %v3091
        %v3117 = vunpack.c.l.b16 %v3092
        %v3118 = vunpack.c.l.b16 %v3093
        %v3119 = vunpack.c.l.b16 %v3094
        %v3120 = vpack.c.b16 %v3109, %v3108
        %v3121 = vpack.c.b16 %v3111, %v3110
        %v3122 = vpack.c.b16 %v3113, %v3112
        %v3123 = vpack.c.b16 %v3115, %v3114
        %v3124 = vpack.c.b16 %v3117, %v3116
        %v3125 = vpack.c.b16 %v3119, %v3118
        %v3133 = vsel %vm2042, %v3095, 0
        %3135 = vmatprep.subr.bf16.mxu0 0
        %3136 = vmatpush1.bf16.msra.mxu0 %v3120
        %3137 = vmatprep.subr.bf16.mxu0 0
        %3138 = vmatpush1.bf16.msra.mxu0 %v3121
        %3139 = vmatprep.subr.bf16.mxu0 0
        %3140 = vmatpush1.bf16.msra.mxu0 %v3122
        %3141 = vmatprep.subr.bf16.mxu0 0
        %3142 = vmatpush1.bf16.msra.mxu0 %v3123
        %3143 = vmatprep.subr.bf16.mxu0 0
        %3144 = vmatpush1.bf16.msra.mxu0 %v3124
        %3145 = vmatprep.subr.bf16.mxu0 0
        %3146 = vmatpush1.bf16.msra.mxu0 %v3125
        %3147 = vmatprep.subr.bf16.mxu0 0
        %3148 = vmatpush1.bf16.msra.mxu0 0
        %3149 = vmatprep.subr.bf16.mxu0 0
        %3150 = vmatpush1.bf16.msra.mxu0 0
        %3151 = vmatprep.subr.bf16.mxu0 0
        %3152 = vmatpush1.bf16.msra.mxu0 0
        %3153 = vmatprep.subr.bf16.mxu0 0
        %3154 = vmatpush1.bf16.msra.mxu0 0
        %3155 = vmatprep.subr.bf16.mxu0 0
        %3156 = vmatpush1.bf16.msra.mxu0 0
        %3157 = vmatprep.subr.bf16.mxu0 0
        %3158 = vmatpush1.bf16.msra.mxu0 0
        %3159 = vmatprep.subr.bf16.mxu0 0
        %3160 = vmatpush1.bf16.msra.mxu0 0
        %3161 = vmatprep.subr.bf16.mxu0 0
        %3162 = vmatpush1.bf16.msra.mxu0 0
        %3163 = vmatprep.subr.bf16.mxu0 0
        %3164 = vmatpush1.bf16.msra.mxu0 0
        %3165 = vmatprep.subr.bf16.mxu0 0
        %3166 = vmatpush1.bf16.msra.mxu0 0
        %3167 = vmatprep.mubr.bf16.mxu0 0
        %3168 = vmatmul.mubr.bf16.gmra.mrb[0].mxu0 %v3133
        %v3169 = vpop.f32.mrb[0].mxu0
        %v3170 = vadd.f32 0.0, %v3169
        %v3171 = vpop.f32.mrb[0].mxu0
        %v3172 = vpop.f32.mrb[0].mxu0
        %v3173 = vpop.f32.mrb[0].mxu0
        %3174 = vdwg.mxu0
        %v3175 = vadd.f32 %v3081, %v3170
        %s3176 = scalar_lea.vmem %s8, 192
        %v3177 = vld [vmem:[%s3176] sm:$0xf]
        %v3178 = vld [vmem:[%s3176 + $0x4] sm:$0xf]
        %v3179 = vld [vmem:[%s3176 + $0x8] sm:$0xf]
        %v3180 = vld [vmem:[%s3176 + $0xc] sm:$0xf]
        %v3181 = vld [vmem:[%s3176 + $0x10] sm:$0xf]
        %v3182 = vld [vmem:[%s3176 + $0x14] sm:$0xf]
        %v3183 = vld [vmem:[%s3176 + $0x18] sm:$0xf]
        %v3184 = vld [vmem:[%s3176 + $0x1c] sm:$0xf]
        %v3185 = vld [vmem:[%s3176 + $0x20] sm:$0xf]
        %v3186 = vld [vmem:[%s3176 + $0x24] sm:$0xf]
        %v3187 = vld [vmem:[%s3176 + $0x28] sm:$0xf]
        %v3188 = vld [vmem:[%s3176 + $0x2c] sm:$0xf]
        %v3189 = vrot.slane %v2801, 2
        %v3202 = vunpack.c.l.b16 %v3177
        %v3203 = vunpack.c.l.b16 %v3178
        %v3204 = vunpack.c.l.b16 %v3179
        %v3205 = vunpack.c.l.b16 %v3180
        %v3206 = vunpack.c.l.b16 %v3181
        %v3207 = vunpack.c.l.b16 %v3182
        %v3208 = vunpack.c.l.b16 %v3183
        %v3209 = vunpack.c.l.b16 %v3184
        %v3210 = vunpack.c.l.b16 %v3185
        %v3211 = vunpack.c.l.b16 %v3186
        %v3212 = vunpack.c.l.b16 %v3187
        %v3213 = vunpack.c.l.b16 %v3188
        %v3214 = vpack.c.b16 %v3203, %v3202
        %v3215 = vpack.c.b16 %v3205, %v3204
        %v3216 = vpack.c.b16 %v3207, %v3206
        %v3217 = vpack.c.b16 %v3209, %v3208
        %v3218 = vpack.c.b16 %v3211, %v3210
        %v3219 = vpack.c.b16 %v3213, %v3212
        %v3227 = vsel %vm2042, %v3189, 0
        %3229 = vmatprep.subr.bf16.mxu0 0
        %3230 = vmatpush1.bf16.msra.mxu0 %v3214
        %3231 = vmatprep.subr.bf16.mxu0 0
        %3232 = vmatpush1.bf16.msra.mxu0 %v3215
        %3233 = vmatprep.subr.bf16.mxu0 0
        %3234 = vmatpush1.bf16.msra.mxu0 %v3216
        %3235 = vmatprep.subr.bf16.mxu0 0
        %3236 = vmatpush1.bf16.msra.mxu0 %v3217
        %3237 = vmatprep.subr.bf16.mxu0 0
        %3238 = vmatpush1.bf16.msra.mxu0 %v3218
        %3239 = vmatprep.subr.bf16.mxu0 0
        %3240 = vmatpush1.bf16.msra.mxu0 %v3219
        %3241 = vmatprep.subr.bf16.mxu0 0
        %3242 = vmatpush1.bf16.msra.mxu0 0
        %3243 = vmatprep.subr.bf16.mxu0 0
        %3244 = vmatpush1.bf16.msra.mxu0 0
        %3245 = vmatprep.subr.bf16.mxu0 0
        %3246 = vmatpush1.bf16.msra.mxu0 0
        %3247 = vmatprep.subr.bf16.mxu0 0
        %3248 = vmatpush1.bf16.msra.mxu0 0
        %3249 = vmatprep.subr.bf16.mxu0 0
        %3250 = vmatpush1.bf16.msra.mxu0 0
        %3251 = vmatprep.subr.bf16.mxu0 0
        %3252 = vmatpush1.bf16.msra.mxu0 0
        %3253 = vmatprep.subr.bf16.mxu0 0
        %3254 = vmatpush1.bf16.msra.mxu0 0
        %3255 = vmatprep.subr.bf16.mxu0 0
        %3256 = vmatpush1.bf16.msra.mxu0 0
        %3257 = vmatprep.subr.bf16.mxu0 0
        %3258 = vmatpush1.bf16.msra.mxu0 0
        %3259 = vmatprep.subr.bf16.mxu0 0
        %3260 = vmatpush1.bf16.msra.mxu0 0
        %3261 = vmatprep.mubr.bf16.mxu0 0
        %3262 = vmatmul.mubr.bf16.gmra.mrb[0].mxu0 %v3227
        %v3263 = vpop.f32.mrb[0].mxu0
        %v3264 = vadd.f32 0.0, %v3263
        %v3265 = vpop.f32.mrb[0].mxu0
        %v3266 = vpop.f32.mrb[0].mxu0
        %v3267 = vpop.f32.mrb[0].mxu0
        %3268 = vdwg.mxu0
        %v3269 = vadd.f32 %v3175, %v3264
        %s3270 = scalar_lea.vmem %s8, 240
        %v3271 = vld [vmem:[%s3270] sm:$0xf]
        %v3272 = vld [vmem:[%s3270 + $0x4] sm:$0xf]
        %v3273 = vld [vmem:[%s3270 + $0x8] sm:$0xf]
        %v3274 = vld [vmem:[%s3270 + $0xc] sm:$0xf]
        %v3275 = vld [vmem:[%s3270 + $0x10] sm:$0xf]
        %v3276 = vld [vmem:[%s3270 + $0x14] sm:$0xf]
        %v3277 = vld [vmem:[%s3270 + $0x18] sm:$0xf]
        %v3278 = vld [vmem:[%s3270 + $0x1c] sm:$0xf]
        %v3279 = vld [vmem:[%s3270 + $0x20] sm:$0xf]
        %v3280 = vld [vmem:[%s3270 + $0x24] sm:$0xf]
        %v3281 = vld [vmem:[%s3270 + $0x28] sm:$0xf]
        %v3282 = vld [vmem:[%s3270 + $0x2c] sm:$0xf]
        %v3283 = vrot.slane %v2828, 2
        %v3296 = vunpack.c.l.b16 %v3271
        %v3297 = vunpack.c.l.b16 %v3272
        %v3298 = vunpack.c.l.b16 %v3273
        %v3299 = vunpack.c.l.b16 %v3274
        %v3300 = vunpack.c.l.b16 %v3275
        %v3301 = vunpack.c.l.b16 %v3276
        %v3302 = vunpack.c.l.b16 %v3277
        %v3303 = vunpack.c.l.b16 %v3278
        %v3304 = vunpack.c.l.b16 %v3279
        %v3305 = vunpack.c.l.b16 %v3280
        %v3306 = vunpack.c.l.b16 %v3281
        %v3307 = vunpack.c.l.b16 %v3282
        %v3308 = vpack.c.b16 %v3297, %v3296
        %v3309 = vpack.c.b16 %v3299, %v3298
        %v3310 = vpack.c.b16 %v3301, %v3300
        %v3311 = vpack.c.b16 %v3303, %v3302
        %v3312 = vpack.c.b16 %v3305, %v3304
        %v3313 = vpack.c.b16 %v3307, %v3306
        %v3321 = vsel %vm2042, %v3283, 0
        %3323 = vmatprep.subr.bf16.mxu0 0
        %3324 = vmatpush1.bf16.msra.mxu0 %v3308
        %3325 = vmatprep.subr.bf16.mxu0 0
        %3326 = vmatpush1.bf16.msra.mxu0 %v3309
        %3327 = vmatprep.subr.bf16.mxu0 0
        %3328 = vmatpush1.bf16.msra.mxu0 %v3310
        %3329 = vmatprep.subr.bf16.mxu0 0
        %3330 = vmatpush1.bf16.msra.mxu0 %v3311
        %3331 = vmatprep.subr.bf16.mxu0 0
        %3332 = vmatpush1.bf16.msra.mxu0 %v3312
        %3333 = vmatprep.subr.bf16.mxu0 0
        %3334 = vmatpush1.bf16.msra.mxu0 %v3313
        %3335 = vmatprep.subr.bf16.mxu0 0
        %3336 = vmatpush1.bf16.msra.mxu0 0
        %3337 = vmatprep.subr.bf16.mxu0 0
        %3338 = vmatpush1.bf16.msra.mxu0 0
        %3339 = vmatprep.subr.bf16.mxu0 0
        %3340 = vmatpush1.bf16.msra.mxu0 0
        %3341 = vmatprep.subr.bf16.mxu0 0
        %3342 = vmatpush1.bf16.msra.mxu0 0
        %3343 = vmatprep.subr.bf16.mxu0 0
        %3344 = vmatpush1.bf16.msra.mxu0 0
        %3345 = vmatprep.subr.bf16.mxu0 0
        %3346 = vmatpush1.bf16.msra.mxu0 0
        %3347 = vmatprep.subr.bf16.mxu0 0
        %3348 = vmatpush1.bf16.msra.mxu0 0
        %3349 = vmatprep.subr.bf16.mxu0 0
        %3350 = vmatpush1.bf16.msra.mxu0 0
        %3351 = vmatprep.subr.bf16.mxu0 0
        %3352 = vmatpush1.bf16.msra.mxu0 0
        %3353 = vmatprep.subr.bf16.mxu0 0
        %3354 = vmatpush1.bf16.msra.mxu0 0
        %3355 = vmatprep.mubr.bf16.mxu0 0
        %3356 = vmatmul.mubr.bf16.gmra.mrb[0].mxu0 %v3321
        %v3357 = vpop.f32.mrb[0].mxu0
        %v3358 = vadd.f32 0.0, %v3357
        %v3359 = vpop.f32.mrb[0].mxu0
        %v3360 = vpop.f32.mrb[0].mxu0
        %v3361 = vpop.f32.mrb[0].mxu0
        %3362 = vdwg.mxu0
        %v3363 = vadd.f32 %v3269, %v3358
        %v3364 = vld [vmem:[%s9] sm:$0x1]
        %v3365 = vadd.f32 %v3363, %v3364
        %v3366 = vmax.f32 %v3365, 0.0
        %v3367 = vpack.c.bf16 %v3366, %v3366
        %v3368 = vld [vmem:[%s10] sm:$0xf]
        %v3369 = vld [vmem:[%s10 + $0x4] sm:$0xf]
        %v3370 = vld [vmem:[%s10 + $0x8] sm:$0xf]
        %v3371 = vld [vmem:[%s10 + $0xc] sm:$0xf]
        %v3372 = vld [vmem:[%s10 + $0x10] sm:$0xf]
        %v3373 = vld [vmem:[%s10 + $0x14] sm:$0xf]
        %v3374 = vld [vmem:[%s10 + $0x18] sm:$0xf]
        %v3375 = vld [vmem:[%s10 + $0x1c] sm:$0xf]
        %v3376 = vld [vmem:[%s10 + $0x20] sm:$0xf]
        %v3377 = vld [vmem:[%s10 + $0x24] sm:$0xf]
        %v3378 = vld [vmem:[%s10 + $0x28] sm:$0xf]
        %v3379 = vld [vmem:[%s10 + $0x2c] sm:$0xf]
        %v3380 = vld [vmem:[%s10 + $0x30] sm:$0xf]
        %v3381 = vld [vmem:[%s10 + $0x34] sm:$0xf]
        %v3382 = vld [vmem:[%s10 + $0x38] sm:$0xf]
        %v3383 = vld [vmem:[%s10 + $0x3c] sm:$0xf]
        %v3384 = vld [vmem:[%s11] sm:$0x1]
        %v3401 = vunpack.c.l.b16 %v3368
        %v3402 = vunpack.c.l.b16 %v3369
        %v3403 = vunpack.c.l.b16 %v3370
        %v3404 = vunpack.c.l.b16 %v3371
        %v3405 = vunpack.c.l.b16 %v3372
        %v3406 = vunpack.c.l.b16 %v3373
        %v3407 = vunpack.c.l.b16 %v3374
        %v3408 = vunpack.c.l.b16 %v3375
        %v3409 = vunpack.c.l.b16 %v3376
        %v3410 = vunpack.c.l.b16 %v3377
        %v3411 = vunpack.c.l.b16 %v3378
        %v3412 = vunpack.c.l.b16 %v3379
        %v3413 = vunpack.c.l.b16 %v3380
        %v3414 = vunpack.c.l.b16 %v3381
        %v3415 = vunpack.c.l.b16 %v3382
        %v3416 = vunpack.c.l.b16 %v3383
        %v3417 = vpack.c.b16 %v3402, %v3401
        %v3418 = vpack.c.b16 %v3404, %v3403
        %v3419 = vpack.c.b16 %v3406, %v3405
        %v3420 = vpack.c.b16 %v3408, %v3407
        %v3421 = vpack.c.b16 %v3410, %v3409
        %v3422 = vpack.c.b16 %v3412, %v3411
        %v3423 = vpack.c.b16 %v3414, %v3413
        %v3424 = vpack.c.b16 %v3416, %v3415
        %3433 = vmatprep.subr.bf16.mxu0 0
        %3434 = vmatpush1.bf16.msra.mxu0 %v3417
        %3435 = vmatprep.subr.bf16.mxu0 0
        %3436 = vmatpush1.bf16.msra.mxu0 %v3418
        %3437 = vmatprep.subr.bf16.mxu0 0
        %3438 = vmatpush1.bf16.msra.mxu0 %v3419
        %3439 = vmatprep.subr.bf16.mxu0 0
        %3440 = vmatpush1.bf16.msra.mxu0 %v3420
        %3441 = vmatprep.subr.bf16.mxu0 0
        %3442 = vmatpush1.bf16.msra.mxu0 %v3421
        %3443 = vmatprep.subr.bf16.mxu0 0
        %3444 = vmatpush1.bf16.msra.mxu0 %v3422
        %3445 = vmatprep.subr.bf16.mxu0 0
        %3446 = vmatpush1.bf16.msra.mxu0 %v3423
        %3447 = vmatprep.subr.bf16.mxu0 0
        %3448 = vmatpush1.bf16.msra.mxu0 %v3424
        %3449 = vmatprep.subr.bf16.mxu0 0
        %3450 = vmatpush1.bf16.msra.mxu0 0
        %3451 = vmatprep.subr.bf16.mxu0 0
        %3452 = vmatpush1.bf16.msra.mxu0 0
        %3453 = vmatprep.subr.bf16.mxu0 0
        %3454 = vmatpush1.bf16.msra.mxu0 0
        %3455 = vmatprep.subr.bf16.mxu0 0
        %3456 = vmatpush1.bf16.msra.mxu0 0
        %3457 = vmatprep.subr.bf16.mxu0 0
        %3458 = vmatpush1.bf16.msra.mxu0 0
        %3459 = vmatprep.subr.bf16.mxu0 0
        %3460 = vmatpush1.bf16.msra.mxu0 0
        %3461 = vmatprep.subr.bf16.mxu0 0
        %3462 = vmatpush1.bf16.msra.mxu0 0
        %3463 = vmatprep.subr.bf16.mxu0 0
        %3464 = vmatpush1.bf16.msra.mxu0 0
        %3465 = vmatprep.mubr.bf16.mxu0 0
        %3466 = vmatmul.mubr.bf16.gmra.mrb[0].mxu0 %v3367
        %v3467 = vpop.f32.mrb[0].mxu0
        %v3468 = vadd.f32 %v3384, %v3467
        %v3469 = vpop.f32.mrb[0].mxu0
        %v3470 = vpop.f32.mrb[0].mxu0
        %v3471 = vpop.f32.mrb[0].mxu0
        %3472 = vdwg.mxu0
        %v3473 = vmax.f32 %v3468, 0.0
        %v3474 = vpack.c.bf16 %v3473, %v3473
        %v3475 = vld [vmem:[%s12] sm:$0xf]
        %v3476 = vld [vmem:[%s12 + $0x4] sm:$0xf]
        %v3477 = vld [vmem:[%s12 + $0x8] sm:$0xf]
        %v3478 = vld [vmem:[%s12 + $0xc] sm:$0xf]
        %v3479 = vld [vmem:[%s12 + $0x10] sm:$0xf]
        %v3480 = vld [vmem:[%s12 + $0x14] sm:$0xf]
        %v3481 = vld [vmem:[%s12 + $0x18] sm:$0xf]
        %v3482 = vld [vmem:[%s12 + $0x1c] sm:$0xf]
        %v3483 = vld [vmem:[%s12 + $0x20] sm:$0xf]
        %v3484 = vld [vmem:[%s12 + $0x24] sm:$0xf]
        %v3485 = vld [vmem:[%s12 + $0x28] sm:$0xf]
        %v3486 = vld [vmem:[%s12 + $0x2c] sm:$0xf]
        %v3487 = vld [vmem:[%s12 + $0x30] sm:$0xf]
        %v3488 = vld [vmem:[%s12 + $0x34] sm:$0xf]
        %v3489 = vld [vmem:[%s12 + $0x38] sm:$0xf]
        %v3490 = vld [vmem:[%s12 + $0x3c] sm:$0xf]
        %v3491 = vld [vmem:[%s13] sm:$0x1]
        %v3508 = vunpack.c.l.b16 %v3475
        %v3509 = vunpack.c.l.b16 %v3476
        %v3510 = vunpack.c.l.b16 %v3477
        %v3511 = vunpack.c.l.b16 %v3478
        %v3512 = vunpack.c.l.b16 %v3479
        %v3513 = vunpack.c.l.b16 %v3480
        %v3514 = vunpack.c.l.b16 %v3481
        %v3515 = vunpack.c.l.b16 %v3482
        %v3516 = vunpack.c.l.b16 %v3483
        %v3517 = vunpack.c.l.b16 %v3484
        %v3518 = vunpack.c.l.b16 %v3485
        %v3519 = vunpack.c.l.b16 %v3486
        %v3520 = vunpack.c.l.b16 %v3487
        %v3521 = vunpack.c.l.b16 %v3488
        %v3522 = vunpack.c.l.b16 %v3489
        %v3523 = vunpack.c.l.b16 %v3490
        %v3524 = vpack.c.b16 %v3509, %v3508
        %v3525 = vpack.c.b16 %v3511, %v3510
        %v3526 = vpack.c.b16 %v3513, %v3512
        %v3527 = vpack.c.b16 %v3515, %v3514
        %v3528 = vpack.c.b16 %v3517, %v3516
        %v3529 = vpack.c.b16 %v3519, %v3518
        %v3530 = vpack.c.b16 %v3521, %v3520
        %v3531 = vpack.c.b16 %v3523, %v3522
        %3540 = vmatprep.subr.bf16.mxu0 0
        %3541 = vmatpush1.bf16.msra.mxu0 %v3524
        %3542 = vmatprep.subr.bf16.mxu0 0
        %3543 = vmatpush1.bf16.msra.mxu0 %v3525
        %3544 = vmatprep.subr.bf16.mxu0 0
        %3545 = vmatpush1.bf16.msra.mxu0 %v3526
        %3546 = vmatprep.subr.bf16.mxu0 0
        %3547 = vmatpush1.bf16.msra.mxu0 %v3527
        %3548 = vmatprep.subr.bf16.mxu0 0
        %3549 = vmatpush1.bf16.msra.mxu0 %v3528
        %3550 = vmatprep.subr.bf16.mxu0 0
        %3551 = vmatpush1.bf16.msra.mxu0 %v3529
        %3552 = vmatprep.subr.bf16.mxu0 0
        %3553 = vmatpush1.bf16.msra.mxu0 %v3530
        %3554 = vmatprep.subr.bf16.mxu0 0
        %3555 = vmatpush1.bf16.msra.mxu0 %v3531
        %3556 = vmatprep.subr.bf16.mxu0 0
        %3557 = vmatpush1.bf16.msra.mxu0 0
        %3558 = vmatprep.subr.bf16.mxu0 0
        %3559 = vmatpush1.bf16.msra.mxu0 0
        %3560 = vmatprep.subr.bf16.mxu0 0
        %3561 = vmatpush1.bf16.msra.mxu0 0
        %3562 = vmatprep.subr.bf16.mxu0 0
        %3563 = vmatpush1.bf16.msra.mxu0 0
        %3564 = vmatprep.subr.bf16.mxu0 0
        %3565 = vmatpush1.bf16.msra.mxu0 0
        %3566 = vmatprep.subr.bf16.mxu0 0
        %3567 = vmatpush1.bf16.msra.mxu0 0
        %3568 = vmatprep.subr.bf16.mxu0 0
        %3569 = vmatpush1.bf16.msra.mxu0 0
        %3570 = vmatprep.subr.bf16.mxu0 0
        %3571 = vmatpush1.bf16.msra.mxu0 0
        %3572 = vmatprep.mubr.bf16.mxu0 0
        %3573 = vmatmul.mubr.bf16.gmra.mrb[0].mxu0 %v3474
        %v3574 = vpop.f32.mrb[0].mxu0
        %v3575 = vadd.f32 %v3491, %v3574
        %v3576 = vpop.f32.mrb[0].mxu0
        %v3577 = vpop.f32.mrb[0].mxu0
        %v3578 = vpop.f32.mrb[0].mxu0
        %3579 = vdwg.mxu0
        %v3580 = vmax.f32 %v3575, 0.0
        %3581 = vst [vmem:[%s541] sm:$0x1] %v3473
        %3582 = vst [vmem:[%s535] sm:$0x1] %v3580
        %s3583 = sand.u32 %s355, 1
        %s3584 = scalar_lea.sflag [#allocation3], %s3583
        %s3585 = sand.u32 %s355, 1
        %s3586 = scalar_lea.vmem [#allocation2], %s3585
        %s3587 = sand.u32 %s381, 1
        %s3588 = scalar_lea.sflag [#allocation5], %s3587
        %s3589 = sand.u32 %s381, 1
        %s3590 = scalar_lea.vmem [#allocation4], %s3589
        // Predicated region
        $region77: #{_lambda_.1} parent=75 // pred_check
          %p3591 = pneg %p365
        $region78: #{_lambda_.1} parent=75 // pred_check_branch
          %3593 = sbr.rel (%p3591) target = $region80
        $region79: #{_lambda_.1} parent=75 // pred_region
          %s3595 = ssub.s32 16, 16
          %3596 = vsyncadd %s3584, %s3595
          %s3597 = smul.addr %s33, 16
          %s3598 = scalar_lea.hbm %s14, %s3597
          %s3600 = sshll.u32 %s3586, 4
          %s3601 = int_to_ptr.vmem [resolvable:$true] %s3600
          %3603 = dma.vmem_to_hbm [thread:$0]  %s3601, 16, %s3598, %s3584
        $region80: #{_lambda_.1} parent=75 // pred_fallthru
          _
        // Predicated region
        $region81: #{_lambda_.1} parent=75 // pred_check
          %p3604 = pneg %p391
        $region82: #{_lambda_.1} parent=75 // pred_check_branch
          %3606 = sbr.rel (%p3604) target = $region84
        $region83: #{_lambda_.1} parent=75 // pred_region
          %s3608 = ssub.s32 16, 16
          %3609 = vsyncadd %s3588, %s3608
          %s3610 = smul.addr %s33, 16
          %s3611 = scalar_lea.hbm %s15, %s3610
          %s3613 = sshll.u32 %s3590, 4
          %s3614 = int_to_ptr.vmem [resolvable:$true] %s3613
          %3616 = dma.vmem_to_hbm [thread:$0]  %s3614, 16, %s3611, %s3588
        $region84: #{_lambda_.1} parent=75 // pred_fallthru
          _
      $region76: #{_lambda_.1} parent=5 // pred_fallthru
        _
      %p3617 = scmp.le.s32.totalorder 2, %s28
      // Predicated region
      $region85: #{_lambda_.1} parent=5 // pred_check
        %p3618 = pneg %p3617
      $region86: #{_lambda_.1} parent=5 // pred_check_branch
        %3620 = sbr.rel (%p3618) target = $region88
      $region87: #{_lambda_.1} parent=5 // pred_region
        %s3621 = ssub.s32 %s28, 2
        // Predicated region
        $region89: #{_lambda_.1} parent=87 // pred_check
          %p3622 = pneg %p371
        $region90: #{_lambda_.1} parent=87 // pred_check_branch
          %3624 = sbr.rel (%p3622) target = $region92
        $region91: #{_lambda_.1} parent=87 // pred_region
          %s3625 = sand.u32 %s356, 1
          %s3626 = scalar_lea.sflag [#allocation3], %s3625
          %s3627 = sand.u32 %s356, 1
          %s3628 = scalar_lea.vmem [#allocation2], %s3627
          %3629 = dma.done %s3626, 16
        $region92: #{_lambda_.1} parent=87 // pred_fallthru
          _
        // Predicated region
        $region93: #{_lambda_.1} parent=87 // pred_check
          %p3630 = pneg %p397
        $region94: #{_lambda_.1} parent=87 // pred_check_branch
          %3632 = sbr.rel (%p3630) target = $region96
        $region95: #{_lambda_.1} parent=87 // pred_region
          %s3633 = sand.u32 %s382, 1
          %s3634 = scalar_lea.sflag [#allocation5], %s3633
          %s3635 = sand.u32 %s382, 1
          %s3636 = scalar_lea.vmem [#allocation4], %s3635
          %3637 = dma.done %s3634, 16
        $region96: #{_lambda_.1} parent=87 // pred_fallthru
          _
      $region88: #{_lambda_.1} parent=5 // pred_fallthru
        _
    $region6: #{_lambda_.1} parent=1 // loop_footer
      %s32 = sadd.s32 1, %s28
    $region7: #{_lambda_.1} parent=1 // loop_footer_branch
      %27 = sbr.rel target = $region3
    $region8: #{_lambda_.1} parent=1 // loop_exit
      _
    %3638 = vsyncpa [#allocation3], 1
    %s3639 = scalar_lea.sflag [#allocation3], 1
    %3640 = vsyncpa %s3639, 1
    %3641 = vsyncpa [#allocation5], 1
    %s3642 = scalar_lea.sflag [#allocation5], 1
    %3643 = vsyncpa %s3642, 1

</llo_original>
